<compile_context>
chip_gen: v7x
topology: tpu7x:2x2x1
jax: 0.10.0
libtpu: 0.0.40
codegen_flags: <defaults>
</compile_context>

<pallas_src>
import jax
import jax.numpy as jnp
import numpy as np
from jax.experimental import pallas as pl
from jax.experimental.pallas import tpu as pltpu


def make_mhfe_kernel(F, V, D, H, TB):
    d = D // H          # per-head embedding width
    half = d // 2       # size of each of the two splits inside a head

    def kernel(ids_ref, w_ref, out_ref):
        # ids_ref: (TB, F) int32 vocab indices for this batch tile (VMEM)
        # w_ref  : (F, V, D) embedding table, resident in VMEM
        # out_ref: (TB, H*F*d) flat lane-dense output block
        ids = ids_ref[...]                                            # (TB, F)
        iota_v = jax.lax.broadcasted_iota(jnp.int32, (TB, V), 1)      # hoisted

        # --- 1) embedding lookup as per-field one-hot matmuls on the MXU.
        rows = []
        for f in range(F):                                            # F is small & static
            onehot = (ids[:, f:f + 1] == iota_v).astype(w_ref.dtype)  # (TB, V)
            rows_f = jnp.dot(onehot, w_ref[f],
                             preferred_element_type=jnp.float32,
                             precision=jax.lax.Precision.HIGHEST)     # (TB, D), exact gather
            rows.append(rows_f)

        # --- 2) head/half permutation assembled in registers, single store.
        #     out[:, h*F*d + (s*F+f)*half + c] = rows[f][:, h*d + s*half + c]
        pieces = []
        for h in range(H):
            for s in range(2):
                lo = h * d + s * half
                pieces.append(jnp.concatenate(
                    [rows[f][:, lo:lo + half] for f in range(F)], axis=1))  # (TB, F*half)
        out_ref[...] = jnp.concatenate(pieces, axis=1).astype(out_ref.dtype)

    return kernel


def multihead_feature_embedding(X, W, num_heads, tb=32):
    """X: (B, F) int categorical indices, W: (F, V, D) per-field embedding table.

    Returns (B, num_heads, F * D // num_heads), matching the PyTorch module.
    """
    B, F = X.shape
    F2, V, D = W.shape
    H = num_heads
    assert F == F2 and D % (2 * H) == 0
    d = D // H
    out_dim = H * F * d                    # == F * D

    TB = max(8, tb)                        # batch rows per grid step (sublane-dense)
    B_pad = ((B + TB - 1) // TB) * TB

    # Guard untrusted indices (PyTorch would raise on OOB; here we clamp -- documented
    # semantic difference kept from the previous version).
    ids = jnp.clip(X.astype(jnp.int32), 0, V - 1)
    if B_pad != B:
        ids = jnp.pad(ids, ((0, B_pad - B), (0, 0)))   # pad rows gather vocab 0 (discarded)

    # VMEM budget: resident table + double-buffered ids/out blocks + margin,
    # clamped so the same setting is legal on v5e/v6e/v7x.
    itemsize = W.dtype.itemsize
    vmem_needed = (F * V * D * itemsize            # resident W
                   + 2 * TB * F * 4                # ids block, double-buffered
                   + 2 * TB * out_dim * itemsize   # out block, double-buffered
                   + (2 << 20))                    # compiler scratch margin
    vmem_limit = int(min(max(vmem_needed, 16 * 1024 * 1024), 64 * 1024 * 1024))
    # TODO(synk): for vocabularies whose table exceeds the per-generation VMEM
    # budget, fall back to a manual HBM gather (memory_space=pl.ANY + async DMA).

    kernel = make_mhfe_kernel(F, V, D, H, TB)
    out = pl.pallas_call(
        kernel,
        out_shape=jax.ShapeDtypeStruct((B_pad, out_dim), W.dtype),
        grid_spec=pltpu.PrefetchScalarGridSpec(
            num_scalar_prefetch=0,
            grid=(B_pad // TB,),
            in_specs=[
                pl.BlockSpec((TB, F), lambda bi: (bi, 0)),      # ids batch tile
                pl.BlockSpec((F, V, D), lambda bi: (0, 0, 0)),  # W: constant block -> resident
            ],
            out_specs=pl.BlockSpec((TB, out_dim), lambda bi: (bi, 0)),  # lane-dense 2-D slab
        ),
        compiler_params=pltpu.CompilerParams(
            dimension_semantics=("parallel",),     # batch tiles independent (megacore on v7x)
            vmem_limit_bytes=vmem_limit,
        ),
    )(ids, W)
    return out[:B].reshape(B, H, F * d)


if __name__ == "__main__":
    # Small synthetic configuration consistent with the module:
    #   batch B=2, num_fields F=6, per-field vocab V=16,
    #   embedding_dim D=16, num_heads H=2  ->  output (2, 2, 48)
    B, F, V, D, H = 2, 6, 16, 16, 2

    key = jax.random.PRNGKey(0)
    kw, kx = jax.random.split(key)
    W = jax.random.normal(kw, (F, V, D), dtype=jnp.float32)       # deterministic params
    X = jax.random.randint(kx, (B, F), 0, V, dtype=jnp.int32)     # deterministic inputs

    out = multihead_feature_embedding(X, W, H)
    out = jax.block_until_ready(out)

    # Pure-JAX reference of the PyTorch forward.
    E = W[jnp.arange(F)[None, :], X]                              # (B, F, D) embedding lookup
    d = D // H
    half = d // 2
    ref = (E.reshape(B, F, H, 2, half)
             .transpose(0, 2, 3, 1, 4)
             .reshape(B, H, F * d))
    np.testing.assert_allclose(np.asarray(out), np.asarray(ref), rtol=1e-6, atol=1e-6)

    print("KERNEL_OK")
</pallas_src>

<mosaic_0001>
module attributes {stable_mosaic.version = 11 : i64} {
  func.func @kernel(%arg0: i32, %arg1: memref<32x6xi32, #tpu.memory_space<vmem>>, %arg2: memref<6x16x16xf32, #tpu.memory_space<vmem>>, %arg3: memref<32x96xf32, #tpu.memory_space<vmem>>) attributes {dimension_semantics = [#tpu.dimension_semantics<parallel>], iteration_bounds = array<i64: 1>, scalar_prefetch = 0 : i64, scratch_operands = 0 : i64, tpu.core_type = #tpu.core_type<tc>, window_params = [{transform_indices = @transform_0, window_bounds = array<i64: 32, 6>}, {pipeline_mode = #tpu.pipeline_mode<synchronous>, transform_indices = @transform_1, window_bounds = array<i64: 6, 16, 16>}, {transform_indices = @transform_2, window_bounds = array<i64: 32, 96>}]} {
    %c0 = arith.constant 0 : index
    %c0_0 = arith.constant 0 : index
    %0 = vector.load %arg1[%c0, %c0_0] : memref<32x6xi32, #tpu.memory_space<vmem>>, vector<32x6xi32>
    %1 = tpu.iota {dimensions = array<i32: 1>} : vector<32x16xi32>
    %2 = vector.extract_strided_slice %0 {offsets = [0, 0], sizes = [32, 1], strides = [1, 1]} : vector<32x6xi32> to vector<32x1xi32>
    %3 = vector.broadcast %2 : vector<32x1xi32> to vector<32x16xi32>
    %4 = arith.cmpi eq, %3, %1 : vector<32x16xi32>
    %5 = arith.extui %4 : vector<32x16xi1> to vector<32x16xi32>
    %6 = arith.sitofp %5 : vector<32x16xi32> to vector<32x16xf32>
    %c0_1 = arith.constant 0 : index
    %c0_2 = arith.constant 0 : index
    %c0_3 = arith.constant 0 : index
    %7 = vector.load %arg2[%c0_1, %c0_2, %c0_3] : memref<6x16x16xf32, #tpu.memory_space<vmem>>, vector<1x16x16xf32>
    %8 = vector.shape_cast %7 : vector<1x16x16xf32> to vector<16x16xf32>
    %cst = arith.constant dense<0.000000e+00> : vector<32x16xf32>
    %9 = tpu.matmul %6, %8, %cst {dimension_numbers = #tpu.dot_dimension_numbers<[1], [0], [0], [1], [0, 0, 1, 1], [], []>, precision = #tpu.contract_precision<fp32>} : vector<32x16xf32>, vector<16x16xf32>, vector<32x16xf32> -> vector<32x16xf32>
    %10 = vector.extract_strided_slice %0 {offsets = [0, 1], sizes = [32, 1], strides = [1, 1]} : vector<32x6xi32> to vector<32x1xi32>
    %11 = vector.broadcast %10 : vector<32x1xi32> to vector<32x16xi32>
    %12 = arith.cmpi eq, %11, %1 : vector<32x16xi32>
    %13 = arith.extui %12 : vector<32x16xi1> to vector<32x16xi32>
    %14 = arith.sitofp %13 : vector<32x16xi32> to vector<32x16xf32>
    %c1 = arith.constant 1 : index
    %c0_4 = arith.constant 0 : index
    %c0_5 = arith.constant 0 : index
    %15 = vector.load %arg2[%c1, %c0_4, %c0_5] : memref<6x16x16xf32, #tpu.memory_space<vmem>>, vector<1x16x16xf32>
    %16 = vector.shape_cast %15 : vector<1x16x16xf32> to vector<16x16xf32>
    %cst_6 = arith.constant dense<0.000000e+00> : vector<32x16xf32>
    %17 = tpu.matmul %14, %16, %cst_6 {dimension_numbers = #tpu.dot_dimension_numbers<[1], [0], [0], [1], [0, 0, 1, 1], [], []>, precision = #tpu.contract_precision<fp32>} : vector<32x16xf32>, vector<16x16xf32>, vector<32x16xf32> -> vector<32x16xf32>
    %18 = vector.extract_strided_slice %0 {offsets = [0, 2], sizes = [32, 1], strides = [1, 1]} : vector<32x6xi32> to vector<32x1xi32>
    %19 = vector.broadcast %18 : vector<32x1xi32> to vector<32x16xi32>
    %20 = arith.cmpi eq, %19, %1 : vector<32x16xi32>
    %21 = arith.extui %20 : vector<32x16xi1> to vector<32x16xi32>
    %22 = arith.sitofp %21 : vector<32x16xi32> to vector<32x16xf32>
    %c2 = arith.constant 2 : index
    %c0_7 = arith.constant 0 : index
    %c0_8 = arith.constant 0 : index
    %23 = vector.load %arg2[%c2, %c0_7, %c0_8] : memref<6x16x16xf32, #tpu.memory_space<vmem>>, vector<1x16x16xf32>
    %24 = vector.shape_cast %23 : vector<1x16x16xf32> to vector<16x16xf32>
    %cst_9 = arith.constant dense<0.000000e+00> : vector<32x16xf32>
    %25 = tpu.matmul %22, %24, %cst_9 {dimension_numbers = #tpu.dot_dimension_numbers<[1], [0], [0], [1], [0, 0, 1, 1], [], []>, precision = #tpu.contract_precision<fp32>} : vector<32x16xf32>, vector<16x16xf32>, vector<32x16xf32> -> vector<32x16xf32>
    %26 = vector.extract_strided_slice %0 {offsets = [0, 3], sizes = [32, 1], strides = [1, 1]} : vector<32x6xi32> to vector<32x1xi32>
    %27 = vector.broadcast %26 : vector<32x1xi32> to vector<32x16xi32>
    %28 = arith.cmpi eq, %27, %1 : vector<32x16xi32>
    %29 = arith.extui %28 : vector<32x16xi1> to vector<32x16xi32>
    %30 = arith.sitofp %29 : vector<32x16xi32> to vector<32x16xf32>
    %c3 = arith.constant 3 : index
    %c0_10 = arith.constant 0 : index
    %c0_11 = arith.constant 0 : index
    %31 = vector.load %arg2[%c3, %c0_10, %c0_11] : memref<6x16x16xf32, #tpu.memory_space<vmem>>, vector<1x16x16xf32>
    %32 = vector.shape_cast %31 : vector<1x16x16xf32> to vector<16x16xf32>
    %cst_12 = arith.constant dense<0.000000e+00> : vector<32x16xf32>
    %33 = tpu.matmul %30, %32, %cst_12 {dimension_numbers = #tpu.dot_dimension_numbers<[1], [0], [0], [1], [0, 0, 1, 1], [], []>, precision = #tpu.contract_precision<fp32>} : vector<32x16xf32>, vector<16x16xf32>, vector<32x16xf32> -> vector<32x16xf32>
    %34 = vector.extract_strided_slice %0 {offsets = [0, 4], sizes = [32, 1], strides = [1, 1]} : vector<32x6xi32> to vector<32x1xi32>
    %35 = vector.broadcast %34 : vector<32x1xi32> to vector<32x16xi32>
    %36 = arith.cmpi eq, %35, %1 : vector<32x16xi32>
    %37 = arith.extui %36 : vector<32x16xi1> to vector<32x16xi32>
    %38 = arith.sitofp %37 : vector<32x16xi32> to vector<32x16xf32>
    %c4 = arith.constant 4 : index
    %c0_13 = arith.constant 0 : index
    %c0_14 = arith.constant 0 : index
    %39 = vector.load %arg2[%c4, %c0_13, %c0_14] : memref<6x16x16xf32, #tpu.memory_space<vmem>>, vector<1x16x16xf32>
    %40 = vector.shape_cast %39 : vector<1x16x16xf32> to vector<16x16xf32>
    %cst_15 = arith.constant dense<0.000000e+00> : vector<32x16xf32>
    %41 = tpu.matmul %38, %40, %cst_15 {dimension_numbers = #tpu.dot_dimension_numbers<[1], [0], [0], [1], [0, 0, 1, 1], [], []>, precision = #tpu.contract_precision<fp32>} : vector<32x16xf32>, vector<16x16xf32>, vector<32x16xf32> -> vector<32x16xf32>
    %42 = vector.extract_strided_slice %0 {offsets = [0, 5], sizes = [32, 1], strides = [1, 1]} : vector<32x6xi32> to vector<32x1xi32>
    %43 = vector.broadcast %42 : vector<32x1xi32> to vector<32x16xi32>
    %44 = arith.cmpi eq, %43, %1 : vector<32x16xi32>
    %45 = arith.extui %44 : vector<32x16xi1> to vector<32x16xi32>
    %46 = arith.sitofp %45 : vector<32x16xi32> to vector<32x16xf32>
    %c5 = arith.constant 5 : index
    %c0_16 = arith.constant 0 : index
    %c0_17 = arith.constant 0 : index
    %47 = vector.load %arg2[%c5, %c0_16, %c0_17] : memref<6x16x16xf32, #tpu.memory_space<vmem>>, vector<1x16x16xf32>
    %48 = vector.shape_cast %47 : vector<1x16x16xf32> to vector<16x16xf32>
    %cst_18 = arith.constant dense<0.000000e+00> : vector<32x16xf32>
    %49 = tpu.matmul %46, %48, %cst_18 {dimension_numbers = #tpu.dot_dimension_numbers<[1], [0], [0], [1], [0, 0, 1, 1], [], []>, precision = #tpu.contract_precision<fp32>} : vector<32x16xf32>, vector<16x16xf32>, vector<32x16xf32> -> vector<32x16xf32>
    %50 = vector.extract_strided_slice %9 {offsets = [0, 0], sizes = [32, 4], strides = [1, 1]} : vector<32x16xf32> to vector<32x4xf32>
    %51 = vector.extract_strided_slice %17 {offsets = [0, 0], sizes = [32, 4], strides = [1, 1]} : vector<32x16xf32> to vector<32x4xf32>
    %52 = vector.extract_strided_slice %25 {offsets = [0, 0], sizes = [32, 4], strides = [1, 1]} : vector<32x16xf32> to vector<32x4xf32>
    %53 = vector.extract_strided_slice %33 {offsets = [0, 0], sizes = [32, 4], strides = [1, 1]} : vector<32x16xf32> to vector<32x4xf32>
    %54 = vector.extract_strided_slice %41 {offsets = [0, 0], sizes = [32, 4], strides = [1, 1]} : vector<32x16xf32> to vector<32x4xf32>
    %55 = vector.extract_strided_slice %49 {offsets = [0, 0], sizes = [32, 4], strides = [1, 1]} : vector<32x16xf32> to vector<32x4xf32>
    %56 = tpu.concatenate %50, %51, %52, %53, %54, %55 in 1 : vector<32x4xf32>, vector<32x4xf32>, vector<32x4xf32>, vector<32x4xf32>, vector<32x4xf32>, vector<32x4xf32> -> vector<32x24xf32>
    %57 = vector.extract_strided_slice %9 {offsets = [0, 4], sizes = [32, 4], strides = [1, 1]} : vector<32x16xf32> to vector<32x4xf32>
    %58 = vector.extract_strided_slice %17 {offsets = [0, 4], sizes = [32, 4], strides = [1, 1]} : vector<32x16xf32> to vector<32x4xf32>
    %59 = vector.extract_strided_slice %25 {offsets = [0, 4], sizes = [32, 4], strides = [1, 1]} : vector<32x16xf32> to vector<32x4xf32>
    %60 = vector.extract_strided_slice %33 {offsets = [0, 4], sizes = [32, 4], strides = [1, 1]} : vector<32x16xf32> to vector<32x4xf32>
    %61 = vector.extract_strided_slice %41 {offsets = [0, 4], sizes = [32, 4], strides = [1, 1]} : vector<32x16xf32> to vector<32x4xf32>
    %62 = vector.extract_strided_slice %49 {offsets = [0, 4], sizes = [32, 4], strides = [1, 1]} : vector<32x16xf32> to vector<32x4xf32>
    %63 = tpu.concatenate %57, %58, %59, %60, %61, %62 in 1 : vector<32x4xf32>, vector<32x4xf32>, vector<32x4xf32>, vector<32x4xf32>, vector<32x4xf32>, vector<32x4xf32> -> vector<32x24xf32>
    %64 = vector.extract_strided_slice %9 {offsets = [0, 8], sizes = [32, 4], strides = [1, 1]} : vector<32x16xf32> to vector<32x4xf32>
    %65 = vector.extract_strided_slice %17 {offsets = [0, 8], sizes = [32, 4], strides = [1, 1]} : vector<32x16xf32> to vector<32x4xf32>
    %66 = vector.extract_strided_slice %25 {offsets = [0, 8], sizes = [32, 4], strides = [1, 1]} : vector<32x16xf32> to vector<32x4xf32>
    %67 = vector.extract_strided_slice %33 {offsets = [0, 8], sizes = [32, 4], strides = [1, 1]} : vector<32x16xf32> to vector<32x4xf32>
    %68 = vector.extract_strided_slice %41 {offsets = [0, 8], sizes = [32, 4], strides = [1, 1]} : vector<32x16xf32> to vector<32x4xf32>
    %69 = vector.extract_strided_slice %49 {offsets = [0, 8], sizes = [32, 4], strides = [1, 1]} : vector<32x16xf32> to vector<32x4xf32>
    %70 = tpu.concatenate %64, %65, %66, %67, %68, %69 in 1 : vector<32x4xf32>, vector<32x4xf32>, vector<32x4xf32>, vector<32x4xf32>, vector<32x4xf32>, vector<32x4xf32> -> vector<32x24xf32>
    %71 = vector.extract_strided_slice %9 {offsets = [0, 12], sizes = [32, 4], strides = [1, 1]} : vector<32x16xf32> to vector<32x4xf32>
    %72 = vector.extract_strided_slice %17 {offsets = [0, 12], sizes = [32, 4], strides = [1, 1]} : vector<32x16xf32> to vector<32x4xf32>
    %73 = vector.extract_strided_slice %25 {offsets = [0, 12], sizes = [32, 4], strides = [1, 1]} : vector<32x16xf32> to vector<32x4xf32>
    %74 = vector.extract_strided_slice %33 {offsets = [0, 12], sizes = [32, 4], strides = [1, 1]} : vector<32x16xf32> to vector<32x4xf32>
    %75 = vector.extract_strided_slice %41 {offsets = [0, 12], sizes = [32, 4], strides = [1, 1]} : vector<32x16xf32> to vector<32x4xf32>
    %76 = vector.extract_strided_slice %49 {offsets = [0, 12], sizes = [32, 4], strides = [1, 1]} : vector<32x16xf32> to vector<32x4xf32>
    %77 = tpu.concatenate %71, %72, %73, %74, %75, %76 in 1 : vector<32x4xf32>, vector<32x4xf32>, vector<32x4xf32>, vector<32x4xf32>, vector<32x4xf32>, vector<32x4xf32> -> vector<32x24xf32>
    %78 = tpu.concatenate %56, %63, %70, %77 in 1 : vector<32x24xf32>, vector<32x24xf32>, vector<32x24xf32>, vector<32x24xf32> -> vector<32x96xf32>
    %c0_19 = arith.constant 0 : index
    %c0_20 = arith.constant 0 : index
    %79 = vector.load %arg3[%c0_19, %c0_20] : memref<32x96xf32, #tpu.memory_space<vmem>>, vector<32x96xf32>
    tpu.vector_store %arg3[%c0_19, %c0_20], %78 {strides = array<i32>} : memref<32x96xf32, #tpu.memory_space<vmem>>, vector<32x96xf32>,
    return
  }
  func.func @transform_0(%arg0: i32) -> (i32, i32) {
    %c0_i32 = arith.constant 0 : i32
    %c0_i32_0 = arith.constant 0 : i32
    return %arg0, %c0_i32 : i32, i32
  }
  func.func @transform_1(%arg0: i32) -> (i32, i32, i32) {
    %c0_i32 = arith.constant 0 : i32
    %c0_i32_0 = arith.constant 0 : i32
    %c0_i32_1 = arith.constant 0 : i32
    %c0_i32_2 = arith.constant 0 : i32
    return %c0_i32, %c0_i32_0, %c0_i32_1 : i32, i32, i32
  }
  func.func @transform_2(%arg0: i32) -> (i32, i32) {
    %c0_i32 = arith.constant 0 : i32
    %c0_i32_0 = arith.constant 0 : i32
    return %arg0, %c0_i32 : i32, i32
  }
}

</mosaic_0001>

<llo_original>
// kernel: tpu_custom_call.1
$region0: #{tpu_custom_call.1}
  #allocation0 [shape = 'u32[]', space=smem, size = 0x4, offset = 0x4, fixed_abs, tag = 'smem constant byte address 0x4 - core index']
  #allocation1 [shape = 'u32[144,128]{1,0:T(1,128)}', space=vmem, size = 0x12000, scoped, tag = 'internal scratch']
  %s0 = inlined_call_operand.vmem [shape: s32[32,6], index: 0, kind: input, shape index: {}]
  %s1 = inlined_call_operand.hbm [shape: f32[6,16,16], index: 1, kind: input, shape index: {}]
  %s2 = inlined_call_operand.hbm [shape: f32[32,96], index: 2, kind: output, shape index: {}]
  %s3 = sld [smem:[#allocation0]]
  $region22: #{tpu_custom_call.1} parent=0
    _
  %s5 = ssub.s32 1, %s3
  %s6 = scalar_select 0, %s5, %s3
  $region1: #{tpu_custom_call.1} parent=0
    #allocation2 [shape = 'u8[49152]{0}', space=vmem, size = 0xc000, scoped, tag = 'input window, operand 1, single buffered']
    #allocation3 [shape = 's32[1]{0}', space=sflag, size = 0x4, scoped, tag = 'scoped memory for tpu_custom_call.1']
    #allocation4 [shape = 's32[1]{0}', space=sflag, size = 0x4, scoped, tag = 'scoped memory for tpu_custom_call.1']
    #allocation5 [shape = 'u8[16384]{0}', space=vmem, size = 0x4000, scoped, tag = 'output window, operand 0, single buffered']
    %7 = vsyncpa [#allocation3], 0
    %8 = vsyncpa [#allocation4], 0
    // Predicated region
    $region2: #{tpu_custom_call.1} parent=1 // pred_check
      _
    $region3: #{tpu_custom_call.1} parent=1 // pred_check_branch
      %10 = sbr.rel (0) target = $region5
    $region4: #{tpu_custom_call.1} parent=1 // pred_region
      _
    $region5: #{tpu_custom_call.1} parent=1 // pred_fallthru
      _
    // Predicated region
    $region6: #{tpu_custom_call.1} parent=1 // pred_check
      _
    $region7: #{tpu_custom_call.1} parent=1 // pred_check_branch
      %12 = sbr.rel (0) target = $region9
    $region8: #{tpu_custom_call.1} parent=1 // pred_region
      %s14 = ssub.s32 1536, 1536
      %15 = vsyncadd [#allocation3], %s14
      %s16 = sshll.u32 [#allocation2], 4
      %s17 = int_to_ptr.vmem [resolvable:$true] %s16
      %22 = dma.hbm_to_vmem [thread:$0]  %s1, 1536, %s17, [#allocation3], 128, 128, 8
    $region9: #{tpu_custom_call.1} parent=1 // pred_fallthru
      _
    // Predicated region
    $region10: #{tpu_custom_call.1} parent=1 // pred_check
      _
    $region11: #{tpu_custom_call.1} parent=1 // pred_check_branch
      %24 = sbr.rel (0) target = $region13
    $region12: #{tpu_custom_call.1} parent=1 // pred_region
      %25 = dma.done [#allocation3], 1536
    $region13: #{tpu_custom_call.1} parent=1 // pred_fallthru
      _
    %v26 = vld [vmem:[%s0] sm:$0xff]
    %v27 = vld [vmem:[%s0 + $0x8] sm:$0xff]
    %v28 = vld [vmem:[%s0 + $0x10] sm:$0xff]
    %v29 = vld [vmem:[%s0 + $0x18] sm:$0xff]
    %v30 = vlaneseq
    %v31 = vand.u32 %v30, 127
    %32 = vset.pattern.permute.xlu0 0
    %33 = vperm.xlu0 %32, %v26
    %v34 = vpop.permute.xlu0 %33
    %35 = vset.pattern.permute.xlu0 0
    %36 = vperm.xlu0 %35, %v27
    %v37 = vpop.permute.xlu0 %36
    %38 = vset.pattern.permute.xlu0 0
    %39 = vperm.xlu0 %38, %v28
    %v40 = vpop.permute.xlu0 %39
    %41 = vset.pattern.permute.xlu0 0
    %42 = vperm.xlu0 %41, %v29
    %v43 = vpop.permute.xlu0 %42
    %vm44 = vcmp.eq.s32.totalorder %v34, %v31
    %vm45 = vcmp.eq.s32.totalorder %v37, %v31
    %vm46 = vcmp.eq.s32.totalorder %v40, %v31
    %vm47 = vcmp.eq.s32.totalorder %v43, %v31
    %v48 = vsel %vm44, 1, 0
    %v49 = vsel %vm45, 1, 0
    %v50 = vsel %vm46, 1, 0
    %v51 = vsel %vm47, 1, 0
    %v52 = vcvt.s32.f32 %v48
    %v53 = vcvt.s32.f32 %v49
    %v54 = vcvt.s32.f32 %v50
    %v55 = vcvt.s32.f32 %v51
    %v56 = vld [vmem:[#allocation2] sm:$0xff]
    %v57 = vld [vmem:[#allocation2 + $0x8] sm:$0xff]
    %vm58 = vcmask 130048
    %v60 = vsel %vm58, %v52, 0
    %v63 = vsel %vm58, %v53, 0
    %v66 = vsel %vm58, %v54, 0
    %v69 = vsel %vm58, %v55, 0
    %71 = vmatprep.subr.mxu0 0.0
    %v72 = vand.u32 %v56, 4294901760
    %73 = vmatpush1.msra.mxu0 %v72
    %74 = vmatprep.subr.mxu0 0.0
    %v75 = vand.u32 %v57, 4294901760
    %76 = vmatpush1.msra.mxu0 %v75
    %77 = vmatprep.subr.mxu0 0.0
    %78 = vmatpush1.msra.mxu0 0.0
    %79 = vmatprep.subr.mxu0 0.0
    %80 = vmatpush1.msra.mxu0 0.0
    %81 = vmatprep.subr.mxu0 0.0
    %82 = vmatpush1.msra.mxu0 0.0
    %83 = vmatprep.subr.mxu0 0.0
    %84 = vmatpush1.msra.mxu0 0.0
    %85 = vmatprep.subr.mxu0 0.0
    %86 = vmatpush1.msra.mxu0 0.0
    %87 = vmatprep.subr.mxu0 0.0
    %88 = vmatpush1.msra.mxu0 0.0
    %89 = vmatprep.subr.mxu0 0.0
    %90 = vmatpush1.msra.mxu0 0.0
    %91 = vmatprep.subr.mxu0 0.0
    %92 = vmatpush1.msra.mxu0 0.0
    %93 = vmatprep.subr.mxu0 0.0
    %94 = vmatpush1.msra.mxu0 0.0
    %95 = vmatprep.subr.mxu0 0.0
    %96 = vmatpush1.msra.mxu0 0.0
    %97 = vmatprep.subr.mxu0 0.0
    %98 = vmatpush1.msra.mxu0 0.0
    %99 = vmatprep.subr.mxu0 0.0
    %100 = vmatpush1.msra.mxu0 0.0
    %101 = vmatprep.subr.mxu0 0.0
    %102 = vmatpush1.msra.mxu0 0.0
    %103 = vmatprep.subr.mxu0 0.0
    %104 = vmatpush1.msra.mxu0 0.0
    %105 = vmatprep.subr.mxu0 0.0
    %106 = vmatpush1.msra.mxu0 0.0
    %107 = vmatprep.subr.mxu0 0.0
    %108 = vmatpush1.msra.mxu0 0.0
    %109 = vmatprep.subr.mxu0 0.0
    %110 = vmatpush1.msra.mxu0 0.0
    %111 = vmatprep.subr.mxu0 0.0
    %112 = vmatpush1.msra.mxu0 0.0
    %113 = vmatprep.subr.mxu0 0.0
    %114 = vmatpush1.msra.mxu0 0.0
    %115 = vmatprep.subr.mxu0 0.0
    %116 = vmatpush1.msra.mxu0 0.0
    %117 = vmatprep.subr.mxu0 0.0
    %118 = vmatpush1.msra.mxu0 0.0
    %119 = vmatprep.subr.mxu0 0.0
    %120 = vmatpush1.msra.mxu0 0.0
    %121 = vmatprep.subr.mxu0 0.0
    %122 = vmatpush1.msra.mxu0 0.0
    %123 = vmatprep.subr.mxu0 0.0
    %124 = vmatpush1.msra.mxu0 0.0
    %125 = vmatprep.subr.mxu0 0.0
    %126 = vmatpush1.msra.mxu0 0.0
    %127 = vmatprep.subr.mxu0 0.0
    %128 = vmatpush1.msra.mxu0 0.0
    %129 = vmatprep.subr.mxu0 0.0
    %130 = vmatpush1.msra.mxu0 0.0
    %131 = vmatprep.subr.mxu0 0.0
    %132 = vmatpush1.msra.mxu0 0.0
    %133 = vmatprep.subr.mxu0 0.0
    %134 = vmatpush1.msra.mxu0 0.0
    %135 = vmatprep.subr.mxu0 0.0
    %136 = vmatpush1.msra.mxu0 0.0
    %137 = vmatprep.mubr.f32.mxu0 0.0
    %v138 = vand.u32 %v60, 4294901760
    %v139 = vsub.f32 %v60, %v138
    %v140 = vand.u32 %v139, 4294901760
    %v141 = vsub.f32 %v139, %v140
    %v142 = vand.u32 %v141, 4294901760
    %143 = vmatmul.mubr.f32.gmra.mrb[0].mxu0 %v142
    %v144 = vpop.f32.mrb[0].mxu0
    %v145 = vadd.f32 0.0, %v144
    %v146 = vpop.f32.mrb[0].mxu0
    %147 = vmatprep.mubr.f32.mxu0 0.0
    %v148 = vand.u32 %v63, 4294901760
    %v149 = vsub.f32 %v63, %v148
    %v150 = vand.u32 %v149, 4294901760
    %v151 = vsub.f32 %v149, %v150
    %v152 = vand.u32 %v151, 4294901760
    %153 = vmatmul.mubr.f32.gmra.mrb[0].mxu0 %v152
    %v154 = vpop.f32.mrb[0].mxu0
    %v155 = vadd.f32 0.0, %v154
    %v156 = vpop.f32.mrb[0].mxu0
    %157 = vmatprep.mubr.f32.mxu0 0.0
    %v158 = vand.u32 %v66, 4294901760
    %v159 = vsub.f32 %v66, %v158
    %v160 = vand.u32 %v159, 4294901760
    %v161 = vsub.f32 %v159, %v160
    %v162 = vand.u32 %v161, 4294901760
    %163 = vmatmul.mubr.f32.gmra.mrb[0].mxu0 %v162
    %v164 = vpop.f32.mrb[0].mxu0
    %v165 = vadd.f32 0.0, %v164
    %v166 = vpop.f32.mrb[0].mxu0
    %167 = vmatprep.mubr.f32.mxu0 0.0
    %v168 = vand.u32 %v69, 4294901760
    %v169 = vsub.f32 %v69, %v168
    %v170 = vand.u32 %v169, 4294901760
    %v171 = vsub.f32 %v169, %v170
    %v172 = vand.u32 %v171, 4294901760
    %173 = vmatmul.mubr.f32.gmra.mrb[0].mxu0 %v172
    %v174 = vpop.f32.mrb[0].mxu0
    %v175 = vadd.f32 0.0, %v174
    %v176 = vpop.f32.mrb[0].mxu0
    %177 = vdwg.mxu0
    %178 = vmatprep.subr.mxu0 0.0
    %v179 = vand.u32 %v56, 4294901760
    %v180 = vsub.f32 %v56, %v179
    %v181 = vand.u32 %v180, 4294901760
    %v182 = vsub.f32 %v180, %v181
    %v183 = vand.u32 %v182, 4294901760
    %184 = vmatpush1.msra.mxu0 %v183
    %185 = vmatprep.subr.mxu0 0.0
    %v186 = vand.u32 %v57, 4294901760
    %v187 = vsub.f32 %v57, %v186
    %v188 = vand.u32 %v187, 4294901760
    %v189 = vsub.f32 %v187, %v188
    %v190 = vand.u32 %v189, 4294901760
    %191 = vmatpush1.msra.mxu0 %v190
    %192 = vmatprep.subr.mxu0 0.0
    %193 = vmatpush1.msra.mxu0 0.0
    %194 = vmatprep.subr.mxu0 0.0
    %195 = vmatpush1.msra.mxu0 0.0
    %196 = vmatprep.subr.mxu0 0.0
    %197 = vmatpush1.msra.mxu0 0.0
    %198 = vmatprep.subr.mxu0 0.0
    %199 = vmatpush1.msra.mxu0 0.0
    %200 = vmatprep.subr.mxu0 0.0
    %201 = vmatpush1.msra.mxu0 0.0
    %202 = vmatprep.subr.mxu0 0.0
    %203 = vmatpush1.msra.mxu0 0.0
    %204 = vmatprep.subr.mxu0 0.0
    %205 = vmatpush1.msra.mxu0 0.0
    %206 = vmatprep.subr.mxu0 0.0
    %207 = vmatpush1.msra.mxu0 0.0
    %208 = vmatprep.subr.mxu0 0.0
    %209 = vmatpush1.msra.mxu0 0.0
    %210 = vmatprep.subr.mxu0 0.0
    %211 = vmatpush1.msra.mxu0 0.0
    %212 = vmatprep.subr.mxu0 0.0
    %213 = vmatpush1.msra.mxu0 0.0
    %214 = vmatprep.subr.mxu0 0.0
    %215 = vmatpush1.msra.mxu0 0.0
    %216 = vmatprep.subr.mxu0 0.0
    %217 = vmatpush1.msra.mxu0 0.0
    %218 = vmatprep.subr.mxu0 0.0
    %219 = vmatpush1.msra.mxu0 0.0
    %220 = vmatprep.subr.mxu0 0.0
    %221 = vmatpush1.msra.mxu0 0.0
    %222 = vmatprep.subr.mxu0 0.0
    %223 = vmatpush1.msra.mxu0 0.0
    %224 = vmatprep.subr.mxu0 0.0
    %225 = vmatpush1.msra.mxu0 0.0
    %226 = vmatprep.subr.mxu0 0.0
    %227 = vmatpush1.msra.mxu0 0.0
    %228 = vmatprep.subr.mxu0 0.0
    %229 = vmatpush1.msra.mxu0 0.0
    %230 = vmatprep.subr.mxu0 0.0
    %231 = vmatpush1.msra.mxu0 0.0
    %232 = vmatprep.subr.mxu0 0.0
    %233 = vmatpush1.msra.mxu0 0.0
    %234 = vmatprep.subr.mxu0 0.0
    %235 = vmatpush1.msra.mxu0 0.0
    %236 = vmatprep.subr.mxu0 0.0
    %237 = vmatpush1.msra.mxu0 0.0
    %238 = vmatprep.subr.mxu0 0.0
    %239 = vmatpush1.msra.mxu0 0.0
    %240 = vmatprep.subr.mxu0 0.0
    %241 = vmatpush1.msra.mxu0 0.0
    %242 = vmatprep.subr.mxu0 0.0
    %243 = vmatpush1.msra.mxu0 0.0
    %244 = vmatprep.subr.mxu0 0.0
    %245 = vmatpush1.msra.mxu0 0.0
    %246 = vmatprep.subr.mxu0 0.0
    %247 = vmatpush1.msra.mxu0 0.0
    %248 = vmatprep.subr.mxu0 0.0
    %249 = vmatpush1.msra.mxu0 0.0
    %250 = vmatprep.subr.mxu0 0.0
    %251 = vmatpush1.msra.mxu0 0.0
    %252 = vmatprep.mubr.f32.mxu0 0.0
    %v253 = vand.u32 %v60, 4294901760
    %254 = vmatmul.mubr.f32.gmra.mrb[0].mxu0 %v253
    %v255 = vpop.f32.mrb[0].mxu0
    %v256 = vadd.f32 %v145, %v255
    %v257 = vpop.f32.mrb[0].mxu0
    %258 = vmatprep.mubr.f32.mxu0 0.0
    %v259 = vand.u32 %v63, 4294901760
    %260 = vmatmul.mubr.f32.gmra.mrb[0].mxu0 %v259
    %v261 = vpop.f32.mrb[0].mxu0
    %v262 = vadd.f32 %v155, %v261
    %v263 = vpop.f32.mrb[0].mxu0
    %264 = vmatprep.mubr.f32.mxu0 0.0
    %v265 = vand.u32 %v66, 4294901760
    %266 = vmatmul.mubr.f32.gmra.mrb[0].mxu0 %v265
    %v267 = vpop.f32.mrb[0].mxu0
    %v268 = vadd.f32 %v165, %v267
    %v269 = vpop.f32.mrb[0].mxu0
    %270 = vmatprep.mubr.f32.mxu0 0.0
    %v271 = vand.u32 %v69, 4294901760
    %272 = vmatmul.mubr.f32.gmra.mrb[0].mxu0 %v271
    %v273 = vpop.f32.mrb[0].mxu0
    %v274 = vadd.f32 %v175, %v273
    %v275 = vpop.f32.mrb[0].mxu0
    %276 = vdwg.mxu0
    %277 = vmatprep.subr.mxu0 0.0
    %v278 = vand.u32 %v56, 4294901760
    %v279 = vsub.f32 %v56, %v278
    %280 = vmatpush1.msra.mxu0 %v279
    %281 = vmatprep.subr.mxu0 0.0
    %v282 = vand.u32 %v57, 4294901760
    %v283 = vsub.f32 %v57, %v282
    %284 = vmatpush1.msra.mxu0 %v283
    %285 = vmatprep.subr.mxu0 0.0
    %286 = vmatpush1.msra.mxu0 0.0
    %287 = vmatprep.subr.mxu0 0.0
    %288 = vmatpush1.msra.mxu0 0.0
    %289 = vmatprep.subr.mxu0 0.0
    %290 = vmatpush1.msra.mxu0 0.0
    %291 = vmatprep.subr.mxu0 0.0
    %292 = vmatpush1.msra.mxu0 0.0
    %293 = vmatprep.subr.mxu0 0.0
    %294 = vmatpush1.msra.mxu0 0.0
    %295 = vmatprep.subr.mxu0 0.0
    %296 = vmatpush1.msra.mxu0 0.0
    %297 = vmatprep.subr.mxu0 0.0
    %298 = vmatpush1.msra.mxu0 0.0
    %299 = vmatprep.subr.mxu0 0.0
    %300 = vmatpush1.msra.mxu0 0.0
    %301 = vmatprep.subr.mxu0 0.0
    %302 = vmatpush1.msra.mxu0 0.0
    %303 = vmatprep.subr.mxu0 0.0
    %304 = vmatpush1.msra.mxu0 0.0
    %305 = vmatprep.subr.mxu0 0.0
    %306 = vmatpush1.msra.mxu0 0.0
    %307 = vmatprep.subr.mxu0 0.0
    %308 = vmatpush1.msra.mxu0 0.0
    %309 = vmatprep.subr.mxu0 0.0
    %310 = vmatpush1.msra.mxu0 0.0
    %311 = vmatprep.subr.mxu0 0.0
    %312 = vmatpush1.msra.mxu0 0.0
    %313 = vmatprep.subr.mxu0 0.0
    %314 = vmatpush1.msra.mxu0 0.0
    %315 = vmatprep.subr.mxu0 0.0
    %316 = vmatpush1.msra.mxu0 0.0
    %317 = vmatprep.subr.mxu0 0.0
    %318 = vmatpush1.msra.mxu0 0.0
    %319 = vmatprep.subr.mxu0 0.0
    %320 = vmatpush1.msra.mxu0 0.0
    %321 = vmatprep.subr.mxu0 0.0
    %322 = vmatpush1.msra.mxu0 0.0
    %323 = vmatprep.subr.mxu0 0.0
    %324 = vmatpush1.msra.mxu0 0.0
    %325 = vmatprep.subr.mxu0 0.0
    %326 = vmatpush1.msra.mxu0 0.0
    %327 = vmatprep.subr.mxu0 0.0
    %328 = vmatpush1.msra.mxu0 0.0
    %329 = vmatprep.subr.mxu0 0.0
    %330 = vmatpush1.msra.mxu0 0.0
    %331 = vmatprep.subr.mxu0 0.0
    %332 = vmatpush1.msra.mxu0 0.0
    %333 = vmatprep.subr.mxu0 0.0
    %334 = vmatpush1.msra.mxu0 0.0
    %335 = vmatprep.subr.mxu0 0.0
    %336 = vmatpush1.msra.mxu0 0.0
    %337 = vmatprep.subr.mxu0 0.0
    %338 = vmatpush1.msra.mxu0 0.0
    %339 = vmatprep.subr.mxu0 0.0
    %340 = vmatpush1.msra.mxu0 0.0
    %341 = vmatprep.subr.mxu0 0.0
    %342 = vmatpush1.msra.mxu0 0.0
    %343 = vmatprep.subr.mxu0 0.0
    %344 = vmatpush1.msra.mxu0 0.0
    %345 = vmatprep.mubr.f32.mxu0 0.0
    %v346 = vand.u32 %v60, 4294901760
    %v347 = vsub.f32 %v60, %v346
    %348 = vmatmul.mubr.f32.gmra.mrb[0].mxu0 %v347
    %v349 = vpop.f32.mrb[0].mxu0
    %v350 = vadd.f32 %v256, %v349
    %v351 = vpop.f32.mrb[0].mxu0
    %352 = vmatprep.mubr.f32.mxu0 0.0
    %v353 = vand.u32 %v63, 4294901760
    %v354 = vsub.f32 %v63, %v353
    %355 = vmatmul.mubr.f32.gmra.mrb[0].mxu0 %v354
    %v356 = vpop.f32.mrb[0].mxu0
    %v357 = vadd.f32 %v262, %v356
    %v358 = vpop.f32.mrb[0].mxu0
    %359 = vmatprep.mubr.f32.mxu0 0.0
    %v360 = vand.u32 %v66, 4294901760
    %v361 = vsub.f32 %v66, %v360
    %362 = vmatmul.mubr.f32.gmra.mrb[0].mxu0 %v361
    %v363 = vpop.f32.mrb[0].mxu0
    %v364 = vadd.f32 %v268, %v363
    %v365 = vpop.f32.mrb[0].mxu0
    %366 = vmatprep.mubr.f32.mxu0 0.0
    %v367 = vand.u32 %v69, 4294901760
    %v368 = vsub.f32 %v69, %v367
    %369 = vmatmul.mubr.f32.gmra.mrb[0].mxu0 %v368
    %v370 = vpop.f32.mrb[0].mxu0
    %v371 = vadd.f32 %v274, %v370
    %v372 = vpop.f32.mrb[0].mxu0
    %373 = vdwg.mxu0
    %374 = vmatprep.subr.mxu0 0.0
    %v375 = vand.u32 %v56, 4294901760
    %376 = vmatpush1.msra.mxu0 %v375
    %377 = vmatprep.subr.mxu0 0.0
    %v378 = vand.u32 %v57, 4294901760
    %379 = vmatpush1.msra.mxu0 %v378
    %380 = vmatprep.subr.mxu0 0.0
    %381 = vmatpush1.msra.mxu0 0.0
    %382 = vmatprep.subr.mxu0 0.0
    %383 = vmatpush1.msra.mxu0 0.0
    %384 = vmatprep.subr.mxu0 0.0
    %385 = vmatpush1.msra.mxu0 0.0
    %386 = vmatprep.subr.mxu0 0.0
    %387 = vmatpush1.msra.mxu0 0.0
    %388 = vmatprep.subr.mxu0 0.0
    %389 = vmatpush1.msra.mxu0 0.0
    %390 = vmatprep.subr.mxu0 0.0
    %391 = vmatpush1.msra.mxu0 0.0
    %392 = vmatprep.subr.mxu0 0.0
    %393 = vmatpush1.msra.mxu0 0.0
    %394 = vmatprep.subr.mxu0 0.0
    %395 = vmatpush1.msra.mxu0 0.0
    %396 = vmatprep.subr.mxu0 0.0
    %397 = vmatpush1.msra.mxu0 0.0
    %398 = vmatprep.subr.mxu0 0.0
    %399 = vmatpush1.msra.mxu0 0.0
    %400 = vmatprep.subr.mxu0 0.0
    %401 = vmatpush1.msra.mxu0 0.0
    %402 = vmatprep.subr.mxu0 0.0
    %403 = vmatpush1.msra.mxu0 0.0
    %404 = vmatprep.subr.mxu0 0.0
    %405 = vmatpush1.msra.mxu0 0.0
    %406 = vmatprep.subr.mxu0 0.0
    %407 = vmatpush1.msra.mxu0 0.0
    %408 = vmatprep.subr.mxu0 0.0
    %409 = vmatpush1.msra.mxu0 0.0
    %410 = vmatprep.subr.mxu0 0.0
    %411 = vmatpush1.msra.mxu0 0.0
    %412 = vmatprep.subr.mxu0 0.0
    %413 = vmatpush1.msra.mxu0 0.0
    %414 = vmatprep.subr.mxu0 0.0
    %415 = vmatpush1.msra.mxu0 0.0
    %416 = vmatprep.subr.mxu0 0.0
    %417 = vmatpush1.msra.mxu0 0.0
    %418 = vmatprep.subr.mxu0 0.0
    %419 = vmatpush1.msra.mxu0 0.0
    %420 = vmatprep.subr.mxu0 0.0
    %421 = vmatpush1.msra.mxu0 0.0
    %422 = vmatprep.subr.mxu0 0.0
    %423 = vmatpush1.msra.mxu0 0.0
    %424 = vmatprep.subr.mxu0 0.0
    %425 = vmatpush1.msra.mxu0 0.0
    %426 = vmatprep.subr.mxu0 0.0
    %427 = vmatpush1.msra.mxu0 0.0
    %428 = vmatprep.subr.mxu0 0.0
    %429 = vmatpush1.msra.mxu0 0.0
    %430 = vmatprep.subr.mxu0 0.0
    %431 = vmatpush1.msra.mxu0 0.0
    %432 = vmatprep.subr.mxu0 0.0
    %433 = vmatpush1.msra.mxu0 0.0
    %434 = vmatprep.subr.mxu0 0.0
    %435 = vmatpush1.msra.mxu0 0.0
    %436 = vmatprep.subr.mxu0 0.0
    %437 = vmatpush1.msra.mxu0 0.0
    %438 = vmatprep.subr.mxu0 0.0
    %439 = vmatpush1.msra.mxu0 0.0
    %440 = vmatprep.mubr.f32.mxu0 0.0
    %v441 = vand.u32 %v60, 4294901760
    %v442 = vsub.f32 %v60, %v441
    %v443 = vand.u32 %v442, 4294901760
    %444 = vmatmul.mubr.f32.gmra.mrb[0].mxu0 %v443
    %v445 = vpop.f32.mrb[0].mxu0
    %v446 = vadd.f32 %v350, %v445
    %v447 = vpop.f32.mrb[0].mxu0
    %448 = vmatprep.mubr.f32.mxu0 0.0
    %v449 = vand.u32 %v63, 4294901760
    %v450 = vsub.f32 %v63, %v449
    %v451 = vand.u32 %v450, 4294901760
    %452 = vmatmul.mubr.f32.gmra.mrb[0].mxu0 %v451
    %v453 = vpop.f32.mrb[0].mxu0
    %v454 = vadd.f32 %v357, %v453
    %v455 = vpop.f32.mrb[0].mxu0
    %456 = vmatprep.mubr.f32.mxu0 0.0
    %v457 = vand.u32 %v66, 4294901760
    %v458 = vsub.f32 %v66, %v457
    %v459 = vand.u32 %v458, 4294901760
    %460 = vmatmul.mubr.f32.gmra.mrb[0].mxu0 %v459
    %v461 = vpop.f32.mrb[0].mxu0
    %v462 = vadd.f32 %v364, %v461
    %v463 = vpop.f32.mrb[0].mxu0
    %464 = vmatprep.mubr.f32.mxu0 0.0
    %v465 = vand.u32 %v69, 4294901760
    %v466 = vsub.f32 %v69, %v465
    %v467 = vand.u32 %v466, 4294901760
    %468 = vmatmul.mubr.f32.gmra.mrb[0].mxu0 %v467
    %v469 = vpop.f32.mrb[0].mxu0
    %v470 = vadd.f32 %v371, %v469
    %v471 = vpop.f32.mrb[0].mxu0
    %472 = vdwg.mxu0
    %473 = vmatprep.subr.mxu0 0.0
    %v474 = vand.u32 %v56, 4294901760
    %v475 = vsub.f32 %v56, %v474
    %v476 = vand.u32 %v475, 4294901760
    %477 = vmatpush1.msra.mxu0 %v476
    %478 = vmatprep.subr.mxu0 0.0
    %v479 = vand.u32 %v57, 4294901760
    %v480 = vsub.f32 %v57, %v479
    %v481 = vand.u32 %v480, 4294901760
    %482 = vmatpush1.msra.mxu0 %v481
    %483 = vmatprep.subr.mxu0 0.0
    %484 = vmatpush1.msra.mxu0 0.0
    %485 = vmatprep.subr.mxu0 0.0
    %486 = vmatpush1.msra.mxu0 0.0
    %487 = vmatprep.subr.mxu0 0.0
    %488 = vmatpush1.msra.mxu0 0.0
    %489 = vmatprep.subr.mxu0 0.0
    %490 = vmatpush1.msra.mxu0 0.0
    %491 = vmatprep.subr.mxu0 0.0
    %492 = vmatpush1.msra.mxu0 0.0
    %493 = vmatprep.subr.mxu0 0.0
    %494 = vmatpush1.msra.mxu0 0.0
    %495 = vmatprep.subr.mxu0 0.0
    %496 = vmatpush1.msra.mxu0 0.0
    %497 = vmatprep.subr.mxu0 0.0
    %498 = vmatpush1.msra.mxu0 0.0
    %499 = vmatprep.subr.mxu0 0.0
    %500 = vmatpush1.msra.mxu0 0.0
    %501 = vmatprep.subr.mxu0 0.0
    %502 = vmatpush1.msra.mxu0 0.0
    %503 = vmatprep.subr.mxu0 0.0
    %504 = vmatpush1.msra.mxu0 0.0
    %505 = vmatprep.subr.mxu0 0.0
    %506 = vmatpush1.msra.mxu0 0.0
    %507 = vmatprep.subr.mxu0 0.0
    %508 = vmatpush1.msra.mxu0 0.0
    %509 = vmatprep.subr.mxu0 0.0
    %510 = vmatpush1.msra.mxu0 0.0
    %511 = vmatprep.subr.mxu0 0.0
    %512 = vmatpush1.msra.mxu0 0.0
    %513 = vmatprep.subr.mxu0 0.0
    %514 = vmatpush1.msra.mxu0 0.0
    %515 = vmatprep.subr.mxu0 0.0
    %516 = vmatpush1.msra.mxu0 0.0
    %517 = vmatprep.subr.mxu0 0.0
    %518 = vmatpush1.msra.mxu0 0.0
    %519 = vmatprep.subr.mxu0 0.0
    %520 = vmatpush1.msra.mxu0 0.0
    %521 = vmatprep.subr.mxu0 0.0
    %522 = vmatpush1.msra.mxu0 0.0
    %523 = vmatprep.subr.mxu0 0.0
    %524 = vmatpush1.msra.mxu0 0.0
    %525 = vmatprep.subr.mxu0 0.0
    %526 = vmatpush1.msra.mxu0 0.0
    %527 = vmatprep.subr.mxu0 0.0
    %528 = vmatpush1.msra.mxu0 0.0
    %529 = vmatprep.subr.mxu0 0.0
    %530 = vmatpush1.msra.mxu0 0.0
    %531 = vmatprep.subr.mxu0 0.0
    %532 = vmatpush1.msra.mxu0 0.0
    %533 = vmatprep.subr.mxu0 0.0
    %534 = vmatpush1.msra.mxu0 0.0
    %535 = vmatprep.subr.mxu0 0.0
    %536 = vmatpush1.msra.mxu0 0.0
    %537 = vmatprep.subr.mxu0 0.0
    %538 = vmatpush1.msra.mxu0 0.0
    %539 = vmatprep.subr.mxu0 0.0
    %540 = vmatpush1.msra.mxu0 0.0
    %541 = vmatprep.subr.mxu0 0.0
    %542 = vmatpush1.msra.mxu0 0.0
    %543 = vmatprep.mubr.f32.mxu0 0.0
    %v544 = vand.u32 %v60, 4294901760
    %545 = vmatmul.mubr.f32.gmra.mrb[0].mxu0 %v544
    %v546 = vpop.f32.mrb[0].mxu0
    %v547 = vadd.f32 %v446, %v546
    %v548 = vpop.f32.mrb[0].mxu0
    %549 = vmatprep.mubr.f32.mxu0 0.0
    %v550 = vand.u32 %v63, 4294901760
    %551 = vmatmul.mubr.f32.gmra.mrb[0].mxu0 %v550
    %v552 = vpop.f32.mrb[0].mxu0
    %v553 = vadd.f32 %v454, %v552
    %v554 = vpop.f32.mrb[0].mxu0
    %555 = vmatprep.mubr.f32.mxu0 0.0
    %v556 = vand.u32 %v66, 4294901760
    %557 = vmatmul.mubr.f32.gmra.mrb[0].mxu0 %v556
    %v558 = vpop.f32.mrb[0].mxu0
    %v559 = vadd.f32 %v462, %v558
    %v560 = vpop.f32.mrb[0].mxu0
    %561 = vmatprep.mubr.f32.mxu0 0.0
    %v562 = vand.u32 %v69, 4294901760
    %563 = vmatmul.mubr.f32.gmra.mrb[0].mxu0 %v562
    %v564 = vpop.f32.mrb[0].mxu0
    %v565 = vadd.f32 %v470, %v564
    %v566 = vpop.f32.mrb[0].mxu0
    %567 = vdwg.mxu0
    %568 = vmatprep.subr.mxu0 0.0
    %v569 = vand.u32 %v56, 4294901760
    %570 = vmatpush1.msra.mxu0 %v569
    %571 = vmatprep.subr.mxu0 0.0
    %v572 = vand.u32 %v57, 4294901760
    %573 = vmatpush1.msra.mxu0 %v572
    %574 = vmatprep.subr.mxu0 0.0
    %575 = vmatpush1.msra.mxu0 0.0
    %576 = vmatprep.subr.mxu0 0.0
    %577 = vmatpush1.msra.mxu0 0.0
    %578 = vmatprep.subr.mxu0 0.0
    %579 = vmatpush1.msra.mxu0 0.0
    %580 = vmatprep.subr.mxu0 0.0
    %581 = vmatpush1.msra.mxu0 0.0
    %582 = vmatprep.subr.mxu0 0.0
    %583 = vmatpush1.msra.mxu0 0.0
    %584 = vmatprep.subr.mxu0 0.0
    %585 = vmatpush1.msra.mxu0 0.0
    %586 = vmatprep.subr.mxu0 0.0
    %587 = vmatpush1.msra.mxu0 0.0
    %588 = vmatprep.subr.mxu0 0.0
    %589 = vmatpush1.msra.mxu0 0.0
    %590 = vmatprep.subr.mxu0 0.0
    %591 = vmatpush1.msra.mxu0 0.0
    %592 = vmatprep.subr.mxu0 0.0
    %593 = vmatpush1.msra.mxu0 0.0
    %594 = vmatprep.subr.mxu0 0.0
    %595 = vmatpush1.msra.mxu0 0.0
    %596 = vmatprep.subr.mxu0 0.0
    %597 = vmatpush1.msra.mxu0 0.0
    %598 = vmatprep.subr.mxu0 0.0
    %599 = vmatpush1.msra.mxu0 0.0
    %600 = vmatprep.subr.mxu0 0.0
    %601 = vmatpush1.msra.mxu0 0.0
    %602 = vmatprep.subr.mxu0 0.0
    %603 = vmatpush1.msra.mxu0 0.0
    %604 = vmatprep.subr.mxu0 0.0
    %605 = vmatpush1.msra.mxu0 0.0
    %606 = vmatprep.subr.mxu0 0.0
    %607 = vmatpush1.msra.mxu0 0.0
    %608 = vmatprep.subr.mxu0 0.0
    %609 = vmatpush1.msra.mxu0 0.0
    %610 = vmatprep.subr.mxu0 0.0
    %611 = vmatpush1.msra.mxu0 0.0
    %612 = vmatprep.subr.mxu0 0.0
    %613 = vmatpush1.msra.mxu0 0.0
    %614 = vmatprep.subr.mxu0 0.0
    %615 = vmatpush1.msra.mxu0 0.0
    %616 = vmatprep.subr.mxu0 0.0
    %617 = vmatpush1.msra.mxu0 0.0
    %618 = vmatprep.subr.mxu0 0.0
    %619 = vmatpush1.msra.mxu0 0.0
    %620 = vmatprep.subr.mxu0 0.0
    %621 = vmatpush1.msra.mxu0 0.0
    %622 = vmatprep.subr.mxu0 0.0
    %623 = vmatpush1.msra.mxu0 0.0
    %624 = vmatprep.subr.mxu0 0.0
    %625 = vmatpush1.msra.mxu0 0.0
    %626 = vmatprep.subr.mxu0 0.0
    %627 = vmatpush1.msra.mxu0 0.0
    %628 = vmatprep.subr.mxu0 0.0
    %629 = vmatpush1.msra.mxu0 0.0
    %630 = vmatprep.subr.mxu0 0.0
    %631 = vmatpush1.msra.mxu0 0.0
    %632 = vmatprep.subr.mxu0 0.0
    %633 = vmatpush1.msra.mxu0 0.0
    %634 = vmatprep.mubr.f32.mxu0 0.0
    %v635 = vand.u32 %v60, 4294901760
    %636 = vmatmul.mubr.f32.gmra.mrb[0].mxu0 %v635
    %v637 = vpop.f32.mrb[0].mxu0
    %v638 = vadd.f32 %v547, %v637
    %v639 = vpop.f32.mrb[0].mxu0
    %640 = vmatprep.mubr.f32.mxu0 0.0
    %v641 = vand.u32 %v63, 4294901760
    %642 = vmatmul.mubr.f32.gmra.mrb[0].mxu0 %v641
    %v643 = vpop.f32.mrb[0].mxu0
    %v644 = vadd.f32 %v553, %v643
    %v645 = vpop.f32.mrb[0].mxu0
    %646 = vmatprep.mubr.f32.mxu0 0.0
    %v647 = vand.u32 %v66, 4294901760
    %648 = vmatmul.mubr.f32.gmra.mrb[0].mxu0 %v647
    %v649 = vpop.f32.mrb[0].mxu0
    %v650 = vadd.f32 %v559, %v649
    %v651 = vpop.f32.mrb[0].mxu0
    %652 = vmatprep.mubr.f32.mxu0 0.0
    %v653 = vand.u32 %v69, 4294901760
    %654 = vmatmul.mubr.f32.gmra.mrb[0].mxu0 %v653
    %v655 = vpop.f32.mrb[0].mxu0
    %v656 = vadd.f32 %v565, %v655
    %v657 = vpop.f32.mrb[0].mxu0
    %658 = vdwg.mxu0
    %659 = vset.pattern.permute.xlu0 1
    %660 = vperm.xlu0 %659, %v26
    %v661 = vpop.permute.xlu0 %660
    %662 = vset.pattern.permute.xlu0 1
    %663 = vperm.xlu0 %662, %v27
    %v664 = vpop.permute.xlu0 %663
    %665 = vset.pattern.permute.xlu0 1
    %666 = vperm.xlu0 %665, %v28
    %v667 = vpop.permute.xlu0 %666
    %668 = vset.pattern.permute.xlu0 1
    %669 = vperm.xlu0 %668, %v29
    %v670 = vpop.permute.xlu0 %669
    %vm671 = vcmp.eq.s32.totalorder %v661, %v31
    %vm672 = vcmp.eq.s32.totalorder %v664, %v31
    %vm673 = vcmp.eq.s32.totalorder %v667, %v31
    %vm674 = vcmp.eq.s32.totalorder %v670, %v31
    %v675 = vsel %vm671, 1, 0
    %v676 = vsel %vm672, 1, 0
    %v677 = vsel %vm673, 1, 0
    %v678 = vsel %vm674, 1, 0
    %v679 = vcvt.s32.f32 %v675
    %v680 = vcvt.s32.f32 %v676
    %v681 = vcvt.s32.f32 %v677
    %v682 = vcvt.s32.f32 %v678
    %s683 = scalar_lea.vmem [#allocation2], 16
    %v684 = vld [vmem:[%s683] sm:$0xff]
    %v685 = vld [vmem:[%s683 + $0x8] sm:$0xff]
    %v687 = vsel %vm58, %v679, 0
    %v690 = vsel %vm58, %v680, 0
    %v693 = vsel %vm58, %v681, 0
    %v696 = vsel %vm58, %v682, 0
    %698 = vmatprep.subr.mxu0 0.0
    %v699 = vand.u32 %v684, 4294901760
    %700 = vmatpush1.msra.mxu0 %v699
    %701 = vmatprep.subr.mxu0 0.0
    %v702 = vand.u32 %v685, 4294901760
    %703 = vmatpush1.msra.mxu0 %v702
    %704 = vmatprep.subr.mxu0 0.0
    %705 = vmatpush1.msra.mxu0 0.0
    %706 = vmatprep.subr.mxu0 0.0
    %707 = vmatpush1.msra.mxu0 0.0
    %708 = vmatprep.subr.mxu0 0.0
    %709 = vmatpush1.msra.mxu0 0.0
    %710 = vmatprep.subr.mxu0 0.0
    %711 = vmatpush1.msra.mxu0 0.0
    %712 = vmatprep.subr.mxu0 0.0
    %713 = vmatpush1.msra.mxu0 0.0
    %714 = vmatprep.subr.mxu0 0.0
    %715 = vmatpush1.msra.mxu0 0.0
    %716 = vmatprep.subr.mxu0 0.0
    %717 = vmatpush1.msra.mxu0 0.0
    %718 = vmatprep.subr.mxu0 0.0
    %719 = vmatpush1.msra.mxu0 0.0
    %720 = vmatprep.subr.mxu0 0.0
    %721 = vmatpush1.msra.mxu0 0.0
    %722 = vmatprep.subr.mxu0 0.0
    %723 = vmatpush1.msra.mxu0 0.0
    %724 = vmatprep.subr.mxu0 0.0
    %725 = vmatpush1.msra.mxu0 0.0
    %726 = vmatprep.subr.mxu0 0.0
    %727 = vmatpush1.msra.mxu0 0.0
    %728 = vmatprep.subr.mxu0 0.0
    %729 = vmatpush1.msra.mxu0 0.0
    %730 = vmatprep.subr.mxu0 0.0
    %731 = vmatpush1.msra.mxu0 0.0
    %732 = vmatprep.subr.mxu0 0.0
    %733 = vmatpush1.msra.mxu0 0.0
    %734 = vmatprep.subr.mxu0 0.0
    %735 = vmatpush1.msra.mxu0 0.0
    %736 = vmatprep.subr.mxu0 0.0
    %737 = vmatpush1.msra.mxu0 0.0
    %738 = vmatprep.subr.mxu0 0.0
    %739 = vmatpush1.msra.mxu0 0.0
    %740 = vmatprep.subr.mxu0 0.0
    %741 = vmatpush1.msra.mxu0 0.0
    %742 = vmatprep.subr.mxu0 0.0
    %743 = vmatpush1.msra.mxu0 0.0
    %744 = vmatprep.subr.mxu0 0.0
    %745 = vmatpush1.msra.mxu0 0.0
    %746 = vmatprep.subr.mxu0 0.0
    %747 = vmatpush1.msra.mxu0 0.0
    %748 = vmatprep.subr.mxu0 0.0
    %749 = vmatpush1.msra.mxu0 0.0
    %750 = vmatprep.subr.mxu0 0.0
    %751 = vmatpush1.msra.mxu0 0.0
    %752 = vmatprep.subr.mxu0 0.0
    %753 = vmatpush1.msra.mxu0 0.0
    %754 = vmatprep.subr.mxu0 0.0
    %755 = vmatpush1.msra.mxu0 0.0
    %756 = vmatprep.subr.mxu0 0.0
    %757 = vmatpush1.msra.mxu0 0.0
    %758 = vmatprep.subr.mxu0 0.0
    %759 = vmatpush1.msra.mxu0 0.0
    %760 = vmatprep.subr.mxu0 0.0
    %761 = vmatpush1.msra.mxu0 0.0
    %762 = vmatprep.subr.mxu0 0.0
    %763 = vmatpush1.msra.mxu0 0.0
    %764 = vmatprep.mubr.f32.mxu0 0.0
    %v765 = vand.u32 %v687, 4294901760
    %v766 = vsub.f32 %v687, %v765
    %v767 = vand.u32 %v766, 4294901760
    %v768 = vsub.f32 %v766, %v767
    %v769 = vand.u32 %v768, 4294901760
    %770 = vmatmul.mubr.f32.gmra.mrb[0].mxu0 %v769
    %v771 = vpop.f32.mrb[0].mxu0
    %v772 = vadd.f32 0.0, %v771
    %v773 = vpop.f32.mrb[0].mxu0
    %774 = vmatprep.mubr.f32.mxu0 0.0
    %v775 = vand.u32 %v690, 4294901760
    %v776 = vsub.f32 %v690, %v775
    %v777 = vand.u32 %v776, 4294901760
    %v778 = vsub.f32 %v776, %v777
    %v779 = vand.u32 %v778, 4294901760
    %780 = vmatmul.mubr.f32.gmra.mrb[0].mxu0 %v779
    %v781 = vpop.f32.mrb[0].mxu0
    %v782 = vadd.f32 0.0, %v781
    %v783 = vpop.f32.mrb[0].mxu0
    %784 = vmatprep.mubr.f32.mxu0 0.0
    %v785 = vand.u32 %v693, 4294901760
    %v786 = vsub.f32 %v693, %v785
    %v787 = vand.u32 %v786, 4294901760
    %v788 = vsub.f32 %v786, %v787
    %v789 = vand.u32 %v788, 4294901760
    %790 = vmatmul.mubr.f32.gmra.mrb[0].mxu0 %v789
    %v791 = vpop.f32.mrb[0].mxu0
    %v792 = vadd.f32 0.0, %v791
    %v793 = vpop.f32.mrb[0].mxu0
    %794 = vmatprep.mubr.f32.mxu0 0.0
    %v795 = vand.u32 %v696, 4294901760
    %v796 = vsub.f32 %v696, %v795
    %v797 = vand.u32 %v796, 4294901760
    %v798 = vsub.f32 %v796, %v797
    %v799 = vand.u32 %v798, 4294901760
    %800 = vmatmul.mubr.f32.gmra.mrb[0].mxu0 %v799
    %v801 = vpop.f32.mrb[0].mxu0
    %v802 = vadd.f32 0.0, %v801
    %v803 = vpop.f32.mrb[0].mxu0
    %804 = vdwg.mxu0
    %805 = vmatprep.subr.mxu0 0.0
    %v806 = vand.u32 %v684, 4294901760
    %v807 = vsub.f32 %v684, %v806
    %v808 = vand.u32 %v807, 4294901760
    %v809 = vsub.f32 %v807, %v808
    %v810 = vand.u32 %v809, 4294901760
    %811 = vmatpush1.msra.mxu0 %v810
    %812 = vmatprep.subr.mxu0 0.0
    %v813 = vand.u32 %v685, 4294901760
    %v814 = vsub.f32 %v685, %v813
    %v815 = vand.u32 %v814, 4294901760
    %v816 = vsub.f32 %v814, %v815
    %v817 = vand.u32 %v816, 4294901760
    %818 = vmatpush1.msra.mxu0 %v817
    %819 = vmatprep.subr.mxu0 0.0
    %820 = vmatpush1.msra.mxu0 0.0
    %821 = vmatprep.subr.mxu0 0.0
    %822 = vmatpush1.msra.mxu0 0.0
    %823 = vmatprep.subr.mxu0 0.0
    %824 = vmatpush1.msra.mxu0 0.0
    %825 = vmatprep.subr.mxu0 0.0
    %826 = vmatpush1.msra.mxu0 0.0
    %827 = vmatprep.subr.mxu0 0.0
    %828 = vmatpush1.msra.mxu0 0.0
    %829 = vmatprep.subr.mxu0 0.0
    %830 = vmatpush1.msra.mxu0 0.0
    %831 = vmatprep.subr.mxu0 0.0
    %832 = vmatpush1.msra.mxu0 0.0
    %833 = vmatprep.subr.mxu0 0.0
    %834 = vmatpush1.msra.mxu0 0.0
    %835 = vmatprep.subr.mxu0 0.0
    %836 = vmatpush1.msra.mxu0 0.0
    %837 = vmatprep.subr.mxu0 0.0
    %838 = vmatpush1.msra.mxu0 0.0
    %839 = vmatprep.subr.mxu0 0.0
    %840 = vmatpush1.msra.mxu0 0.0
    %841 = vmatprep.subr.mxu0 0.0
    %842 = vmatpush1.msra.mxu0 0.0
    %843 = vmatprep.subr.mxu0 0.0
    %844 = vmatpush1.msra.mxu0 0.0
    %845 = vmatprep.subr.mxu0 0.0
    %846 = vmatpush1.msra.mxu0 0.0
    %847 = vmatprep.subr.mxu0 0.0
    %848 = vmatpush1.msra.mxu0 0.0
    %849 = vmatprep.subr.mxu0 0.0
    %850 = vmatpush1.msra.mxu0 0.0
    %851 = vmatprep.subr.mxu0 0.0
    %852 = vmatpush1.msra.mxu0 0.0
    %853 = vmatprep.subr.mxu0 0.0
    %854 = vmatpush1.msra.mxu0 0.0
    %855 = vmatprep.subr.mxu0 0.0
    %856 = vmatpush1.msra.mxu0 0.0
    %857 = vmatprep.subr.mxu0 0.0
    %858 = vmatpush1.msra.mxu0 0.0
    %859 = vmatprep.subr.mxu0 0.0
    %860 = vmatpush1.msra.mxu0 0.0
    %861 = vmatprep.subr.mxu0 0.0
    %862 = vmatpush1.msra.mxu0 0.0
    %863 = vmatprep.subr.mxu0 0.0
    %864 = vmatpush1.msra.mxu0 0.0
    %865 = vmatprep.subr.mxu0 0.0
    %866 = vmatpush1.msra.mxu0 0.0
    %867 = vmatprep.subr.mxu0 0.0
    %868 = vmatpush1.msra.mxu0 0.0
    %869 = vmatprep.subr.mxu0 0.0
    %870 = vmatpush1.msra.mxu0 0.0
    %871 = vmatprep.subr.mxu0 0.0
    %872 = vmatpush1.msra.mxu0 0.0
    %873 = vmatprep.subr.mxu0 0.0
    %874 = vmatpush1.msra.mxu0 0.0
    %875 = vmatprep.subr.mxu0 0.0
    %876 = vmatpush1.msra.mxu0 0.0
    %877 = vmatprep.subr.mxu0 0.0
    %878 = vmatpush1.msra.mxu0 0.0
    %879 = vmatprep.mubr.f32.mxu0 0.0
    %v880 = vand.u32 %v687, 4294901760
    %881 = vmatmul.mubr.f32.gmra.mrb[0].mxu0 %v880
    %v882 = vpop.f32.mrb[0].mxu0
    %v883 = vadd.f32 %v772, %v882
    %v884 = vpop.f32.mrb[0].mxu0
    %885 = vmatprep.mubr.f32.mxu0 0.0
    %v886 = vand.u32 %v690, 4294901760
    %887 = vmatmul.mubr.f32.gmra.mrb[0].mxu0 %v886
    %v888 = vpop.f32.mrb[0].mxu0
    %v889 = vadd.f32 %v782, %v888
    %v890 = vpop.f32.mrb[0].mxu0
    %891 = vmatprep.mubr.f32.mxu0 0.0
    %v892 = vand.u32 %v693, 4294901760
    %893 = vmatmul.mubr.f32.gmra.mrb[0].mxu0 %v892
    %v894 = vpop.f32.mrb[0].mxu0
    %v895 = vadd.f32 %v792, %v894
    %v896 = vpop.f32.mrb[0].mxu0
    %897 = vmatprep.mubr.f32.mxu0 0.0
    %v898 = vand.u32 %v696, 4294901760
    %899 = vmatmul.mubr.f32.gmra.mrb[0].mxu0 %v898
    %v900 = vpop.f32.mrb[0].mxu0
    %v901 = vadd.f32 %v802, %v900
    %v902 = vpop.f32.mrb[0].mxu0
    %903 = vdwg.mxu0
    %904 = vmatprep.subr.mxu0 0.0
    %v905 = vand.u32 %v684, 4294901760
    %v906 = vsub.f32 %v684, %v905
    %907 = vmatpush1.msra.mxu0 %v906
    %908 = vmatprep.subr.mxu0 0.0
    %v909 = vand.u32 %v685, 4294901760
    %v910 = vsub.f32 %v685, %v909
    %911 = vmatpush1.msra.mxu0 %v910
    %912 = vmatprep.subr.mxu0 0.0
    %913 = vmatpush1.msra.mxu0 0.0
    %914 = vmatprep.subr.mxu0 0.0
    %915 = vmatpush1.msra.mxu0 0.0
    %916 = vmatprep.subr.mxu0 0.0
    %917 = vmatpush1.msra.mxu0 0.0
    %918 = vmatprep.subr.mxu0 0.0
    %919 = vmatpush1.msra.mxu0 0.0
    %920 = vmatprep.subr.mxu0 0.0
    %921 = vmatpush1.msra.mxu0 0.0
    %922 = vmatprep.subr.mxu0 0.0
    %923 = vmatpush1.msra.mxu0 0.0
    %924 = vmatprep.subr.mxu0 0.0
    %925 = vmatpush1.msra.mxu0 0.0
    %926 = vmatprep.subr.mxu0 0.0
    %927 = vmatpush1.msra.mxu0 0.0
    %928 = vmatprep.subr.mxu0 0.0
    %929 = vmatpush1.msra.mxu0 0.0
    %930 = vmatprep.subr.mxu0 0.0
    %931 = vmatpush1.msra.mxu0 0.0
    %932 = vmatprep.subr.mxu0 0.0
    %933 = vmatpush1.msra.mxu0 0.0
    %934 = vmatprep.subr.mxu0 0.0
    %935 = vmatpush1.msra.mxu0 0.0
    %936 = vmatprep.subr.mxu0 0.0
    %937 = vmatpush1.msra.mxu0 0.0
    %938 = vmatprep.subr.mxu0 0.0
    %939 = vmatpush1.msra.mxu0 0.0
    %940 = vmatprep.subr.mxu0 0.0
    %941 = vmatpush1.msra.mxu0 0.0
    %942 = vmatprep.subr.mxu0 0.0
    %943 = vmatpush1.msra.mxu0 0.0
    %944 = vmatprep.subr.mxu0 0.0
    %945 = vmatpush1.msra.mxu0 0.0
    %946 = vmatprep.subr.mxu0 0.0
    %947 = vmatpush1.msra.mxu0 0.0
    %948 = vmatprep.subr.mxu0 0.0
    %949 = vmatpush1.msra.mxu0 0.0
    %950 = vmatprep.subr.mxu0 0.0
    %951 = vmatpush1.msra.mxu0 0.0
    %952 = vmatprep.subr.mxu0 0.0
    %953 = vmatpush1.msra.mxu0 0.0
    %954 = vmatprep.subr.mxu0 0.0
    %955 = vmatpush1.msra.mxu0 0.0
    %956 = vmatprep.subr.mxu0 0.0
    %957 = vmatpush1.msra.mxu0 0.0
    %958 = vmatprep.subr.mxu0 0.0
    %959 = vmatpush1.msra.mxu0 0.0
    %960 = vmatprep.subr.mxu0 0.0
    %961 = vmatpush1.msra.mxu0 0.0
    %962 = vmatprep.subr.mxu0 0.0
    %963 = vmatpush1.msra.mxu0 0.0
    %964 = vmatprep.subr.mxu0 0.0
    %965 = vmatpush1.msra.mxu0 0.0
    %966 = vmatprep.subr.mxu0 0.0
    %967 = vmatpush1.msra.mxu0 0.0
    %968 = vmatprep.subr.mxu0 0.0
    %969 = vmatpush1.msra.mxu0 0.0
    %970 = vmatprep.subr.mxu0 0.0
    %971 = vmatpush1.msra.mxu0 0.0
    %972 = vmatprep.mubr.f32.mxu0 0.0
    %v973 = vand.u32 %v687, 4294901760
    %v974 = vsub.f32 %v687, %v973
    %975 = vmatmul.mubr.f32.gmra.mrb[0].mxu0 %v974
    %v976 = vpop.f32.mrb[0].mxu0
    %v977 = vadd.f32 %v883, %v976
    %v978 = vpop.f32.mrb[0].mxu0
    %979 = vmatprep.mubr.f32.mxu0 0.0
    %v980 = vand.u32 %v690, 4294901760
    %v981 = vsub.f32 %v690, %v980
    %982 = vmatmul.mubr.f32.gmra.mrb[0].mxu0 %v981
    %v983 = vpop.f32.mrb[0].mxu0
    %v984 = vadd.f32 %v889, %v983
    %v985 = vpop.f32.mrb[0].mxu0
    %986 = vmatprep.mubr.f32.mxu0 0.0
    %v987 = vand.u32 %v693, 4294901760
    %v988 = vsub.f32 %v693, %v987
    %989 = vmatmul.mubr.f32.gmra.mrb[0].mxu0 %v988
    %v990 = vpop.f32.mrb[0].mxu0
    %v991 = vadd.f32 %v895, %v990
    %v992 = vpop.f32.mrb[0].mxu0
    %993 = vmatprep.mubr.f32.mxu0 0.0
    %v994 = vand.u32 %v696, 4294901760
    %v995 = vsub.f32 %v696, %v994
    %996 = vmatmul.mubr.f32.gmra.mrb[0].mxu0 %v995
    %v997 = vpop.f32.mrb[0].mxu0
    %v998 = vadd.f32 %v901, %v997
    %v999 = vpop.f32.mrb[0].mxu0
    %1000 = vdwg.mxu0
    %1001 = vmatprep.subr.mxu0 0.0
    %v1002 = vand.u32 %v684, 4294901760
    %1003 = vmatpush1.msra.mxu0 %v1002
    %1004 = vmatprep.subr.mxu0 0.0
    %v1005 = vand.u32 %v685, 4294901760
    %1006 = vmatpush1.msra.mxu0 %v1005
    %1007 = vmatprep.subr.mxu0 0.0
    %1008 = vmatpush1.msra.mxu0 0.0
    %1009 = vmatprep.subr.mxu0 0.0
    %1010 = vmatpush1.msra.mxu0 0.0
    %1011 = vmatprep.subr.mxu0 0.0
    %1012 = vmatpush1.msra.mxu0 0.0
    %1013 = vmatprep.subr.mxu0 0.0
    %1014 = vmatpush1.msra.mxu0 0.0
    %1015 = vmatprep.subr.mxu0 0.0
    %1016 = vmatpush1.msra.mxu0 0.0
    %1017 = vmatprep.subr.mxu0 0.0
    %1018 = vmatpush1.msra.mxu0 0.0
    %1019 = vmatprep.subr.mxu0 0.0
    %1020 = vmatpush1.msra.mxu0 0.0
    %1021 = vmatprep.subr.mxu0 0.0
    %1022 = vmatpush1.msra.mxu0 0.0
    %1023 = vmatprep.subr.mxu0 0.0
    %1024 = vmatpush1.msra.mxu0 0.0
    %1025 = vmatprep.subr.mxu0 0.0
    %1026 = vmatpush1.msra.mxu0 0.0
    %1027 = vmatprep.subr.mxu0 0.0
    %1028 = vmatpush1.msra.mxu0 0.0
    %1029 = vmatprep.subr.mxu0 0.0
    %1030 = vmatpush1.msra.mxu0 0.0
    %1031 = vmatprep.subr.mxu0 0.0
    %1032 = vmatpush1.msra.mxu0 0.0
    %1033 = vmatprep.subr.mxu0 0.0
    %1034 = vmatpush1.msra.mxu0 0.0
    %1035 = vmatprep.subr.mxu0 0.0
    %1036 = vmatpush1.msra.mxu0 0.0
    %1037 = vmatprep.subr.mxu0 0.0
    %1038 = vmatpush1.msra.mxu0 0.0
    %1039 = vmatprep.subr.mxu0 0.0
    %1040 = vmatpush1.msra.mxu0 0.0
    %1041 = vmatprep.subr.mxu0 0.0
    %1042 = vmatpush1.msra.mxu0 0.0
    %1043 = vmatprep.subr.mxu0 0.0
    %1044 = vmatpush1.msra.mxu0 0.0
    %1045 = vmatprep.subr.mxu0 0.0
    %1046 = vmatpush1.msra.mxu0 0.0
    %1047 = vmatprep.subr.mxu0 0.0
    %1048 = vmatpush1.msra.mxu0 0.0
    %1049 = vmatprep.subr.mxu0 0.0
    %1050 = vmatpush1.msra.mxu0 0.0
    %1051 = vmatprep.subr.mxu0 0.0
    %1052 = vmatpush1.msra.mxu0 0.0
    %1053 = vmatprep.subr.mxu0 0.0
    %1054 = vmatpush1.msra.mxu0 0.0
    %1055 = vmatprep.subr.mxu0 0.0
    %1056 = vmatpush1.msra.mxu0 0.0
    %1057 = vmatprep.subr.mxu0 0.0
    %1058 = vmatpush1.msra.mxu0 0.0
    %1059 = vmatprep.subr.mxu0 0.0
    %1060 = vmatpush1.msra.mxu0 0.0
    %1061 = vmatprep.subr.mxu0 0.0
    %1062 = vmatpush1.msra.mxu0 0.0
    %1063 = vmatprep.subr.mxu0 0.0
    %1064 = vmatpush1.msra.mxu0 0.0
    %1065 = vmatprep.subr.mxu0 0.0
    %1066 = vmatpush1.msra.mxu0 0.0
    %1067 = vmatprep.mubr.f32.mxu0 0.0
    %v1068 = vand.u32 %v687, 4294901760
    %v1069 = vsub.f32 %v687, %v1068
    %v1070 = vand.u32 %v1069, 4294901760
    %1071 = vmatmul.mubr.f32.gmra.mrb[0].mxu0 %v1070
    %v1072 = vpop.f32.mrb[0].mxu0
    %v1073 = vadd.f32 %v977, %v1072
    %v1074 = vpop.f32.mrb[0].mxu0
    %1075 = vmatprep.mubr.f32.mxu0 0.0
    %v1076 = vand.u32 %v690, 4294901760
    %v1077 = vsub.f32 %v690, %v1076
    %v1078 = vand.u32 %v1077, 4294901760
    %1079 = vmatmul.mubr.f32.gmra.mrb[0].mxu0 %v1078
    %v1080 = vpop.f32.mrb[0].mxu0
    %v1081 = vadd.f32 %v984, %v1080
    %v1082 = vpop.f32.mrb[0].mxu0
    %1083 = vmatprep.mubr.f32.mxu0 0.0
    %v1084 = vand.u32 %v693, 4294901760
    %v1085 = vsub.f32 %v693, %v1084
    %v1086 = vand.u32 %v1085, 4294901760
    %1087 = vmatmul.mubr.f32.gmra.mrb[0].mxu0 %v1086
    %v1088 = vpop.f32.mrb[0].mxu0
    %v1089 = vadd.f32 %v991, %v1088
    %v1090 = vpop.f32.mrb[0].mxu0
    %1091 = vmatprep.mubr.f32.mxu0 0.0
    %v1092 = vand.u32 %v696, 4294901760
    %v1093 = vsub.f32 %v696, %v1092
    %v1094 = vand.u32 %v1093, 4294901760
    %1095 = vmatmul.mubr.f32.gmra.mrb[0].mxu0 %v1094
    %v1096 = vpop.f32.mrb[0].mxu0
    %v1097 = vadd.f32 %v998, %v1096
    %v1098 = vpop.f32.mrb[0].mxu0
    %1099 = vdwg.mxu0
    %1100 = vmatprep.subr.mxu0 0.0
    %v1101 = vand.u32 %v684, 4294901760
    %v1102 = vsub.f32 %v684, %v1101
    %v1103 = vand.u32 %v1102, 4294901760
    %1104 = vmatpush1.msra.mxu0 %v1103
    %1105 = vmatprep.subr.mxu0 0.0
    %v1106 = vand.u32 %v685, 4294901760
    %v1107 = vsub.f32 %v685, %v1106
    %v1108 = vand.u32 %v1107, 4294901760
    %1109 = vmatpush1.msra.mxu0 %v1108
    %1110 = vmatprep.subr.mxu0 0.0
    %1111 = vmatpush1.msra.mxu0 0.0
    %1112 = vmatprep.subr.mxu0 0.0
    %1113 = vmatpush1.msra.mxu0 0.0
    %1114 = vmatprep.subr.mxu0 0.0
    %1115 = vmatpush1.msra.mxu0 0.0
    %1116 = vmatprep.subr.mxu0 0.0
    %1117 = vmatpush1.msra.mxu0 0.0
    %1118 = vmatprep.subr.mxu0 0.0
    %1119 = vmatpush1.msra.mxu0 0.0
    %1120 = vmatprep.subr.mxu0 0.0
    %1121 = vmatpush1.msra.mxu0 0.0
    %1122 = vmatprep.subr.mxu0 0.0
    %1123 = vmatpush1.msra.mxu0 0.0
    %1124 = vmatprep.subr.mxu0 0.0
    %1125 = vmatpush1.msra.mxu0 0.0
    %1126 = vmatprep.subr.mxu0 0.0
    %1127 = vmatpush1.msra.mxu0 0.0
    %1128 = vmatprep.subr.mxu0 0.0
    %1129 = vmatpush1.msra.mxu0 0.0
    %1130 = vmatprep.subr.mxu0 0.0
    %1131 = vmatpush1.msra.mxu0 0.0
    %1132 = vmatprep.subr.mxu0 0.0
    %1133 = vmatpush1.msra.mxu0 0.0
    %1134 = vmatprep.subr.mxu0 0.0
    %1135 = vmatpush1.msra.mxu0 0.0
    %1136 = vmatprep.subr.mxu0 0.0
    %1137 = vmatpush1.msra.mxu0 0.0
    %1138 = vmatprep.subr.mxu0 0.0
    %1139 = vmatpush1.msra.mxu0 0.0
    %1140 = vmatprep.subr.mxu0 0.0
    %1141 = vmatpush1.msra.mxu0 0.0
    %1142 = vmatprep.subr.mxu0 0.0
    %1143 = vmatpush1.msra.mxu0 0.0
    %1144 = vmatprep.subr.mxu0 0.0
    %1145 = vmatpush1.msra.mxu0 0.0
    %1146 = vmatprep.subr.mxu0 0.0
    %1147 = vmatpush1.msra.mxu0 0.0
    %1148 = vmatprep.subr.mxu0 0.0
    %1149 = vmatpush1.msra.mxu0 0.0
    %1150 = vmatprep.subr.mxu0 0.0
    %1151 = vmatpush1.msra.mxu0 0.0
    %1152 = vmatprep.subr.mxu0 0.0
    %1153 = vmatpush1.msra.mxu0 0.0
    %1154 = vmatprep.subr.mxu0 0.0
    %1155 = vmatpush1.msra.mxu0 0.0
    %1156 = vmatprep.subr.mxu0 0.0
    %1157 = vmatpush1.msra.mxu0 0.0
    %1158 = vmatprep.subr.mxu0 0.0
    %1159 = vmatpush1.msra.mxu0 0.0
    %1160 = vmatprep.subr.mxu0 0.0
    %1161 = vmatpush1.msra.mxu0 0.0
    %1162 = vmatprep.subr.mxu0 0.0
    %1163 = vmatpush1.msra.mxu0 0.0
    %1164 = vmatprep.subr.mxu0 0.0
    %1165 = vmatpush1.msra.mxu0 0.0
    %1166 = vmatprep.subr.mxu0 0.0
    %1167 = vmatpush1.msra.mxu0 0.0
    %1168 = vmatprep.subr.mxu0 0.0
    %1169 = vmatpush1.msra.mxu0 0.0
    %1170 = vmatprep.mubr.f32.mxu0 0.0
    %v1171 = vand.u32 %v687, 4294901760
    %1172 = vmatmul.mubr.f32.gmra.mrb[0].mxu0 %v1171
    %v1173 = vpop.f32.mrb[0].mxu0
    %v1174 = vadd.f32 %v1073, %v1173
    %v1175 = vpop.f32.mrb[0].mxu0
    %1176 = vmatprep.mubr.f32.mxu0 0.0
    %v1177 = vand.u32 %v690, 4294901760
    %1178 = vmatmul.mubr.f32.gmra.mrb[0].mxu0 %v1177
    %v1179 = vpop.f32.mrb[0].mxu0
    %v1180 = vadd.f32 %v1081, %v1179
    %v1181 = vpop.f32.mrb[0].mxu0
    %1182 = vmatprep.mubr.f32.mxu0 0.0
    %v1183 = vand.u32 %v693, 4294901760
    %1184 = vmatmul.mubr.f32.gmra.mrb[0].mxu0 %v1183
    %v1185 = vpop.f32.mrb[0].mxu0
    %v1186 = vadd.f32 %v1089, %v1185
    %v1187 = vpop.f32.mrb[0].mxu0
    %1188 = vmatprep.mubr.f32.mxu0 0.0
    %v1189 = vand.u32 %v696, 4294901760
    %1190 = vmatmul.mubr.f32.gmra.mrb[0].mxu0 %v1189
    %v1191 = vpop.f32.mrb[0].mxu0
    %v1192 = vadd.f32 %v1097, %v1191
    %v1193 = vpop.f32.mrb[0].mxu0
    %1194 = vdwg.mxu0
    %1195 = vmatprep.subr.mxu0 0.0
    %v1196 = vand.u32 %v684, 4294901760
    %1197 = vmatpush1.msra.mxu0 %v1196
    %1198 = vmatprep.subr.mxu0 0.0
    %v1199 = vand.u32 %v685, 4294901760
    %1200 = vmatpush1.msra.mxu0 %v1199
    %1201 = vmatprep.subr.mxu0 0.0
    %1202 = vmatpush1.msra.mxu0 0.0
    %1203 = vmatprep.subr.mxu0 0.0
    %1204 = vmatpush1.msra.mxu0 0.0
    %1205 = vmatprep.subr.mxu0 0.0
    %1206 = vmatpush1.msra.mxu0 0.0
    %1207 = vmatprep.subr.mxu0 0.0
    %1208 = vmatpush1.msra.mxu0 0.0
    %1209 = vmatprep.subr.mxu0 0.0
    %1210 = vmatpush1.msra.mxu0 0.0
    %1211 = vmatprep.subr.mxu0 0.0
    %1212 = vmatpush1.msra.mxu0 0.0
    %1213 = vmatprep.subr.mxu0 0.0
    %1214 = vmatpush1.msra.mxu0 0.0
    %1215 = vmatprep.subr.mxu0 0.0
    %1216 = vmatpush1.msra.mxu0 0.0
    %1217 = vmatprep.subr.mxu0 0.0
    %1218 = vmatpush1.msra.mxu0 0.0
    %1219 = vmatprep.subr.mxu0 0.0
    %1220 = vmatpush1.msra.mxu0 0.0
    %1221 = vmatprep.subr.mxu0 0.0
    %1222 = vmatpush1.msra.mxu0 0.0
    %1223 = vmatprep.subr.mxu0 0.0
    %1224 = vmatpush1.msra.mxu0 0.0
    %1225 = vmatprep.subr.mxu0 0.0
    %1226 = vmatpush1.msra.mxu0 0.0
    %1227 = vmatprep.subr.mxu0 0.0
    %1228 = vmatpush1.msra.mxu0 0.0
    %1229 = vmatprep.subr.mxu0 0.0
    %1230 = vmatpush1.msra.mxu0 0.0
    %1231 = vmatprep.subr.mxu0 0.0
    %1232 = vmatpush1.msra.mxu0 0.0
    %1233 = vmatprep.subr.mxu0 0.0
    %1234 = vmatpush1.msra.mxu0 0.0
    %1235 = vmatprep.subr.mxu0 0.0
    %1236 = vmatpush1.msra.mxu0 0.0
    %1237 = vmatprep.subr.mxu0 0.0
    %1238 = vmatpush1.msra.mxu0 0.0
    %1239 = vmatprep.subr.mxu0 0.0
    %1240 = vmatpush1.msra.mxu0 0.0
    %1241 = vmatprep.subr.mxu0 0.0
    %1242 = vmatpush1.msra.mxu0 0.0
    %1243 = vmatprep.subr.mxu0 0.0
    %1244 = vmatpush1.msra.mxu0 0.0
    %1245 = vmatprep.subr.mxu0 0.0
    %1246 = vmatpush1.msra.mxu0 0.0
    %1247 = vmatprep.subr.mxu0 0.0
    %1248 = vmatpush1.msra.mxu0 0.0
    %1249 = vmatprep.subr.mxu0 0.0
    %1250 = vmatpush1.msra.mxu0 0.0
    %1251 = vmatprep.subr.mxu0 0.0
    %1252 = vmatpush1.msra.mxu0 0.0
    %1253 = vmatprep.subr.mxu0 0.0
    %1254 = vmatpush1.msra.mxu0 0.0
    %1255 = vmatprep.subr.mxu0 0.0
    %1256 = vmatpush1.msra.mxu0 0.0
    %1257 = vmatprep.subr.mxu0 0.0
    %1258 = vmatpush1.msra.mxu0 0.0
    %1259 = vmatprep.subr.mxu0 0.0
    %1260 = vmatpush1.msra.mxu0 0.0
    %1261 = vmatprep.mubr.f32.mxu0 0.0
    %v1262 = vand.u32 %v687, 4294901760
    %1263 = vmatmul.mubr.f32.gmra.mrb[0].mxu0 %v1262
    %v1264 = vpop.f32.mrb[0].mxu0
    %v1265 = vadd.f32 %v1174, %v1264
    %v1266 = vpop.f32.mrb[0].mxu0
    %1267 = vmatprep.mubr.f32.mxu0 0.0
    %v1268 = vand.u32 %v690, 4294901760
    %1269 = vmatmul.mubr.f32.gmra.mrb[0].mxu0 %v1268
    %v1270 = vpop.f32.mrb[0].mxu0
    %v1271 = vadd.f32 %v1180, %v1270
    %v1272 = vpop.f32.mrb[0].mxu0
    %1273 = vmatprep.mubr.f32.mxu0 0.0
    %v1274 = vand.u32 %v693, 4294901760
    %1275 = vmatmul.mubr.f32.gmra.mrb[0].mxu0 %v1274
    %v1276 = vpop.f32.mrb[0].mxu0
    %v1277 = vadd.f32 %v1186, %v1276
    %v1278 = vpop.f32.mrb[0].mxu0
    %1279 = vmatprep.mubr.f32.mxu0 0.0
    %v1280 = vand.u32 %v696, 4294901760
    %1281 = vmatmul.mubr.f32.gmra.mrb[0].mxu0 %v1280
    %v1282 = vpop.f32.mrb[0].mxu0
    %v1283 = vadd.f32 %v1192, %v1282
    %v1284 = vpop.f32.mrb[0].mxu0
    %1285 = vdwg.mxu0
    %1286 = vset.pattern.permute.xlu0 2
    %1287 = vperm.xlu0 %1286, %v26
    %v1288 = vpop.permute.xlu0 %1287
    %1289 = vset.pattern.permute.xlu0 2
    %1290 = vperm.xlu0 %1289, %v27
    %v1291 = vpop.permute.xlu0 %1290
    %1292 = vset.pattern.permute.xlu0 2
    %1293 = vperm.xlu0 %1292, %v28
    %v1294 = vpop.permute.xlu0 %1293
    %1295 = vset.pattern.permute.xlu0 2
    %1296 = vperm.xlu0 %1295, %v29
    %v1297 = vpop.permute.xlu0 %1296
    %vm1298 = vcmp.eq.s32.totalorder %v1288, %v31
    %vm1299 = vcmp.eq.s32.totalorder %v1291, %v31
    %vm1300 = vcmp.eq.s32.totalorder %v1294, %v31
    %vm1301 = vcmp.eq.s32.totalorder %v1297, %v31
    %v1302 = vsel %vm1298, 1, 0
    %v1303 = vsel %vm1299, 1, 0
    %v1304 = vsel %vm1300, 1, 0
    %v1305 = vsel %vm1301, 1, 0
    %v1306 = vcvt.s32.f32 %v1302
    %v1307 = vcvt.s32.f32 %v1303
    %v1308 = vcvt.s32.f32 %v1304
    %v1309 = vcvt.s32.f32 %v1305
    %s1310 = scalar_lea.vmem [#allocation2], 32
    %v1311 = vld [vmem:[%s1310] sm:$0xff]
    %v1312 = vld [vmem:[%s1310 + $0x8] sm:$0xff]
    %v1314 = vsel %vm58, %v1306, 0
    %v1317 = vsel %vm58, %v1307, 0
    %v1320 = vsel %vm58, %v1308, 0
    %v1323 = vsel %vm58, %v1309, 0
    %1325 = vmatprep.subr.mxu0 0.0
    %v1326 = vand.u32 %v1311, 4294901760
    %1327 = vmatpush1.msra.mxu0 %v1326
    %1328 = vmatprep.subr.mxu0 0.0
    %v1329 = vand.u32 %v1312, 4294901760
    %1330 = vmatpush1.msra.mxu0 %v1329
    %1331 = vmatprep.subr.mxu0 0.0
    %1332 = vmatpush1.msra.mxu0 0.0
    %1333 = vmatprep.subr.mxu0 0.0
    %1334 = vmatpush1.msra.mxu0 0.0
    %1335 = vmatprep.subr.mxu0 0.0
    %1336 = vmatpush1.msra.mxu0 0.0
    %1337 = vmatprep.subr.mxu0 0.0
    %1338 = vmatpush1.msra.mxu0 0.0
    %1339 = vmatprep.subr.mxu0 0.0
    %1340 = vmatpush1.msra.mxu0 0.0
    %1341 = vmatprep.subr.mxu0 0.0
    %1342 = vmatpush1.msra.mxu0 0.0
    %1343 = vmatprep.subr.mxu0 0.0
    %1344 = vmatpush1.msra.mxu0 0.0
    %1345 = vmatprep.subr.mxu0 0.0
    %1346 = vmatpush1.msra.mxu0 0.0
    %1347 = vmatprep.subr.mxu0 0.0
    %1348 = vmatpush1.msra.mxu0 0.0
    %1349 = vmatprep.subr.mxu0 0.0
    %1350 = vmatpush1.msra.mxu0 0.0
    %1351 = vmatprep.subr.mxu0 0.0
    %1352 = vmatpush1.msra.mxu0 0.0
    %1353 = vmatprep.subr.mxu0 0.0
    %1354 = vmatpush1.msra.mxu0 0.0
    %1355 = vmatprep.subr.mxu0 0.0
    %1356 = vmatpush1.msra.mxu0 0.0
    %1357 = vmatprep.subr.mxu0 0.0
    %1358 = vmatpush1.msra.mxu0 0.0
    %1359 = vmatprep.subr.mxu0 0.0
    %1360 = vmatpush1.msra.mxu0 0.0
    %1361 = vmatprep.subr.mxu0 0.0
    %1362 = vmatpush1.msra.mxu0 0.0
    %1363 = vmatprep.subr.mxu0 0.0
    %1364 = vmatpush1.msra.mxu0 0.0
    %1365 = vmatprep.subr.mxu0 0.0
    %1366 = vmatpush1.msra.mxu0 0.0
    %1367 = vmatprep.subr.mxu0 0.0
    %1368 = vmatpush1.msra.mxu0 0.0
    %1369 = vmatprep.subr.mxu0 0.0
    %1370 = vmatpush1.msra.mxu0 0.0
    %1371 = vmatprep.subr.mxu0 0.0
    %1372 = vmatpush1.msra.mxu0 0.0
    %1373 = vmatprep.subr.mxu0 0.0
    %1374 = vmatpush1.msra.mxu0 0.0
    %1375 = vmatprep.subr.mxu0 0.0
    %1376 = vmatpush1.msra.mxu0 0.0
    %1377 = vmatprep.subr.mxu0 0.0
    %1378 = vmatpush1.msra.mxu0 0.0
    %1379 = vmatprep.subr.mxu0 0.0
    %1380 = vmatpush1.msra.mxu0 0.0
    %1381 = vmatprep.subr.mxu0 0.0
    %1382 = vmatpush1.msra.mxu0 0.0
    %1383 = vmatprep.subr.mxu0 0.0
    %1384 = vmatpush1.msra.mxu0 0.0
    %1385 = vmatprep.subr.mxu0 0.0
    %1386 = vmatpush1.msra.mxu0 0.0
    %1387 = vmatprep.subr.mxu0 0.0
    %1388 = vmatpush1.msra.mxu0 0.0
    %1389 = vmatprep.subr.mxu0 0.0
    %1390 = vmatpush1.msra.mxu0 0.0
    %1391 = vmatprep.mubr.f32.mxu0 0.0
    %v1392 = vand.u32 %v1314, 4294901760
    %v1393 = vsub.f32 %v1314, %v1392
    %v1394 = vand.u32 %v1393, 4294901760
    %v1395 = vsub.f32 %v1393, %v1394
    %v1396 = vand.u32 %v1395, 4294901760
    %1397 = vmatmul.mubr.f32.gmra.mrb[0].mxu0 %v1396
    %v1398 = vpop.f32.mrb[0].mxu0
    %v1399 = vadd.f32 0.0, %v1398
    %v1400 = vpop.f32.mrb[0].mxu0
    %1401 = vmatprep.mubr.f32.mxu0 0.0
    %v1402 = vand.u32 %v1317, 4294901760
    %v1403 = vsub.f32 %v1317, %v1402
    %v1404 = vand.u32 %v1403, 4294901760
    %v1405 = vsub.f32 %v1403, %v1404
    %v1406 = vand.u32 %v1405, 4294901760
    %1407 = vmatmul.mubr.f32.gmra.mrb[0].mxu0 %v1406
    %v1408 = vpop.f32.mrb[0].mxu0
    %v1409 = vadd.f32 0.0, %v1408
    %v1410 = vpop.f32.mrb[0].mxu0
    %1411 = vmatprep.mubr.f32.mxu0 0.0
    %v1412 = vand.u32 %v1320, 4294901760
    %v1413 = vsub.f32 %v1320, %v1412
    %v1414 = vand.u32 %v1413, 4294901760
    %v1415 = vsub.f32 %v1413, %v1414
    %v1416 = vand.u32 %v1415, 4294901760
    %1417 = vmatmul.mubr.f32.gmra.mrb[0].mxu0 %v1416
    %v1418 = vpop.f32.mrb[0].mxu0
    %v1419 = vadd.f32 0.0, %v1418
    %v1420 = vpop.f32.mrb[0].mxu0
    %1421 = vmatprep.mubr.f32.mxu0 0.0
    %v1422 = vand.u32 %v1323, 4294901760
    %v1423 = vsub.f32 %v1323, %v1422
    %v1424 = vand.u32 %v1423, 4294901760
    %v1425 = vsub.f32 %v1423, %v1424
    %v1426 = vand.u32 %v1425, 4294901760
    %1427 = vmatmul.mubr.f32.gmra.mrb[0].mxu0 %v1426
    %v1428 = vpop.f32.mrb[0].mxu0
    %v1429 = vadd.f32 0.0, %v1428
    %v1430 = vpop.f32.mrb[0].mxu0
    %1431 = vdwg.mxu0
    %1432 = vmatprep.subr.mxu0 0.0
    %v1433 = vand.u32 %v1311, 4294901760
    %v1434 = vsub.f32 %v1311, %v1433
    %v1435 = vand.u32 %v1434, 4294901760
    %v1436 = vsub.f32 %v1434, %v1435
    %v1437 = vand.u32 %v1436, 4294901760
    %1438 = vmatpush1.msra.mxu0 %v1437
    %1439 = vmatprep.subr.mxu0 0.0
    %v1440 = vand.u32 %v1312, 4294901760
    %v1441 = vsub.f32 %v1312, %v1440
    %v1442 = vand.u32 %v1441, 4294901760
    %v1443 = vsub.f32 %v1441, %v1442
    %v1444 = vand.u32 %v1443, 4294901760
    %1445 = vmatpush1.msra.mxu0 %v1444
    %1446 = vmatprep.subr.mxu0 0.0
    %1447 = vmatpush1.msra.mxu0 0.0
    %1448 = vmatprep.subr.mxu0 0.0
    %1449 = vmatpush1.msra.mxu0 0.0
    %1450 = vmatprep.subr.mxu0 0.0
    %1451 = vmatpush1.msra.mxu0 0.0
    %1452 = vmatprep.subr.mxu0 0.0
    %1453 = vmatpush1.msra.mxu0 0.0
    %1454 = vmatprep.subr.mxu0 0.0
    %1455 = vmatpush1.msra.mxu0 0.0
    %1456 = vmatprep.subr.mxu0 0.0
    %1457 = vmatpush1.msra.mxu0 0.0
    %1458 = vmatprep.subr.mxu0 0.0
    %1459 = vmatpush1.msra.mxu0 0.0
    %1460 = vmatprep.subr.mxu0 0.0
    %1461 = vmatpush1.msra.mxu0 0.0
    %1462 = vmatprep.subr.mxu0 0.0
    %1463 = vmatpush1.msra.mxu0 0.0
    %1464 = vmatprep.subr.mxu0 0.0
    %1465 = vmatpush1.msra.mxu0 0.0
    %1466 = vmatprep.subr.mxu0 0.0
    %1467 = vmatpush1.msra.mxu0 0.0
    %1468 = vmatprep.subr.mxu0 0.0
    %1469 = vmatpush1.msra.mxu0 0.0
    %1470 = vmatprep.subr.mxu0 0.0
    %1471 = vmatpush1.msra.mxu0 0.0
    %1472 = vmatprep.subr.mxu0 0.0
    %1473 = vmatpush1.msra.mxu0 0.0
    %1474 = vmatprep.subr.mxu0 0.0
    %1475 = vmatpush1.msra.mxu0 0.0
    %1476 = vmatprep.subr.mxu0 0.0
    %1477 = vmatpush1.msra.mxu0 0.0
    %1478 = vmatprep.subr.mxu0 0.0
    %1479 = vmatpush1.msra.mxu0 0.0
    %1480 = vmatprep.subr.mxu0 0.0
    %1481 = vmatpush1.msra.mxu0 0.0
    %1482 = vmatprep.subr.mxu0 0.0
    %1483 = vmatpush1.msra.mxu0 0.0
    %1484 = vmatprep.subr.mxu0 0.0
    %1485 = vmatpush1.msra.mxu0 0.0
    %1486 = vmatprep.subr.mxu0 0.0
    %1487 = vmatpush1.msra.mxu0 0.0
    %1488 = vmatprep.subr.mxu0 0.0
    %1489 = vmatpush1.msra.mxu0 0.0
    %1490 = vmatprep.subr.mxu0 0.0
    %1491 = vmatpush1.msra.mxu0 0.0
    %1492 = vmatprep.subr.mxu0 0.0
    %1493 = vmatpush1.msra.mxu0 0.0
    %1494 = vmatprep.subr.mxu0 0.0
    %1495 = vmatpush1.msra.mxu0 0.0
    %1496 = vmatprep.subr.mxu0 0.0
    %1497 = vmatpush1.msra.mxu0 0.0
    %1498 = vmatprep.subr.mxu0 0.0
    %1499 = vmatpush1.msra.mxu0 0.0
    %1500 = vmatprep.subr.mxu0 0.0
    %1501 = vmatpush1.msra.mxu0 0.0
    %1502 = vmatprep.subr.mxu0 0.0
    %1503 = vmatpush1.msra.mxu0 0.0
    %1504 = vmatprep.subr.mxu0 0.0
    %1505 = vmatpush1.msra.mxu0 0.0
    %1506 = vmatprep.mubr.f32.mxu0 0.0
    %v1507 = vand.u32 %v1314, 4294901760
    %1508 = vmatmul.mubr.f32.gmra.mrb[0].mxu0 %v1507
    %v1509 = vpop.f32.mrb[0].mxu0
    %v1510 = vadd.f32 %v1399, %v1509
    %v1511 = vpop.f32.mrb[0].mxu0
    %1512 = vmatprep.mubr.f32.mxu0 0.0
    %v1513 = vand.u32 %v1317, 4294901760
    %1514 = vmatmul.mubr.f32.gmra.mrb[0].mxu0 %v1513
    %v1515 = vpop.f32.mrb[0].mxu0
    %v1516 = vadd.f32 %v1409, %v1515
    %v1517 = vpop.f32.mrb[0].mxu0
    %1518 = vmatprep.mubr.f32.mxu0 0.0
    %v1519 = vand.u32 %v1320, 4294901760
    %1520 = vmatmul.mubr.f32.gmra.mrb[0].mxu0 %v1519
    %v1521 = vpop.f32.mrb[0].mxu0
    %v1522 = vadd.f32 %v1419, %v1521
    %v1523 = vpop.f32.mrb[0].mxu0
    %1524 = vmatprep.mubr.f32.mxu0 0.0
    %v1525 = vand.u32 %v1323, 4294901760
    %1526 = vmatmul.mubr.f32.gmra.mrb[0].mxu0 %v1525
    %v1527 = vpop.f32.mrb[0].mxu0
    %v1528 = vadd.f32 %v1429, %v1527
    %v1529 = vpop.f32.mrb[0].mxu0
    %1530 = vdwg.mxu0
    %1531 = vmatprep.subr.mxu0 0.0
    %v1532 = vand.u32 %v1311, 4294901760
    %v1533 = vsub.f32 %v1311, %v1532
    %1534 = vmatpush1.msra.mxu0 %v1533
    %1535 = vmatprep.subr.mxu0 0.0
    %v1536 = vand.u32 %v1312, 4294901760
    %v1537 = vsub.f32 %v1312, %v1536
    %1538 = vmatpush1.msra.mxu0 %v1537
    %1539 = vmatprep.subr.mxu0 0.0
    %1540 = vmatpush1.msra.mxu0 0.0
    %1541 = vmatprep.subr.mxu0 0.0
    %1542 = vmatpush1.msra.mxu0 0.0
    %1543 = vmatprep.subr.mxu0 0.0
    %1544 = vmatpush1.msra.mxu0 0.0
    %1545 = vmatprep.subr.mxu0 0.0
    %1546 = vmatpush1.msra.mxu0 0.0
    %1547 = vmatprep.subr.mxu0 0.0
    %1548 = vmatpush1.msra.mxu0 0.0
    %1549 = vmatprep.subr.mxu0 0.0
    %1550 = vmatpush1.msra.mxu0 0.0
    %1551 = vmatprep.subr.mxu0 0.0
    %1552 = vmatpush1.msra.mxu0 0.0
    %1553 = vmatprep.subr.mxu0 0.0
    %1554 = vmatpush1.msra.mxu0 0.0
    %1555 = vmatprep.subr.mxu0 0.0
    %1556 = vmatpush1.msra.mxu0 0.0
    %1557 = vmatprep.subr.mxu0 0.0
    %1558 = vmatpush1.msra.mxu0 0.0
    %1559 = vmatprep.subr.mxu0 0.0
    %1560 = vmatpush1.msra.mxu0 0.0
    %1561 = vmatprep.subr.mxu0 0.0
    %1562 = vmatpush1.msra.mxu0 0.0
    %1563 = vmatprep.subr.mxu0 0.0
    %1564 = vmatpush1.msra.mxu0 0.0
    %1565 = vmatprep.subr.mxu0 0.0
    %1566 = vmatpush1.msra.mxu0 0.0
    %1567 = vmatprep.subr.mxu0 0.0
    %1568 = vmatpush1.msra.mxu0 0.0
    %1569 = vmatprep.subr.mxu0 0.0
    %1570 = vmatpush1.msra.mxu0 0.0
    %1571 = vmatprep.subr.mxu0 0.0
    %1572 = vmatpush1.msra.mxu0 0.0
    %1573 = vmatprep.subr.mxu0 0.0
    %1574 = vmatpush1.msra.mxu0 0.0
    %1575 = vmatprep.subr.mxu0 0.0
    %1576 = vmatpush1.msra.mxu0 0.0
    %1577 = vmatprep.subr.mxu0 0.0
    %1578 = vmatpush1.msra.mxu0 0.0
    %1579 = vmatprep.subr.mxu0 0.0
    %1580 = vmatpush1.msra.mxu0 0.0
    %1581 = vmatprep.subr.mxu0 0.0
    %1582 = vmatpush1.msra.mxu0 0.0
    %1583 = vmatprep.subr.mxu0 0.0
    %1584 = vmatpush1.msra.mxu0 0.0
    %1585 = vmatprep.subr.mxu0 0.0
    %1586 = vmatpush1.msra.mxu0 0.0
    %1587 = vmatprep.subr.mxu0 0.0
    %1588 = vmatpush1.msra.mxu0 0.0
    %1589 = vmatprep.subr.mxu0 0.0
    %1590 = vmatpush1.msra.mxu0 0.0
    %1591 = vmatprep.subr.mxu0 0.0
    %1592 = vmatpush1.msra.mxu0 0.0
    %1593 = vmatprep.subr.mxu0 0.0
    %1594 = vmatpush1.msra.mxu0 0.0
    %1595 = vmatprep.subr.mxu0 0.0
    %1596 = vmatpush1.msra.mxu0 0.0
    %1597 = vmatprep.subr.mxu0 0.0
    %1598 = vmatpush1.msra.mxu0 0.0
    %1599 = vmatprep.mubr.f32.mxu0 0.0
    %v1600 = vand.u32 %v1314, 4294901760
    %v1601 = vsub.f32 %v1314, %v1600
    %1602 = vmatmul.mubr.f32.gmra.mrb[0].mxu0 %v1601
    %v1603 = vpop.f32.mrb[0].mxu0
    %v1604 = vadd.f32 %v1510, %v1603
    %v1605 = vpop.f32.mrb[0].mxu0
    %1606 = vmatprep.mubr.f32.mxu0 0.0
    %v1607 = vand.u32 %v1317, 4294901760
    %v1608 = vsub.f32 %v1317, %v1607
    %1609 = vmatmul.mubr.f32.gmra.mrb[0].mxu0 %v1608
    %v1610 = vpop.f32.mrb[0].mxu0
    %v1611 = vadd.f32 %v1516, %v1610
    %v1612 = vpop.f32.mrb[0].mxu0
    %1613 = vmatprep.mubr.f32.mxu0 0.0
    %v1614 = vand.u32 %v1320, 4294901760
    %v1615 = vsub.f32 %v1320, %v1614
    %1616 = vmatmul.mubr.f32.gmra.mrb[0].mxu0 %v1615
    %v1617 = vpop.f32.mrb[0].mxu0
    %v1618 = vadd.f32 %v1522, %v1617
    %v1619 = vpop.f32.mrb[0].mxu0
    %1620 = vmatprep.mubr.f32.mxu0 0.0
    %v1621 = vand.u32 %v1323, 4294901760
    %v1622 = vsub.f32 %v1323, %v1621
    %1623 = vmatmul.mubr.f32.gmra.mrb[0].mxu0 %v1622
    %v1624 = vpop.f32.mrb[0].mxu0
    %v1625 = vadd.f32 %v1528, %v1624
    %v1626 = vpop.f32.mrb[0].mxu0
    %1627 = vdwg.mxu0
    %1628 = vmatprep.subr.mxu0 0.0
    %v1629 = vand.u32 %v1311, 4294901760
    %1630 = vmatpush1.msra.mxu0 %v1629
    %1631 = vmatprep.subr.mxu0 0.0
    %v1632 = vand.u32 %v1312, 4294901760
    %1633 = vmatpush1.msra.mxu0 %v1632
    %1634 = vmatprep.subr.mxu0 0.0
    %1635 = vmatpush1.msra.mxu0 0.0
    %1636 = vmatprep.subr.mxu0 0.0
    %1637 = vmatpush1.msra.mxu0 0.0
    %1638 = vmatprep.subr.mxu0 0.0
    %1639 = vmatpush1.msra.mxu0 0.0
    %1640 = vmatprep.subr.mxu0 0.0
    %1641 = vmatpush1.msra.mxu0 0.0
    %1642 = vmatprep.subr.mxu0 0.0
    %1643 = vmatpush1.msra.mxu0 0.0
    %1644 = vmatprep.subr.mxu0 0.0
    %1645 = vmatpush1.msra.mxu0 0.0
    %1646 = vmatprep.subr.mxu0 0.0
    %1647 = vmatpush1.msra.mxu0 0.0
    %1648 = vmatprep.subr.mxu0 0.0
    %1649 = vmatpush1.msra.mxu0 0.0
    %1650 = vmatprep.subr.mxu0 0.0
    %1651 = vmatpush1.msra.mxu0 0.0
    %1652 = vmatprep.subr.mxu0 0.0
    %1653 = vmatpush1.msra.mxu0 0.0
    %1654 = vmatprep.subr.mxu0 0.0
    %1655 = vmatpush1.msra.mxu0 0.0
    %1656 = vmatprep.subr.mxu0 0.0
    %1657 = vmatpush1.msra.mxu0 0.0
    %1658 = vmatprep.subr.mxu0 0.0
    %1659 = vmatpush1.msra.mxu0 0.0
    %1660 = vmatprep.subr.mxu0 0.0
    %1661 = vmatpush1.msra.mxu0 0.0
    %1662 = vmatprep.subr.mxu0 0.0
    %1663 = vmatpush1.msra.mxu0 0.0
    %1664 = vmatprep.subr.mxu0 0.0
    %1665 = vmatpush1.msra.mxu0 0.0
    %1666 = vmatprep.subr.mxu0 0.0
    %1667 = vmatpush1.msra.mxu0 0.0
    %1668 = vmatprep.subr.mxu0 0.0
    %1669 = vmatpush1.msra.mxu0 0.0
    %1670 = vmatprep.subr.mxu0 0.0
    %1671 = vmatpush1.msra.mxu0 0.0
    %1672 = vmatprep.subr.mxu0 0.0
    %1673 = vmatpush1.msra.mxu0 0.0
    %1674 = vmatprep.subr.mxu0 0.0
    %1675 = vmatpush1.msra.mxu0 0.0
    %1676 = vmatprep.subr.mxu0 0.0
    %1677 = vmatpush1.msra.mxu0 0.0
    %1678 = vmatprep.subr.mxu0 0.0
    %1679 = vmatpush1.msra.mxu0 0.0
    %1680 = vmatprep.subr.mxu0 0.0
    %1681 = vmatpush1.msra.mxu0 0.0
    %1682 = vmatprep.subr.mxu0 0.0
    %1683 = vmatpush1.msra.mxu0 0.0
    %1684 = vmatprep.subr.mxu0 0.0
    %1685 = vmatpush1.msra.mxu0 0.0
    %1686 = vmatprep.subr.mxu0 0.0
    %1687 = vmatpush1.msra.mxu0 0.0
    %1688 = vmatprep.subr.mxu0 0.0
    %1689 = vmatpush1.msra.mxu0 0.0
    %1690 = vmatprep.subr.mxu0 0.0
    %1691 = vmatpush1.msra.mxu0 0.0
    %1692 = vmatprep.subr.mxu0 0.0
    %1693 = vmatpush1.msra.mxu0 0.0
    %1694 = vmatprep.mubr.f32.mxu0 0.0
    %v1695 = vand.u32 %v1314, 4294901760
    %v1696 = vsub.f32 %v1314, %v1695
    %v1697 = vand.u32 %v1696, 4294901760
    %1698 = vmatmul.mubr.f32.gmra.mrb[0].mxu0 %v1697
    %v1699 = vpop.f32.mrb[0].mxu0
    %v1700 = vadd.f32 %v1604, %v1699
    %v1701 = vpop.f32.mrb[0].mxu0
    %1702 = vmatprep.mubr.f32.mxu0 0.0
    %v1703 = vand.u32 %v1317, 4294901760
    %v1704 = vsub.f32 %v1317, %v1703
    %v1705 = vand.u32 %v1704, 4294901760
    %1706 = vmatmul.mubr.f32.gmra.mrb[0].mxu0 %v1705
    %v1707 = vpop.f32.mrb[0].mxu0
    %v1708 = vadd.f32 %v1611, %v1707
    %v1709 = vpop.f32.mrb[0].mxu0
    %1710 = vmatprep.mubr.f32.mxu0 0.0
    %v1711 = vand.u32 %v1320, 4294901760
    %v1712 = vsub.f32 %v1320, %v1711
    %v1713 = vand.u32 %v1712, 4294901760
    %1714 = vmatmul.mubr.f32.gmra.mrb[0].mxu0 %v1713
    %v1715 = vpop.f32.mrb[0].mxu0
    %v1716 = vadd.f32 %v1618, %v1715
    %v1717 = vpop.f32.mrb[0].mxu0
    %1718 = vmatprep.mubr.f32.mxu0 0.0
    %v1719 = vand.u32 %v1323, 4294901760
    %v1720 = vsub.f32 %v1323, %v1719
    %v1721 = vand.u32 %v1720, 4294901760
    %1722 = vmatmul.mubr.f32.gmra.mrb[0].mxu0 %v1721
    %v1723 = vpop.f32.mrb[0].mxu0
    %v1724 = vadd.f32 %v1625, %v1723
    %v1725 = vpop.f32.mrb[0].mxu0
    %1726 = vdwg.mxu0
    %1727 = vmatprep.subr.mxu0 0.0
    %v1728 = vand.u32 %v1311, 4294901760
    %v1729 = vsub.f32 %v1311, %v1728
    %v1730 = vand.u32 %v1729, 4294901760
    %1731 = vmatpush1.msra.mxu0 %v1730
    %1732 = vmatprep.subr.mxu0 0.0
    %v1733 = vand.u32 %v1312, 4294901760
    %v1734 = vsub.f32 %v1312, %v1733
    %v1735 = vand.u32 %v1734, 4294901760
    %1736 = vmatpush1.msra.mxu0 %v1735
    %1737 = vmatprep.subr.mxu0 0.0
    %1738 = vmatpush1.msra.mxu0 0.0
    %1739 = vmatprep.subr.mxu0 0.0
    %1740 = vmatpush1.msra.mxu0 0.0
    %1741 = vmatprep.subr.mxu0 0.0
    %1742 = vmatpush1.msra.mxu0 0.0
    %1743 = vmatprep.subr.mxu0 0.0
    %1744 = vmatpush1.msra.mxu0 0.0
    %1745 = vmatprep.subr.mxu0 0.0
    %1746 = vmatpush1.msra.mxu0 0.0
    %1747 = vmatprep.subr.mxu0 0.0
    %1748 = vmatpush1.msra.mxu0 0.0
    %1749 = vmatprep.subr.mxu0 0.0
    %1750 = vmatpush1.msra.mxu0 0.0
    %1751 = vmatprep.subr.mxu0 0.0
    %1752 = vmatpush1.msra.mxu0 0.0
    %1753 = vmatprep.subr.mxu0 0.0
    %1754 = vmatpush1.msra.mxu0 0.0
    %1755 = vmatprep.subr.mxu0 0.0
    %1756 = vmatpush1.msra.mxu0 0.0
    %1757 = vmatprep.subr.mxu0 0.0
    %1758 = vmatpush1.msra.mxu0 0.0
    %1759 = vmatprep.subr.mxu0 0.0
    %1760 = vmatpush1.msra.mxu0 0.0
    %1761 = vmatprep.subr.mxu0 0.0
    %1762 = vmatpush1.msra.mxu0 0.0
    %1763 = vmatprep.subr.mxu0 0.0
    %1764 = vmatpush1.msra.mxu0 0.0
    %1765 = vmatprep.subr.mxu0 0.0
    %1766 = vmatpush1.msra.mxu0 0.0
    %1767 = vmatprep.subr.mxu0 0.0
    %1768 = vmatpush1.msra.mxu0 0.0
    %1769 = vmatprep.subr.mxu0 0.0
    %1770 = vmatpush1.msra.mxu0 0.0
    %1771 = vmatprep.subr.mxu0 0.0
    %1772 = vmatpush1.msra.mxu0 0.0
    %1773 = vmatprep.subr.mxu0 0.0
    %1774 = vmatpush1.msra.mxu0 0.0
    %1775 = vmatprep.subr.mxu0 0.0
    %1776 = vmatpush1.msra.mxu0 0.0
    %1777 = vmatprep.subr.mxu0 0.0
    %1778 = vmatpush1.msra.mxu0 0.0
    %1779 = vmatprep.subr.mxu0 0.0
    %1780 = vmatpush1.msra.mxu0 0.0
    %1781 = vmatprep.subr.mxu0 0.0
    %1782 = vmatpush1.msra.mxu0 0.0
    %1783 = vmatprep.subr.mxu0 0.0
    %1784 = vmatpush1.msra.mxu0 0.0
    %1785 = vmatprep.subr.mxu0 0.0
    %1786 = vmatpush1.msra.mxu0 0.0
    %1787 = vmatprep.subr.mxu0 0.0
    %1788 = vmatpush1.msra.mxu0 0.0
    %1789 = vmatprep.subr.mxu0 0.0
    %1790 = vmatpush1.msra.mxu0 0.0
    %1791 = vmatprep.subr.mxu0 0.0
    %1792 = vmatpush1.msra.mxu0 0.0
    %1793 = vmatprep.subr.mxu0 0.0
    %1794 = vmatpush1.msra.mxu0 0.0
    %1795 = vmatprep.subr.mxu0 0.0
    %1796 = vmatpush1.msra.mxu0 0.0
    %1797 = vmatprep.mubr.f32.mxu0 0.0
    %v1798 = vand.u32 %v1314, 4294901760
    %1799 = vmatmul.mubr.f32.gmra.mrb[0].mxu0 %v1798
    %v1800 = vpop.f32.mrb[0].mxu0
    %v1801 = vadd.f32 %v1700, %v1800
    %v1802 = vpop.f32.mrb[0].mxu0
    %1803 = vmatprep.mubr.f32.mxu0 0.0
    %v1804 = vand.u32 %v1317, 4294901760
    %1805 = vmatmul.mubr.f32.gmra.mrb[0].mxu0 %v1804
    %v1806 = vpop.f32.mrb[0].mxu0
    %v1807 = vadd.f32 %v1708, %v1806
    %v1808 = vpop.f32.mrb[0].mxu0
    %1809 = vmatprep.mubr.f32.mxu0 0.0
    %v1810 = vand.u32 %v1320, 4294901760
    %1811 = vmatmul.mubr.f32.gmra.mrb[0].mxu0 %v1810
    %v1812 = vpop.f32.mrb[0].mxu0
    %v1813 = vadd.f32 %v1716, %v1812
    %v1814 = vpop.f32.mrb[0].mxu0
    %1815 = vmatprep.mubr.f32.mxu0 0.0
    %v1816 = vand.u32 %v1323, 4294901760
    %1817 = vmatmul.mubr.f32.gmra.mrb[0].mxu0 %v1816
    %v1818 = vpop.f32.mrb[0].mxu0
    %v1819 = vadd.f32 %v1724, %v1818
    %v1820 = vpop.f32.mrb[0].mxu0
    %1821 = vdwg.mxu0
    %1822 = vmatprep.subr.mxu0 0.0
    %v1823 = vand.u32 %v1311, 4294901760
    %1824 = vmatpush1.msra.mxu0 %v1823
    %1825 = vmatprep.subr.mxu0 0.0
    %v1826 = vand.u32 %v1312, 4294901760
    %1827 = vmatpush1.msra.mxu0 %v1826
    %1828 = vmatprep.subr.mxu0 0.0
    %1829 = vmatpush1.msra.mxu0 0.0
    %1830 = vmatprep.subr.mxu0 0.0
    %1831 = vmatpush1.msra.mxu0 0.0
    %1832 = vmatprep.subr.mxu0 0.0
    %1833 = vmatpush1.msra.mxu0 0.0
    %1834 = vmatprep.subr.mxu0 0.0
    %1835 = vmatpush1.msra.mxu0 0.0
    %1836 = vmatprep.subr.mxu0 0.0
    %1837 = vmatpush1.msra.mxu0 0.0
    %1838 = vmatprep.subr.mxu0 0.0
    %1839 = vmatpush1.msra.mxu0 0.0
    %1840 = vmatprep.subr.mxu0 0.0
    %1841 = vmatpush1.msra.mxu0 0.0
    %1842 = vmatprep.subr.mxu0 0.0
    %1843 = vmatpush1.msra.mxu0 0.0
    %1844 = vmatprep.subr.mxu0 0.0
    %1845 = vmatpush1.msra.mxu0 0.0
    %1846 = vmatprep.subr.mxu0 0.0
    %1847 = vmatpush1.msra.mxu0 0.0
    %1848 = vmatprep.subr.mxu0 0.0
    %1849 = vmatpush1.msra.mxu0 0.0
    %1850 = vmatprep.subr.mxu0 0.0
    %1851 = vmatpush1.msra.mxu0 0.0
    %1852 = vmatprep.subr.mxu0 0.0
    %1853 = vmatpush1.msra.mxu0 0.0
    %1854 = vmatprep.subr.mxu0 0.0
    %1855 = vmatpush1.msra.mxu0 0.0
    %1856 = vmatprep.subr.mxu0 0.0
    %1857 = vmatpush1.msra.mxu0 0.0
    %1858 = vmatprep.subr.mxu0 0.0
    %1859 = vmatpush1.msra.mxu0 0.0
    %1860 = vmatprep.subr.mxu0 0.0
    %1861 = vmatpush1.msra.mxu0 0.0
    %1862 = vmatprep.subr.mxu0 0.0
    %1863 = vmatpush1.msra.mxu0 0.0
    %1864 = vmatprep.subr.mxu0 0.0
    %1865 = vmatpush1.msra.mxu0 0.0
    %1866 = vmatprep.subr.mxu0 0.0
    %1867 = vmatpush1.msra.mxu0 0.0
    %1868 = vmatprep.subr.mxu0 0.0
    %1869 = vmatpush1.msra.mxu0 0.0
    %1870 = vmatprep.subr.mxu0 0.0
    %1871 = vmatpush1.msra.mxu0 0.0
    %1872 = vmatprep.subr.mxu0 0.0
    %1873 = vmatpush1.msra.mxu0 0.0
    %1874 = vmatprep.subr.mxu0 0.0
    %1875 = vmatpush1.msra.mxu0 0.0
    %1876 = vmatprep.subr.mxu0 0.0
    %1877 = vmatpush1.msra.mxu0 0.0
    %1878 = vmatprep.subr.mxu0 0.0
    %1879 = vmatpush1.msra.mxu0 0.0
    %1880 = vmatprep.subr.mxu0 0.0
    %1881 = vmatpush1.msra.mxu0 0.0
    %1882 = vmatprep.subr.mxu0 0.0
    %1883 = vmatpush1.msra.mxu0 0.0
    %1884 = vmatprep.subr.mxu0 0.0
    %1885 = vmatpush1.msra.mxu0 0.0
    %1886 = vmatprep.subr.mxu0 0.0
    %1887 = vmatpush1.msra.mxu0 0.0
    %1888 = vmatprep.mubr.f32.mxu0 0.0
    %v1889 = vand.u32 %v1314, 4294901760
    %1890 = vmatmul.mubr.f32.gmra.mrb[0].mxu0 %v1889
    %v1891 = vpop.f32.mrb[0].mxu0
    %v1892 = vadd.f32 %v1801, %v1891
    %v1893 = vpop.f32.mrb[0].mxu0
    %1894 = vmatprep.mubr.f32.mxu0 0.0
    %v1895 = vand.u32 %v1317, 4294901760
    %1896 = vmatmul.mubr.f32.gmra.mrb[0].mxu0 %v1895
    %v1897 = vpop.f32.mrb[0].mxu0
    %v1898 = vadd.f32 %v1807, %v1897
    %v1899 = vpop.f32.mrb[0].mxu0
    %1900 = vmatprep.mubr.f32.mxu0 0.0
    %v1901 = vand.u32 %v1320, 4294901760
    %1902 = vmatmul.mubr.f32.gmra.mrb[0].mxu0 %v1901
    %v1903 = vpop.f32.mrb[0].mxu0
    %v1904 = vadd.f32 %v1813, %v1903
    %v1905 = vpop.f32.mrb[0].mxu0
    %1906 = vmatprep.mubr.f32.mxu0 0.0
    %v1907 = vand.u32 %v1323, 4294901760
    %1908 = vmatmul.mubr.f32.gmra.mrb[0].mxu0 %v1907
    %v1909 = vpop.f32.mrb[0].mxu0
    %v1910 = vadd.f32 %v1819, %v1909
    %v1911 = vpop.f32.mrb[0].mxu0
    %1912 = vdwg.mxu0
    %1913 = vset.pattern.permute.xlu0 3
    %1914 = vperm.xlu0 %1913, %v26
    %v1915 = vpop.permute.xlu0 %1914
    %1916 = vset.pattern.permute.xlu0 3
    %1917 = vperm.xlu0 %1916, %v27
    %v1918 = vpop.permute.xlu0 %1917
    %1919 = vset.pattern.permute.xlu0 3
    %1920 = vperm.xlu0 %1919, %v28
    %v1921 = vpop.permute.xlu0 %1920
    %1922 = vset.pattern.permute.xlu0 3
    %1923 = vperm.xlu0 %1922, %v29
    %v1924 = vpop.permute.xlu0 %1923
    %vm1925 = vcmp.eq.s32.totalorder %v1915, %v31
    %vm1926 = vcmp.eq.s32.totalorder %v1918, %v31
    %vm1927 = vcmp.eq.s32.totalorder %v1921, %v31
    %vm1928 = vcmp.eq.s32.totalorder %v1924, %v31
    %v1929 = vsel %vm1925, 1, 0
    %v1930 = vsel %vm1926, 1, 0
    %v1931 = vsel %vm1927, 1, 0
    %v1932 = vsel %vm1928, 1, 0
    %v1933 = vcvt.s32.f32 %v1929
    %v1934 = vcvt.s32.f32 %v1930
    %v1935 = vcvt.s32.f32 %v1931
    %v1936 = vcvt.s32.f32 %v1932
    %s1937 = scalar_lea.vmem [#allocation2], 48
    %v1938 = vld [vmem:[%s1937] sm:$0xff]
    %v1939 = vld [vmem:[%s1937 + $0x8] sm:$0xff]
    %v1941 = vsel %vm58, %v1933, 0
    %v1944 = vsel %vm58, %v1934, 0
    %v1947 = vsel %vm58, %v1935, 0
    %v1950 = vsel %vm58, %v1936, 0
    %1952 = vmatprep.subr.mxu0 0.0
    %v1953 = vand.u32 %v1938, 4294901760
    %1954 = vmatpush1.msra.mxu0 %v1953
    %1955 = vmatprep.subr.mxu0 0.0
    %v1956 = vand.u32 %v1939, 4294901760
    %1957 = vmatpush1.msra.mxu0 %v1956
    %1958 = vmatprep.subr.mxu0 0.0
    %1959 = vmatpush1.msra.mxu0 0.0
    %1960 = vmatprep.subr.mxu0 0.0
    %1961 = vmatpush1.msra.mxu0 0.0
    %1962 = vmatprep.subr.mxu0 0.0
    %1963 = vmatpush1.msra.mxu0 0.0
    %1964 = vmatprep.subr.mxu0 0.0
    %1965 = vmatpush1.msra.mxu0 0.0
    %1966 = vmatprep.subr.mxu0 0.0
    %1967 = vmatpush1.msra.mxu0 0.0
    %1968 = vmatprep.subr.mxu0 0.0
    %1969 = vmatpush1.msra.mxu0 0.0
    %1970 = vmatprep.subr.mxu0 0.0
    %1971 = vmatpush1.msra.mxu0 0.0
    %1972 = vmatprep.subr.mxu0 0.0
    %1973 = vmatpush1.msra.mxu0 0.0
    %1974 = vmatprep.subr.mxu0 0.0
    %1975 = vmatpush1.msra.mxu0 0.0
    %1976 = vmatprep.subr.mxu0 0.0
    %1977 = vmatpush1.msra.mxu0 0.0
    %1978 = vmatprep.subr.mxu0 0.0
    %1979 = vmatpush1.msra.mxu0 0.0
    %1980 = vmatprep.subr.mxu0 0.0
    %1981 = vmatpush1.msra.mxu0 0.0
    %1982 = vmatprep.subr.mxu0 0.0
    %1983 = vmatpush1.msra.mxu0 0.0
    %1984 = vmatprep.subr.mxu0 0.0
    %1985 = vmatpush1.msra.mxu0 0.0
    %1986 = vmatprep.subr.mxu0 0.0
    %1987 = vmatpush1.msra.mxu0 0.0
    %1988 = vmatprep.subr.mxu0 0.0
    %1989 = vmatpush1.msra.mxu0 0.0
    %1990 = vmatprep.subr.mxu0 0.0
    %1991 = vmatpush1.msra.mxu0 0.0
    %1992 = vmatprep.subr.mxu0 0.0
    %1993 = vmatpush1.msra.mxu0 0.0
    %1994 = vmatprep.subr.mxu0 0.0
    %1995 = vmatpush1.msra.mxu0 0.0
    %1996 = vmatprep.subr.mxu0 0.0
    %1997 = vmatpush1.msra.mxu0 0.0
    %1998 = vmatprep.subr.mxu0 0.0
    %1999 = vmatpush1.msra.mxu0 0.0
    %2000 = vmatprep.subr.mxu0 0.0
    %2001 = vmatpush1.msra.mxu0 0.0
    %2002 = vmatprep.subr.mxu0 0.0
    %2003 = vmatpush1.msra.mxu0 0.0
    %2004 = vmatprep.subr.mxu0 0.0
    %2005 = vmatpush1.msra.mxu0 0.0
    %2006 = vmatprep.subr.mxu0 0.0
    %2007 = vmatpush1.msra.mxu0 0.0
    %2008 = vmatprep.subr.mxu0 0.0
    %2009 = vmatpush1.msra.mxu0 0.0
    %2010 = vmatprep.subr.mxu0 0.0
    %2011 = vmatpush1.msra.mxu0 0.0
    %2012 = vmatprep.subr.mxu0 0.0
    %2013 = vmatpush1.msra.mxu0 0.0
    %2014 = vmatprep.subr.mxu0 0.0
    %2015 = vmatpush1.msra.mxu0 0.0
    %2016 = vmatprep.subr.mxu0 0.0
    %2017 = vmatpush1.msra.mxu0 0.0
    %2018 = vmatprep.mubr.f32.mxu0 0.0
    %v2019 = vand.u32 %v1941, 4294901760
    %v2020 = vsub.f32 %v1941, %v2019
    %v2021 = vand.u32 %v2020, 4294901760
    %v2022 = vsub.f32 %v2020, %v2021
    %v2023 = vand.u32 %v2022, 4294901760
    %2024 = vmatmul.mubr.f32.gmra.mrb[0].mxu0 %v2023
    %v2025 = vpop.f32.mrb[0].mxu0
    %v2026 = vadd.f32 0.0, %v2025
    %v2027 = vpop.f32.mrb[0].mxu0
    %2028 = vmatprep.mubr.f32.mxu0 0.0
    %v2029 = vand.u32 %v1944, 4294901760
    %v2030 = vsub.f32 %v1944, %v2029
    %v2031 = vand.u32 %v2030, 4294901760
    %v2032 = vsub.f32 %v2030, %v2031
    %v2033 = vand.u32 %v2032, 4294901760
    %2034 = vmatmul.mubr.f32.gmra.mrb[0].mxu0 %v2033
    %v2035 = vpop.f32.mrb[0].mxu0
    %v2036 = vadd.f32 0.0, %v2035
    %v2037 = vpop.f32.mrb[0].mxu0
    %2038 = vmatprep.mubr.f32.mxu0 0.0
    %v2039 = vand.u32 %v1947, 4294901760
    %v2040 = vsub.f32 %v1947, %v2039
    %v2041 = vand.u32 %v2040, 4294901760
    %v2042 = vsub.f32 %v2040, %v2041
    %v2043 = vand.u32 %v2042, 4294901760
    %2044 = vmatmul.mubr.f32.gmra.mrb[0].mxu0 %v2043
    %v2045 = vpop.f32.mrb[0].mxu0
    %v2046 = vadd.f32 0.0, %v2045
    %v2047 = vpop.f32.mrb[0].mxu0
    %2048 = vmatprep.mubr.f32.mxu0 0.0
    %v2049 = vand.u32 %v1950, 4294901760
    %v2050 = vsub.f32 %v1950, %v2049
    %v2051 = vand.u32 %v2050, 4294901760
    %v2052 = vsub.f32 %v2050, %v2051
    %v2053 = vand.u32 %v2052, 4294901760
    %2054 = vmatmul.mubr.f32.gmra.mrb[0].mxu0 %v2053
    %v2055 = vpop.f32.mrb[0].mxu0
    %v2056 = vadd.f32 0.0, %v2055
    %v2057 = vpop.f32.mrb[0].mxu0
    %2058 = vdwg.mxu0
    %2059 = vmatprep.subr.mxu0 0.0
    %v2060 = vand.u32 %v1938, 4294901760
    %v2061 = vsub.f32 %v1938, %v2060
    %v2062 = vand.u32 %v2061, 4294901760
    %v2063 = vsub.f32 %v2061, %v2062
    %v2064 = vand.u32 %v2063, 4294901760
    %2065 = vmatpush1.msra.mxu0 %v2064
    %2066 = vmatprep.subr.mxu0 0.0
    %v2067 = vand.u32 %v1939, 4294901760
    %v2068 = vsub.f32 %v1939, %v2067
    %v2069 = vand.u32 %v2068, 4294901760
    %v2070 = vsub.f32 %v2068, %v2069
    %v2071 = vand.u32 %v2070, 4294901760
    %2072 = vmatpush1.msra.mxu0 %v2071
    %2073 = vmatprep.subr.mxu0 0.0
    %2074 = vmatpush1.msra.mxu0 0.0
    %2075 = vmatprep.subr.mxu0 0.0
    %2076 = vmatpush1.msra.mxu0 0.0
    %2077 = vmatprep.subr.mxu0 0.0
    %2078 = vmatpush1.msra.mxu0 0.0
    %2079 = vmatprep.subr.mxu0 0.0
    %2080 = vmatpush1.msra.mxu0 0.0
    %2081 = vmatprep.subr.mxu0 0.0
    %2082 = vmatpush1.msra.mxu0 0.0
    %2083 = vmatprep.subr.mxu0 0.0
    %2084 = vmatpush1.msra.mxu0 0.0
    %2085 = vmatprep.subr.mxu0 0.0
    %2086 = vmatpush1.msra.mxu0 0.0
    %2087 = vmatprep.subr.mxu0 0.0
    %2088 = vmatpush1.msra.mxu0 0.0
    %2089 = vmatprep.subr.mxu0 0.0
    %2090 = vmatpush1.msra.mxu0 0.0
    %2091 = vmatprep.subr.mxu0 0.0
    %2092 = vmatpush1.msra.mxu0 0.0
    %2093 = vmatprep.subr.mxu0 0.0
    %2094 = vmatpush1.msra.mxu0 0.0
    %2095 = vmatprep.subr.mxu0 0.0
    %2096 = vmatpush1.msra.mxu0 0.0
    %2097 = vmatprep.subr.mxu0 0.0
    %2098 = vmatpush1.msra.mxu0 0.0
    %2099 = vmatprep.subr.mxu0 0.0
    %2100 = vmatpush1.msra.mxu0 0.0
    %2101 = vmatprep.subr.mxu0 0.0
    %2102 = vmatpush1.msra.mxu0 0.0
    %2103 = vmatprep.subr.mxu0 0.0
    %2104 = vmatpush1.msra.mxu0 0.0
    %2105 = vmatprep.subr.mxu0 0.0
    %2106 = vmatpush1.msra.mxu0 0.0
    %2107 = vmatprep.subr.mxu0 0.0
    %2108 = vmatpush1.msra.mxu0 0.0
    %2109 = vmatprep.subr.mxu0 0.0
    %2110 = vmatpush1.msra.mxu0 0.0
    %2111 = vmatprep.subr.mxu0 0.0
    %2112 = vmatpush1.msra.mxu0 0.0
    %2113 = vmatprep.subr.mxu0 0.0
    %2114 = vmatpush1.msra.mxu0 0.0
    %2115 = vmatprep.subr.mxu0 0.0
    %2116 = vmatpush1.msra.mxu0 0.0
    %2117 = vmatprep.subr.mxu0 0.0
    %2118 = vmatpush1.msra.mxu0 0.0
    %2119 = vmatprep.subr.mxu0 0.0
    %2120 = vmatpush1.msra.mxu0 0.0
    %2121 = vmatprep.subr.mxu0 0.0
    %2122 = vmatpush1.msra.mxu0 0.0
    %2123 = vmatprep.subr.mxu0 0.0
    %2124 = vmatpush1.msra.mxu0 0.0
    %2125 = vmatprep.subr.mxu0 0.0
    %2126 = vmatpush1.msra.mxu0 0.0
    %2127 = vmatprep.subr.mxu0 0.0
    %2128 = vmatpush1.msra.mxu0 0.0
    %2129 = vmatprep.subr.mxu0 0.0
    %2130 = vmatpush1.msra.mxu0 0.0
    %2131 = vmatprep.subr.mxu0 0.0
    %2132 = vmatpush1.msra.mxu0 0.0
    %2133 = vmatprep.mubr.f32.mxu0 0.0
    %v2134 = vand.u32 %v1941, 4294901760
    %2135 = vmatmul.mubr.f32.gmra.mrb[0].mxu0 %v2134
    %v2136 = vpop.f32.mrb[0].mxu0
    %v2137 = vadd.f32 %v2026, %v2136
    %v2138 = vpop.f32.mrb[0].mxu0
    %2139 = vmatprep.mubr.f32.mxu0 0.0
    %v2140 = vand.u32 %v1944, 4294901760
    %2141 = vmatmul.mubr.f32.gmra.mrb[0].mxu0 %v2140
    %v2142 = vpop.f32.mrb[0].mxu0
    %v2143 = vadd.f32 %v2036, %v2142
    %v2144 = vpop.f32.mrb[0].mxu0
    %2145 = vmatprep.mubr.f32.mxu0 0.0
    %v2146 = vand.u32 %v1947, 4294901760
    %2147 = vmatmul.mubr.f32.gmra.mrb[0].mxu0 %v2146
    %v2148 = vpop.f32.mrb[0].mxu0
    %v2149 = vadd.f32 %v2046, %v2148
    %v2150 = vpop.f32.mrb[0].mxu0
    %2151 = vmatprep.mubr.f32.mxu0 0.0
    %v2152 = vand.u32 %v1950, 4294901760
    %2153 = vmatmul.mubr.f32.gmra.mrb[0].mxu0 %v2152
    %v2154 = vpop.f32.mrb[0].mxu0
    %v2155 = vadd.f32 %v2056, %v2154
    %v2156 = vpop.f32.mrb[0].mxu0
    %2157 = vdwg.mxu0
    %2158 = vmatprep.subr.mxu0 0.0
    %v2159 = vand.u32 %v1938, 4294901760
    %v2160 = vsub.f32 %v1938, %v2159
    %2161 = vmatpush1.msra.mxu0 %v2160
    %2162 = vmatprep.subr.mxu0 0.0
    %v2163 = vand.u32 %v1939, 4294901760
    %v2164 = vsub.f32 %v1939, %v2163
    %2165 = vmatpush1.msra.mxu0 %v2164
    %2166 = vmatprep.subr.mxu0 0.0
    %2167 = vmatpush1.msra.mxu0 0.0
    %2168 = vmatprep.subr.mxu0 0.0
    %2169 = vmatpush1.msra.mxu0 0.0
    %2170 = vmatprep.subr.mxu0 0.0
    %2171 = vmatpush1.msra.mxu0 0.0
    %2172 = vmatprep.subr.mxu0 0.0
    %2173 = vmatpush1.msra.mxu0 0.0
    %2174 = vmatprep.subr.mxu0 0.0
    %2175 = vmatpush1.msra.mxu0 0.0
    %2176 = vmatprep.subr.mxu0 0.0
    %2177 = vmatpush1.msra.mxu0 0.0
    %2178 = vmatprep.subr.mxu0 0.0
    %2179 = vmatpush1.msra.mxu0 0.0
    %2180 = vmatprep.subr.mxu0 0.0
    %2181 = vmatpush1.msra.mxu0 0.0
    %2182 = vmatprep.subr.mxu0 0.0
    %2183 = vmatpush1.msra.mxu0 0.0
    %2184 = vmatprep.subr.mxu0 0.0
    %2185 = vmatpush1.msra.mxu0 0.0
    %2186 = vmatprep.subr.mxu0 0.0
    %2187 = vmatpush1.msra.mxu0 0.0
    %2188 = vmatprep.subr.mxu0 0.0
    %2189 = vmatpush1.msra.mxu0 0.0
    %2190 = vmatprep.subr.mxu0 0.0
    %2191 = vmatpush1.msra.mxu0 0.0
    %2192 = vmatprep.subr.mxu0 0.0
    %2193 = vmatpush1.msra.mxu0 0.0
    %2194 = vmatprep.subr.mxu0 0.0
    %2195 = vmatpush1.msra.mxu0 0.0
    %2196 = vmatprep.subr.mxu0 0.0
    %2197 = vmatpush1.msra.mxu0 0.0
    %2198 = vmatprep.subr.mxu0 0.0
    %2199 = vmatpush1.msra.mxu0 0.0
    %2200 = vmatprep.subr.mxu0 0.0
    %2201 = vmatpush1.msra.mxu0 0.0
    %2202 = vmatprep.subr.mxu0 0.0
    %2203 = vmatpush1.msra.mxu0 0.0
    %2204 = vmatprep.subr.mxu0 0.0
    %2205 = vmatpush1.msra.mxu0 0.0
    %2206 = vmatprep.subr.mxu0 0.0
    %2207 = vmatpush1.msra.mxu0 0.0
    %2208 = vmatprep.subr.mxu0 0.0
    %2209 = vmatpush1.msra.mxu0 0.0
    %2210 = vmatprep.subr.mxu0 0.0
    %2211 = vmatpush1.msra.mxu0 0.0
    %2212 = vmatprep.subr.mxu0 0.0
    %2213 = vmatpush1.msra.mxu0 0.0
    %2214 = vmatprep.subr.mxu0 0.0
    %2215 = vmatpush1.msra.mxu0 0.0
    %2216 = vmatprep.subr.mxu0 0.0
    %2217 = vmatpush1.msra.mxu0 0.0
    %2218 = vmatprep.subr.mxu0 0.0
    %2219 = vmatpush1.msra.mxu0 0.0
    %2220 = vmatprep.subr.mxu0 0.0
    %2221 = vmatpush1.msra.mxu0 0.0
    %2222 = vmatprep.subr.mxu0 0.0
    %2223 = vmatpush1.msra.mxu0 0.0
    %2224 = vmatprep.subr.mxu0 0.0
    %2225 = vmatpush1.msra.mxu0 0.0
    %2226 = vmatprep.mubr.f32.mxu0 0.0
    %v2227 = vand.u32 %v1941, 4294901760
    %v2228 = vsub.f32 %v1941, %v2227
    %2229 = vmatmul.mubr.f32.gmra.mrb[0].mxu0 %v2228
    %v2230 = vpop.f32.mrb[0].mxu0
    %v2231 = vadd.f32 %v2137, %v2230
    %v2232 = vpop.f32.mrb[0].mxu0
    %2233 = vmatprep.mubr.f32.mxu0 0.0
    %v2234 = vand.u32 %v1944, 4294901760
    %v2235 = vsub.f32 %v1944, %v2234
    %2236 = vmatmul.mubr.f32.gmra.mrb[0].mxu0 %v2235
    %v2237 = vpop.f32.mrb[0].mxu0
    %v2238 = vadd.f32 %v2143, %v2237
    %v2239 = vpop.f32.mrb[0].mxu0
    %2240 = vmatprep.mubr.f32.mxu0 0.0
    %v2241 = vand.u32 %v1947, 4294901760
    %v2242 = vsub.f32 %v1947, %v2241
    %2243 = vmatmul.mubr.f32.gmra.mrb[0].mxu0 %v2242
    %v2244 = vpop.f32.mrb[0].mxu0
    %v2245 = vadd.f32 %v2149, %v2244
    %v2246 = vpop.f32.mrb[0].mxu0
    %2247 = vmatprep.mubr.f32.mxu0 0.0
    %v2248 = vand.u32 %v1950, 4294901760
    %v2249 = vsub.f32 %v1950, %v2248
    %2250 = vmatmul.mubr.f32.gmra.mrb[0].mxu0 %v2249
    %v2251 = vpop.f32.mrb[0].mxu0
    %v2252 = vadd.f32 %v2155, %v2251
    %v2253 = vpop.f32.mrb[0].mxu0
    %2254 = vdwg.mxu0
    %2255 = vmatprep.subr.mxu0 0.0
    %v2256 = vand.u32 %v1938, 4294901760
    %2257 = vmatpush1.msra.mxu0 %v2256
    %2258 = vmatprep.subr.mxu0 0.0
    %v2259 = vand.u32 %v1939, 4294901760
    %2260 = vmatpush1.msra.mxu0 %v2259
    %2261 = vmatprep.subr.mxu0 0.0
    %2262 = vmatpush1.msra.mxu0 0.0
    %2263 = vmatprep.subr.mxu0 0.0
    %2264 = vmatpush1.msra.mxu0 0.0
    %2265 = vmatprep.subr.mxu0 0.0
    %2266 = vmatpush1.msra.mxu0 0.0
    %2267 = vmatprep.subr.mxu0 0.0
    %2268 = vmatpush1.msra.mxu0 0.0
    %2269 = vmatprep.subr.mxu0 0.0
    %2270 = vmatpush1.msra.mxu0 0.0
    %2271 = vmatprep.subr.mxu0 0.0
    %2272 = vmatpush1.msra.mxu0 0.0
    %2273 = vmatprep.subr.mxu0 0.0
    %2274 = vmatpush1.msra.mxu0 0.0
    %2275 = vmatprep.subr.mxu0 0.0
    %2276 = vmatpush1.msra.mxu0 0.0
    %2277 = vmatprep.subr.mxu0 0.0
    %2278 = vmatpush1.msra.mxu0 0.0
    %2279 = vmatprep.subr.mxu0 0.0
    %2280 = vmatpush1.msra.mxu0 0.0
    %2281 = vmatprep.subr.mxu0 0.0
    %2282 = vmatpush1.msra.mxu0 0.0
    %2283 = vmatprep.subr.mxu0 0.0
    %2284 = vmatpush1.msra.mxu0 0.0
    %2285 = vmatprep.subr.mxu0 0.0
    %2286 = vmatpush1.msra.mxu0 0.0
    %2287 = vmatprep.subr.mxu0 0.0
    %2288 = vmatpush1.msra.mxu0 0.0
    %2289 = vmatprep.subr.mxu0 0.0
    %2290 = vmatpush1.msra.mxu0 0.0
    %2291 = vmatprep.subr.mxu0 0.0
    %2292 = vmatpush1.msra.mxu0 0.0
    %2293 = vmatprep.subr.mxu0 0.0
    %2294 = vmatpush1.msra.mxu0 0.0
    %2295 = vmatprep.subr.mxu0 0.0
    %2296 = vmatpush1.msra.mxu0 0.0
    %2297 = vmatprep.subr.mxu0 0.0
    %2298 = vmatpush1.msra.mxu0 0.0
    %2299 = vmatprep.subr.mxu0 0.0
    %2300 = vmatpush1.msra.mxu0 0.0
    %2301 = vmatprep.subr.mxu0 0.0
    %2302 = vmatpush1.msra.mxu0 0.0
    %2303 = vmatprep.subr.mxu0 0.0
    %2304 = vmatpush1.msra.mxu0 0.0
    %2305 = vmatprep.subr.mxu0 0.0
    %2306 = vmatpush1.msra.mxu0 0.0
    %2307 = vmatprep.subr.mxu0 0.0
    %2308 = vmatpush1.msra.mxu0 0.0
    %2309 = vmatprep.subr.mxu0 0.0
    %2310 = vmatpush1.msra.mxu0 0.0
    %2311 = vmatprep.subr.mxu0 0.0
    %2312 = vmatpush1.msra.mxu0 0.0
    %2313 = vmatprep.subr.mxu0 0.0
    %2314 = vmatpush1.msra.mxu0 0.0
    %2315 = vmatprep.subr.mxu0 0.0
    %2316 = vmatpush1.msra.mxu0 0.0
    %2317 = vmatprep.subr.mxu0 0.0
    %2318 = vmatpush1.msra.mxu0 0.0
    %2319 = vmatprep.subr.mxu0 0.0
    %2320 = vmatpush1.msra.mxu0 0.0
    %2321 = vmatprep.mubr.f32.mxu0 0.0
    %v2322 = vand.u32 %v1941, 4294901760
    %v2323 = vsub.f32 %v1941, %v2322
    %v2324 = vand.u32 %v2323, 4294901760
    %2325 = vmatmul.mubr.f32.gmra.mrb[0].mxu0 %v2324
    %v2326 = vpop.f32.mrb[0].mxu0
    %v2327 = vadd.f32 %v2231, %v2326
    %v2328 = vpop.f32.mrb[0].mxu0
    %2329 = vmatprep.mubr.f32.mxu0 0.0
    %v2330 = vand.u32 %v1944, 4294901760
    %v2331 = vsub.f32 %v1944, %v2330
    %v2332 = vand.u32 %v2331, 4294901760
    %2333 = vmatmul.mubr.f32.gmra.mrb[0].mxu0 %v2332
    %v2334 = vpop.f32.mrb[0].mxu0
    %v2335 = vadd.f32 %v2238, %v2334
    %v2336 = vpop.f32.mrb[0].mxu0
    %2337 = vmatprep.mubr.f32.mxu0 0.0
    %v2338 = vand.u32 %v1947, 4294901760
    %v2339 = vsub.f32 %v1947, %v2338
    %v2340 = vand.u32 %v2339, 4294901760
    %2341 = vmatmul.mubr.f32.gmra.mrb[0].mxu0 %v2340
    %v2342 = vpop.f32.mrb[0].mxu0
    %v2343 = vadd.f32 %v2245, %v2342
    %v2344 = vpop.f32.mrb[0].mxu0
    %2345 = vmatprep.mubr.f32.mxu0 0.0
    %v2346 = vand.u32 %v1950, 4294901760
    %v2347 = vsub.f32 %v1950, %v2346
    %v2348 = vand.u32 %v2347, 4294901760
    %2349 = vmatmul.mubr.f32.gmra.mrb[0].mxu0 %v2348
    %v2350 = vpop.f32.mrb[0].mxu0
    %v2351 = vadd.f32 %v2252, %v2350
    %v2352 = vpop.f32.mrb[0].mxu0
    %2353 = vdwg.mxu0
    %2354 = vmatprep.subr.mxu0 0.0
    %v2355 = vand.u32 %v1938, 4294901760
    %v2356 = vsub.f32 %v1938, %v2355
    %v2357 = vand.u32 %v2356, 4294901760
    %2358 = vmatpush1.msra.mxu0 %v2357
    %2359 = vmatprep.subr.mxu0 0.0
    %v2360 = vand.u32 %v1939, 4294901760
    %v2361 = vsub.f32 %v1939, %v2360
    %v2362 = vand.u32 %v2361, 4294901760
    %2363 = vmatpush1.msra.mxu0 %v2362
    %2364 = vmatprep.subr.mxu0 0.0
    %2365 = vmatpush1.msra.mxu0 0.0
    %2366 = vmatprep.subr.mxu0 0.0
    %2367 = vmatpush1.msra.mxu0 0.0
    %2368 = vmatprep.subr.mxu0 0.0
    %2369 = vmatpush1.msra.mxu0 0.0
    %2370 = vmatprep.subr.mxu0 0.0
    %2371 = vmatpush1.msra.mxu0 0.0
    %2372 = vmatprep.subr.mxu0 0.0
    %2373 = vmatpush1.msra.mxu0 0.0
    %2374 = vmatprep.subr.mxu0 0.0
    %2375 = vmatpush1.msra.mxu0 0.0
    %2376 = vmatprep.subr.mxu0 0.0
    %2377 = vmatpush1.msra.mxu0 0.0
    %2378 = vmatprep.subr.mxu0 0.0
    %2379 = vmatpush1.msra.mxu0 0.0
    %2380 = vmatprep.subr.mxu0 0.0
    %2381 = vmatpush1.msra.mxu0 0.0
    %2382 = vmatprep.subr.mxu0 0.0
    %2383 = vmatpush1.msra.mxu0 0.0
    %2384 = vmatprep.subr.mxu0 0.0
    %2385 = vmatpush1.msra.mxu0 0.0
    %2386 = vmatprep.subr.mxu0 0.0
    %2387 = vmatpush1.msra.mxu0 0.0
    %2388 = vmatprep.subr.mxu0 0.0
    %2389 = vmatpush1.msra.mxu0 0.0
    %2390 = vmatprep.subr.mxu0 0.0
    %2391 = vmatpush1.msra.mxu0 0.0
    %2392 = vmatprep.subr.mxu0 0.0
    %2393 = vmatpush1.msra.mxu0 0.0
    %2394 = vmatprep.subr.mxu0 0.0
    %2395 = vmatpush1.msra.mxu0 0.0
    %2396 = vmatprep.subr.mxu0 0.0
    %2397 = vmatpush1.msra.mxu0 0.0
    %2398 = vmatprep.subr.mxu0 0.0
    %2399 = vmatpush1.msra.mxu0 0.0
    %2400 = vmatprep.subr.mxu0 0.0
    %2401 = vmatpush1.msra.mxu0 0.0
    %2402 = vmatprep.subr.mxu0 0.0
    %2403 = vmatpush1.msra.mxu0 0.0
    %2404 = vmatprep.subr.mxu0 0.0
    %2405 = vmatpush1.msra.mxu0 0.0
    %2406 = vmatprep.subr.mxu0 0.0
    %2407 = vmatpush1.msra.mxu0 0.0
    %2408 = vmatprep.subr.mxu0 0.0
    %2409 = vmatpush1.msra.mxu0 0.0
    %2410 = vmatprep.subr.mxu0 0.0
    %2411 = vmatpush1.msra.mxu0 0.0
    %2412 = vmatprep.subr.mxu0 0.0
    %2413 = vmatpush1.msra.mxu0 0.0
    %2414 = vmatprep.subr.mxu0 0.0
    %2415 = vmatpush1.msra.mxu0 0.0
    %2416 = vmatprep.subr.mxu0 0.0
    %2417 = vmatpush1.msra.mxu0 0.0
    %2418 = vmatprep.subr.mxu0 0.0
    %2419 = vmatpush1.msra.mxu0 0.0
    %2420 = vmatprep.subr.mxu0 0.0
    %2421 = vmatpush1.msra.mxu0 0.0
    %2422 = vmatprep.subr.mxu0 0.0
    %2423 = vmatpush1.msra.mxu0 0.0
    %2424 = vmatprep.mubr.f32.mxu0 0.0
    %v2425 = vand.u32 %v1941, 4294901760
    %2426 = vmatmul.mubr.f32.gmra.mrb[0].mxu0 %v2425
    %v2427 = vpop.f32.mrb[0].mxu0
    %v2428 = vadd.f32 %v2327, %v2427
    %v2429 = vpop.f32.mrb[0].mxu0
    %2430 = vmatprep.mubr.f32.mxu0 0.0
    %v2431 = vand.u32 %v1944, 4294901760
    %2432 = vmatmul.mubr.f32.gmra.mrb[0].mxu0 %v2431
    %v2433 = vpop.f32.mrb[0].mxu0
    %v2434 = vadd.f32 %v2335, %v2433
    %v2435 = vpop.f32.mrb[0].mxu0
    %2436 = vmatprep.mubr.f32.mxu0 0.0
    %v2437 = vand.u32 %v1947, 4294901760
    %2438 = vmatmul.mubr.f32.gmra.mrb[0].mxu0 %v2437
    %v2439 = vpop.f32.mrb[0].mxu0
    %v2440 = vadd.f32 %v2343, %v2439
    %v2441 = vpop.f32.mrb[0].mxu0
    %2442 = vmatprep.mubr.f32.mxu0 0.0
    %v2443 = vand.u32 %v1950, 4294901760
    %2444 = vmatmul.mubr.f32.gmra.mrb[0].mxu0 %v2443
    %v2445 = vpop.f32.mrb[0].mxu0
    %v2446 = vadd.f32 %v2351, %v2445
    %v2447 = vpop.f32.mrb[0].mxu0
    %2448 = vdwg.mxu0
    %2449 = vmatprep.subr.mxu0 0.0
    %v2450 = vand.u32 %v1938, 4294901760
    %2451 = vmatpush1.msra.mxu0 %v2450
    %2452 = vmatprep.subr.mxu0 0.0
    %v2453 = vand.u32 %v1939, 4294901760
    %2454 = vmatpush1.msra.mxu0 %v2453
    %2455 = vmatprep.subr.mxu0 0.0
    %2456 = vmatpush1.msra.mxu0 0.0
    %2457 = vmatprep.subr.mxu0 0.0
    %2458 = vmatpush1.msra.mxu0 0.0
    %2459 = vmatprep.subr.mxu0 0.0
    %2460 = vmatpush1.msra.mxu0 0.0
    %2461 = vmatprep.subr.mxu0 0.0
    %2462 = vmatpush1.msra.mxu0 0.0
    %2463 = vmatprep.subr.mxu0 0.0
    %2464 = vmatpush1.msra.mxu0 0.0
    %2465 = vmatprep.subr.mxu0 0.0
    %2466 = vmatpush1.msra.mxu0 0.0
    %2467 = vmatprep.subr.mxu0 0.0
    %2468 = vmatpush1.msra.mxu0 0.0
    %2469 = vmatprep.subr.mxu0 0.0
    %2470 = vmatpush1.msra.mxu0 0.0
    %2471 = vmatprep.subr.mxu0 0.0
    %2472 = vmatpush1.msra.mxu0 0.0
    %2473 = vmatprep.subr.mxu0 0.0
    %2474 = vmatpush1.msra.mxu0 0.0
    %2475 = vmatprep.subr.mxu0 0.0
    %2476 = vmatpush1.msra.mxu0 0.0
    %2477 = vmatprep.subr.mxu0 0.0
    %2478 = vmatpush1.msra.mxu0 0.0
    %2479 = vmatprep.subr.mxu0 0.0
    %2480 = vmatpush1.msra.mxu0 0.0
    %2481 = vmatprep.subr.mxu0 0.0
    %2482 = vmatpush1.msra.mxu0 0.0
    %2483 = vmatprep.subr.mxu0 0.0
    %2484 = vmatpush1.msra.mxu0 0.0
    %2485 = vmatprep.subr.mxu0 0.0
    %2486 = vmatpush1.msra.mxu0 0.0
    %2487 = vmatprep.subr.mxu0 0.0
    %2488 = vmatpush1.msra.mxu0 0.0
    %2489 = vmatprep.subr.mxu0 0.0
    %2490 = vmatpush1.msra.mxu0 0.0
    %2491 = vmatprep.subr.mxu0 0.0
    %2492 = vmatpush1.msra.mxu0 0.0
    %2493 = vmatprep.subr.mxu0 0.0
    %2494 = vmatpush1.msra.mxu0 0.0
    %2495 = vmatprep.subr.mxu0 0.0
    %2496 = vmatpush1.msra.mxu0 0.0
    %2497 = vmatprep.subr.mxu0 0.0
    %2498 = vmatpush1.msra.mxu0 0.0
    %2499 = vmatprep.subr.mxu0 0.0
    %2500 = vmatpush1.msra.mxu0 0.0
    %2501 = vmatprep.subr.mxu0 0.0
    %2502 = vmatpush1.msra.mxu0 0.0
    %2503 = vmatprep.subr.mxu0 0.0
    %2504 = vmatpush1.msra.mxu0 0.0
    %2505 = vmatprep.subr.mxu0 0.0
    %2506 = vmatpush1.msra.mxu0 0.0
    %2507 = vmatprep.subr.mxu0 0.0
    %2508 = vmatpush1.msra.mxu0 0.0
    %2509 = vmatprep.subr.mxu0 0.0
    %2510 = vmatpush1.msra.mxu0 0.0
    %2511 = vmatprep.subr.mxu0 0.0
    %2512 = vmatpush1.msra.mxu0 0.0
    %2513 = vmatprep.subr.mxu0 0.0
    %2514 = vmatpush1.msra.mxu0 0.0
    %2515 = vmatprep.mubr.f32.mxu0 0.0
    %v2516 = vand.u32 %v1941, 4294901760
    %2517 = vmatmul.mubr.f32.gmra.mrb[0].mxu0 %v2516
    %v2518 = vpop.f32.mrb[0].mxu0
    %v2519 = vadd.f32 %v2428, %v2518
    %v2520 = vpop.f32.mrb[0].mxu0
    %2521 = vmatprep.mubr.f32.mxu0 0.0
    %v2522 = vand.u32 %v1944, 4294901760
    %2523 = vmatmul.mubr.f32.gmra.mrb[0].mxu0 %v2522
    %v2524 = vpop.f32.mrb[0].mxu0
    %v2525 = vadd.f32 %v2434, %v2524
    %v2526 = vpop.f32.mrb[0].mxu0
    %2527 = vmatprep.mubr.f32.mxu0 0.0
    %v2528 = vand.u32 %v1947, 4294901760
    %2529 = vmatmul.mubr.f32.gmra.mrb[0].mxu0 %v2528
    %v2530 = vpop.f32.mrb[0].mxu0
    %v2531 = vadd.f32 %v2440, %v2530
    %v2532 = vpop.f32.mrb[0].mxu0
    %2533 = vmatprep.mubr.f32.mxu0 0.0
    %v2534 = vand.u32 %v1950, 4294901760
    %2535 = vmatmul.mubr.f32.gmra.mrb[0].mxu0 %v2534
    %v2536 = vpop.f32.mrb[0].mxu0
    %v2537 = vadd.f32 %v2446, %v2536
    %v2538 = vpop.f32.mrb[0].mxu0
    %2539 = vdwg.mxu0
    %2540 = vset.pattern.permute.xlu0 4
    %2541 = vperm.xlu0 %2540, %v26
    %v2542 = vpop.permute.xlu0 %2541
    %2543 = vset.pattern.permute.xlu0 4
    %2544 = vperm.xlu0 %2543, %v27
    %v2545 = vpop.permute.xlu0 %2544
    %2546 = vset.pattern.permute.xlu0 4
    %2547 = vperm.xlu0 %2546, %v28
    %v2548 = vpop.permute.xlu0 %2547
    %2549 = vset.pattern.permute.xlu0 4
    %2550 = vperm.xlu0 %2549, %v29
    %v2551 = vpop.permute.xlu0 %2550
    %vm2552 = vcmp.eq.s32.totalorder %v2542, %v31
    %vm2553 = vcmp.eq.s32.totalorder %v2545, %v31
    %vm2554 = vcmp.eq.s32.totalorder %v2548, %v31
    %vm2555 = vcmp.eq.s32.totalorder %v2551, %v31
    %v2556 = vsel %vm2552, 1, 0
    %v2557 = vsel %vm2553, 1, 0
    %v2558 = vsel %vm2554, 1, 0
    %v2559 = vsel %vm2555, 1, 0
    %v2560 = vcvt.s32.f32 %v2556
    %v2561 = vcvt.s32.f32 %v2557
    %v2562 = vcvt.s32.f32 %v2558
    %v2563 = vcvt.s32.f32 %v2559
    %s2564 = scalar_lea.vmem [#allocation2], 64
    %v2565 = vld [vmem:[%s2564] sm:$0xff]
    %v2566 = vld [vmem:[%s2564 + $0x8] sm:$0xff]
    %v2568 = vsel %vm58, %v2560, 0
    %v2571 = vsel %vm58, %v2561, 0
    %v2574 = vsel %vm58, %v2562, 0
    %v2577 = vsel %vm58, %v2563, 0
    %2579 = vmatprep.subr.mxu0 0.0
    %v2580 = vand.u32 %v2565, 4294901760
    %2581 = vmatpush1.msra.mxu0 %v2580
    %2582 = vmatprep.subr.mxu0 0.0
    %v2583 = vand.u32 %v2566, 4294901760
    %2584 = vmatpush1.msra.mxu0 %v2583
    %2585 = vmatprep.subr.mxu0 0.0
    %2586 = vmatpush1.msra.mxu0 0.0
    %2587 = vmatprep.subr.mxu0 0.0
    %2588 = vmatpush1.msra.mxu0 0.0
    %2589 = vmatprep.subr.mxu0 0.0
    %2590 = vmatpush1.msra.mxu0 0.0
    %2591 = vmatprep.subr.mxu0 0.0
    %2592 = vmatpush1.msra.mxu0 0.0
    %2593 = vmatprep.subr.mxu0 0.0
    %2594 = vmatpush1.msra.mxu0 0.0
    %2595 = vmatprep.subr.mxu0 0.0
    %2596 = vmatpush1.msra.mxu0 0.0
    %2597 = vmatprep.subr.mxu0 0.0
    %2598 = vmatpush1.msra.mxu0 0.0
    %2599 = vmatprep.subr.mxu0 0.0
    %2600 = vmatpush1.msra.mxu0 0.0
    %2601 = vmatprep.subr.mxu0 0.0
    %2602 = vmatpush1.msra.mxu0 0.0
    %2603 = vmatprep.subr.mxu0 0.0
    %2604 = vmatpush1.msra.mxu0 0.0
    %2605 = vmatprep.subr.mxu0 0.0
    %2606 = vmatpush1.msra.mxu0 0.0
    %2607 = vmatprep.subr.mxu0 0.0
    %2608 = vmatpush1.msra.mxu0 0.0
    %2609 = vmatprep.subr.mxu0 0.0
    %2610 = vmatpush1.msra.mxu0 0.0
    %2611 = vmatprep.subr.mxu0 0.0
    %2612 = vmatpush1.msra.mxu0 0.0
    %2613 = vmatprep.subr.mxu0 0.0
    %2614 = vmatpush1.msra.mxu0 0.0
    %2615 = vmatprep.subr.mxu0 0.0
    %2616 = vmatpush1.msra.mxu0 0.0
    %2617 = vmatprep.subr.mxu0 0.0
    %2618 = vmatpush1.msra.mxu0 0.0
    %2619 = vmatprep.subr.mxu0 0.0
    %2620 = vmatpush1.msra.mxu0 0.0
    %2621 = vmatprep.subr.mxu0 0.0
    %2622 = vmatpush1.msra.mxu0 0.0
    %2623 = vmatprep.subr.mxu0 0.0
    %2624 = vmatpush1.msra.mxu0 0.0
    %2625 = vmatprep.subr.mxu0 0.0
    %2626 = vmatpush1.msra.mxu0 0.0
    %2627 = vmatprep.subr.mxu0 0.0
    %2628 = vmatpush1.msra.mxu0 0.0
    %2629 = vmatprep.subr.mxu0 0.0
    %2630 = vmatpush1.msra.mxu0 0.0
    %2631 = vmatprep.subr.mxu0 0.0
    %2632 = vmatpush1.msra.mxu0 0.0
    %2633 = vmatprep.subr.mxu0 0.0
    %2634 = vmatpush1.msra.mxu0 0.0
    %2635 = vmatprep.subr.mxu0 0.0
    %2636 = vmatpush1.msra.mxu0 0.0
    %2637 = vmatprep.subr.mxu0 0.0
    %2638 = vmatpush1.msra.mxu0 0.0
    %2639 = vmatprep.subr.mxu0 0.0
    %2640 = vmatpush1.msra.mxu0 0.0
    %2641 = vmatprep.subr.mxu0 0.0
    %2642 = vmatpush1.msra.mxu0 0.0
    %2643 = vmatprep.subr.mxu0 0.0
    %2644 = vmatpush1.msra.mxu0 0.0
    %2645 = vmatprep.mubr.f32.mxu0 0.0
    %v2646 = vand.u32 %v2568, 4294901760
    %v2647 = vsub.f32 %v2568, %v2646
    %v2648 = vand.u32 %v2647, 4294901760
    %v2649 = vsub.f32 %v2647, %v2648
    %v2650 = vand.u32 %v2649, 4294901760
    %2651 = vmatmul.mubr.f32.gmra.mrb[0].mxu0 %v2650
    %v2652 = vpop.f32.mrb[0].mxu0
    %v2653 = vadd.f32 0.0, %v2652
    %v2654 = vpop.f32.mrb[0].mxu0
    %2655 = vmatprep.mubr.f32.mxu0 0.0
    %v2656 = vand.u32 %v2571, 4294901760
    %v2657 = vsub.f32 %v2571, %v2656
    %v2658 = vand.u32 %v2657, 4294901760
    %v2659 = vsub.f32 %v2657, %v2658
    %v2660 = vand.u32 %v2659, 4294901760
    %2661 = vmatmul.mubr.f32.gmra.mrb[0].mxu0 %v2660
    %v2662 = vpop.f32.mrb[0].mxu0
    %v2663 = vadd.f32 0.0, %v2662
    %v2664 = vpop.f32.mrb[0].mxu0
    %2665 = vmatprep.mubr.f32.mxu0 0.0
    %v2666 = vand.u32 %v2574, 4294901760
    %v2667 = vsub.f32 %v2574, %v2666
    %v2668 = vand.u32 %v2667, 4294901760
    %v2669 = vsub.f32 %v2667, %v2668
    %v2670 = vand.u32 %v2669, 4294901760
    %2671 = vmatmul.mubr.f32.gmra.mrb[0].mxu0 %v2670
    %v2672 = vpop.f32.mrb[0].mxu0
    %v2673 = vadd.f32 0.0, %v2672
    %v2674 = vpop.f32.mrb[0].mxu0
    %2675 = vmatprep.mubr.f32.mxu0 0.0
    %v2676 = vand.u32 %v2577, 4294901760
    %v2677 = vsub.f32 %v2577, %v2676
    %v2678 = vand.u32 %v2677, 4294901760
    %v2679 = vsub.f32 %v2677, %v2678
    %v2680 = vand.u32 %v2679, 4294901760
    %2681 = vmatmul.mubr.f32.gmra.mrb[0].mxu0 %v2680
    %v2682 = vpop.f32.mrb[0].mxu0
    %v2683 = vadd.f32 0.0, %v2682
    %v2684 = vpop.f32.mrb[0].mxu0
    %2685 = vdwg.mxu0
    %2686 = vmatprep.subr.mxu0 0.0
    %v2687 = vand.u32 %v2565, 4294901760
    %v2688 = vsub.f32 %v2565, %v2687
    %v2689 = vand.u32 %v2688, 4294901760
    %v2690 = vsub.f32 %v2688, %v2689
    %v2691 = vand.u32 %v2690, 4294901760
    %2692 = vmatpush1.msra.mxu0 %v2691
    %2693 = vmatprep.subr.mxu0 0.0
    %v2694 = vand.u32 %v2566, 4294901760
    %v2695 = vsub.f32 %v2566, %v2694
    %v2696 = vand.u32 %v2695, 4294901760
    %v2697 = vsub.f32 %v2695, %v2696
    %v2698 = vand.u32 %v2697, 4294901760
    %2699 = vmatpush1.msra.mxu0 %v2698
    %2700 = vmatprep.subr.mxu0 0.0
    %2701 = vmatpush1.msra.mxu0 0.0
    %2702 = vmatprep.subr.mxu0 0.0
    %2703 = vmatpush1.msra.mxu0 0.0
    %2704 = vmatprep.subr.mxu0 0.0
    %2705 = vmatpush1.msra.mxu0 0.0
    %2706 = vmatprep.subr.mxu0 0.0
    %2707 = vmatpush1.msra.mxu0 0.0
    %2708 = vmatprep.subr.mxu0 0.0
    %2709 = vmatpush1.msra.mxu0 0.0
    %2710 = vmatprep.subr.mxu0 0.0
    %2711 = vmatpush1.msra.mxu0 0.0
    %2712 = vmatprep.subr.mxu0 0.0
    %2713 = vmatpush1.msra.mxu0 0.0
    %2714 = vmatprep.subr.mxu0 0.0
    %2715 = vmatpush1.msra.mxu0 0.0
    %2716 = vmatprep.subr.mxu0 0.0
    %2717 = vmatpush1.msra.mxu0 0.0
    %2718 = vmatprep.subr.mxu0 0.0
    %2719 = vmatpush1.msra.mxu0 0.0
    %2720 = vmatprep.subr.mxu0 0.0
    %2721 = vmatpush1.msra.mxu0 0.0
    %2722 = vmatprep.subr.mxu0 0.0
    %2723 = vmatpush1.msra.mxu0 0.0
    %2724 = vmatprep.subr.mxu0 0.0
    %2725 = vmatpush1.msra.mxu0 0.0
    %2726 = vmatprep.subr.mxu0 0.0
    %2727 = vmatpush1.msra.mxu0 0.0
    %2728 = vmatprep.subr.mxu0 0.0
    %2729 = vmatpush1.msra.mxu0 0.0
    %2730 = vmatprep.subr.mxu0 0.0
    %2731 = vmatpush1.msra.mxu0 0.0
    %2732 = vmatprep.subr.mxu0 0.0
    %2733 = vmatpush1.msra.mxu0 0.0
    %2734 = vmatprep.subr.mxu0 0.0
    %2735 = vmatpush1.msra.mxu0 0.0
    %2736 = vmatprep.subr.mxu0 0.0
    %2737 = vmatpush1.msra.mxu0 0.0
    %2738 = vmatprep.subr.mxu0 0.0
    %2739 = vmatpush1.msra.mxu0 0.0
    %2740 = vmatprep.subr.mxu0 0.0
    %2741 = vmatpush1.msra.mxu0 0.0
    %2742 = vmatprep.subr.mxu0 0.0
    %2743 = vmatpush1.msra.mxu0 0.0
    %2744 = vmatprep.subr.mxu0 0.0
    %2745 = vmatpush1.msra.mxu0 0.0
    %2746 = vmatprep.subr.mxu0 0.0
    %2747 = vmatpush1.msra.mxu0 0.0
    %2748 = vmatprep.subr.mxu0 0.0
    %2749 = vmatpush1.msra.mxu0 0.0
    %2750 = vmatprep.subr.mxu0 0.0
    %2751 = vmatpush1.msra.mxu0 0.0
    %2752 = vmatprep.subr.mxu0 0.0
    %2753 = vmatpush1.msra.mxu0 0.0
    %2754 = vmatprep.subr.mxu0 0.0
    %2755 = vmatpush1.msra.mxu0 0.0
    %2756 = vmatprep.subr.mxu0 0.0
    %2757 = vmatpush1.msra.mxu0 0.0
    %2758 = vmatprep.subr.mxu0 0.0
    %2759 = vmatpush1.msra.mxu0 0.0
    %2760 = vmatprep.mubr.f32.mxu0 0.0
    %v2761 = vand.u32 %v2568, 4294901760
    %2762 = vmatmul.mubr.f32.gmra.mrb[0].mxu0 %v2761
    %v2763 = vpop.f32.mrb[0].mxu0
    %v2764 = vadd.f32 %v2653, %v2763
    %v2765 = vpop.f32.mrb[0].mxu0
    %2766 = vmatprep.mubr.f32.mxu0 0.0
    %v2767 = vand.u32 %v2571, 4294901760
    %2768 = vmatmul.mubr.f32.gmra.mrb[0].mxu0 %v2767
    %v2769 = vpop.f32.mrb[0].mxu0
    %v2770 = vadd.f32 %v2663, %v2769
    %v2771 = vpop.f32.mrb[0].mxu0
    %2772 = vmatprep.mubr.f32.mxu0 0.0
    %v2773 = vand.u32 %v2574, 4294901760
    %2774 = vmatmul.mubr.f32.gmra.mrb[0].mxu0 %v2773
    %v2775 = vpop.f32.mrb[0].mxu0
    %v2776 = vadd.f32 %v2673, %v2775
    %v2777 = vpop.f32.mrb[0].mxu0
    %2778 = vmatprep.mubr.f32.mxu0 0.0
    %v2779 = vand.u32 %v2577, 4294901760
    %2780 = vmatmul.mubr.f32.gmra.mrb[0].mxu0 %v2779
    %v2781 = vpop.f32.mrb[0].mxu0
    %v2782 = vadd.f32 %v2683, %v2781
    %v2783 = vpop.f32.mrb[0].mxu0
    %2784 = vdwg.mxu0
    %2785 = vmatprep.subr.mxu0 0.0
    %v2786 = vand.u32 %v2565, 4294901760
    %v2787 = vsub.f32 %v2565, %v2786
    %2788 = vmatpush1.msra.mxu0 %v2787
    %2789 = vmatprep.subr.mxu0 0.0
    %v2790 = vand.u32 %v2566, 4294901760
    %v2791 = vsub.f32 %v2566, %v2790
    %2792 = vmatpush1.msra.mxu0 %v2791
    %2793 = vmatprep.subr.mxu0 0.0
    %2794 = vmatpush1.msra.mxu0 0.0
    %2795 = vmatprep.subr.mxu0 0.0
    %2796 = vmatpush1.msra.mxu0 0.0
    %2797 = vmatprep.subr.mxu0 0.0
    %2798 = vmatpush1.msra.mxu0 0.0
    %2799 = vmatprep.subr.mxu0 0.0
    %2800 = vmatpush1.msra.mxu0 0.0
    %2801 = vmatprep.subr.mxu0 0.0
    %2802 = vmatpush1.msra.mxu0 0.0
    %2803 = vmatprep.subr.mxu0 0.0
    %2804 = vmatpush1.msra.mxu0 0.0
    %2805 = vmatprep.subr.mxu0 0.0
    %2806 = vmatpush1.msra.mxu0 0.0
    %2807 = vmatprep.subr.mxu0 0.0
    %2808 = vmatpush1.msra.mxu0 0.0
    %2809 = vmatprep.subr.mxu0 0.0
    %2810 = vmatpush1.msra.mxu0 0.0
    %2811 = vmatprep.subr.mxu0 0.0
    %2812 = vmatpush1.msra.mxu0 0.0
    %2813 = vmatprep.subr.mxu0 0.0
    %2814 = vmatpush1.msra.mxu0 0.0
    %2815 = vmatprep.subr.mxu0 0.0
    %2816 = vmatpush1.msra.mxu0 0.0
    %2817 = vmatprep.subr.mxu0 0.0
    %2818 = vmatpush1.msra.mxu0 0.0
    %2819 = vmatprep.subr.mxu0 0.0
    %2820 = vmatpush1.msra.mxu0 0.0
    %2821 = vmatprep.subr.mxu0 0.0
    %2822 = vmatpush1.msra.mxu0 0.0
    %2823 = vmatprep.subr.mxu0 0.0
    %2824 = vmatpush1.msra.mxu0 0.0
    %2825 = vmatprep.subr.mxu0 0.0
    %2826 = vmatpush1.msra.mxu0 0.0
    %2827 = vmatprep.subr.mxu0 0.0
    %2828 = vmatpush1.msra.mxu0 0.0
    %2829 = vmatprep.subr.mxu0 0.0
    %2830 = vmatpush1.msra.mxu0 0.0
    %2831 = vmatprep.subr.mxu0 0.0
    %2832 = vmatpush1.msra.mxu0 0.0
    %2833 = vmatprep.subr.mxu0 0.0
    %2834 = vmatpush1.msra.mxu0 0.0
    %2835 = vmatprep.subr.mxu0 0.0
    %2836 = vmatpush1.msra.mxu0 0.0
    %2837 = vmatprep.subr.mxu0 0.0
    %2838 = vmatpush1.msra.mxu0 0.0
    %2839 = vmatprep.subr.mxu0 0.0
    %2840 = vmatpush1.msra.mxu0 0.0
    %2841 = vmatprep.subr.mxu0 0.0
    %2842 = vmatpush1.msra.mxu0 0.0
    %2843 = vmatprep.subr.mxu0 0.0
    %2844 = vmatpush1.msra.mxu0 0.0
    %2845 = vmatprep.subr.mxu0 0.0
    %2846 = vmatpush1.msra.mxu0 0.0
    %2847 = vmatprep.subr.mxu0 0.0
    %2848 = vmatpush1.msra.mxu0 0.0
    %2849 = vmatprep.subr.mxu0 0.0
    %2850 = vmatpush1.msra.mxu0 0.0
    %2851 = vmatprep.subr.mxu0 0.0
    %2852 = vmatpush1.msra.mxu0 0.0
    %2853 = vmatprep.mubr.f32.mxu0 0.0
    %v2854 = vand.u32 %v2568, 4294901760
    %v2855 = vsub.f32 %v2568, %v2854
    %2856 = vmatmul.mubr.f32.gmra.mrb[0].mxu0 %v2855
    %v2857 = vpop.f32.mrb[0].mxu0
    %v2858 = vadd.f32 %v2764, %v2857
    %v2859 = vpop.f32.mrb[0].mxu0
    %2860 = vmatprep.mubr.f32.mxu0 0.0
    %v2861 = vand.u32 %v2571, 4294901760
    %v2862 = vsub.f32 %v2571, %v2861
    %2863 = vmatmul.mubr.f32.gmra.mrb[0].mxu0 %v2862
    %v2864 = vpop.f32.mrb[0].mxu0
    %v2865 = vadd.f32 %v2770, %v2864
    %v2866 = vpop.f32.mrb[0].mxu0
    %2867 = vmatprep.mubr.f32.mxu0 0.0
    %v2868 = vand.u32 %v2574, 4294901760
    %v2869 = vsub.f32 %v2574, %v2868
    %2870 = vmatmul.mubr.f32.gmra.mrb[0].mxu0 %v2869
    %v2871 = vpop.f32.mrb[0].mxu0
    %v2872 = vadd.f32 %v2776, %v2871
    %v2873 = vpop.f32.mrb[0].mxu0
    %2874 = vmatprep.mubr.f32.mxu0 0.0
    %v2875 = vand.u32 %v2577, 4294901760
    %v2876 = vsub.f32 %v2577, %v2875
    %2877 = vmatmul.mubr.f32.gmra.mrb[0].mxu0 %v2876
    %v2878 = vpop.f32.mrb[0].mxu0
    %v2879 = vadd.f32 %v2782, %v2878
    %v2880 = vpop.f32.mrb[0].mxu0
    %2881 = vdwg.mxu0
    %2882 = vmatprep.subr.mxu0 0.0
    %v2883 = vand.u32 %v2565, 4294901760
    %2884 = vmatpush1.msra.mxu0 %v2883
    %2885 = vmatprep.subr.mxu0 0.0
    %v2886 = vand.u32 %v2566, 4294901760
    %2887 = vmatpush1.msra.mxu0 %v2886
    %2888 = vmatprep.subr.mxu0 0.0
    %2889 = vmatpush1.msra.mxu0 0.0
    %2890 = vmatprep.subr.mxu0 0.0
    %2891 = vmatpush1.msra.mxu0 0.0
    %2892 = vmatprep.subr.mxu0 0.0
    %2893 = vmatpush1.msra.mxu0 0.0
    %2894 = vmatprep.subr.mxu0 0.0
    %2895 = vmatpush1.msra.mxu0 0.0
    %2896 = vmatprep.subr.mxu0 0.0
    %2897 = vmatpush1.msra.mxu0 0.0
    %2898 = vmatprep.subr.mxu0 0.0
    %2899 = vmatpush1.msra.mxu0 0.0
    %2900 = vmatprep.subr.mxu0 0.0
    %2901 = vmatpush1.msra.mxu0 0.0
    %2902 = vmatprep.subr.mxu0 0.0
    %2903 = vmatpush1.msra.mxu0 0.0
    %2904 = vmatprep.subr.mxu0 0.0
    %2905 = vmatpush1.msra.mxu0 0.0
    %2906 = vmatprep.subr.mxu0 0.0
    %2907 = vmatpush1.msra.mxu0 0.0
    %2908 = vmatprep.subr.mxu0 0.0
    %2909 = vmatpush1.msra.mxu0 0.0
    %2910 = vmatprep.subr.mxu0 0.0
    %2911 = vmatpush1.msra.mxu0 0.0
    %2912 = vmatprep.subr.mxu0 0.0
    %2913 = vmatpush1.msra.mxu0 0.0
    %2914 = vmatprep.subr.mxu0 0.0
    %2915 = vmatpush1.msra.mxu0 0.0
    %2916 = vmatprep.subr.mxu0 0.0
    %2917 = vmatpush1.msra.mxu0 0.0
    %2918 = vmatprep.subr.mxu0 0.0
    %2919 = vmatpush1.msra.mxu0 0.0
    %2920 = vmatprep.subr.mxu0 0.0
    %2921 = vmatpush1.msra.mxu0 0.0
    %2922 = vmatprep.subr.mxu0 0.0
    %2923 = vmatpush1.msra.mxu0 0.0
    %2924 = vmatprep.subr.mxu0 0.0
    %2925 = vmatpush1.msra.mxu0 0.0
    %2926 = vmatprep.subr.mxu0 0.0
    %2927 = vmatpush1.msra.mxu0 0.0
    %2928 = vmatprep.subr.mxu0 0.0
    %2929 = vmatpush1.msra.mxu0 0.0
    %2930 = vmatprep.subr.mxu0 0.0
    %2931 = vmatpush1.msra.mxu0 0.0
    %2932 = vmatprep.subr.mxu0 0.0
    %2933 = vmatpush1.msra.mxu0 0.0
    %2934 = vmatprep.subr.mxu0 0.0
    %2935 = vmatpush1.msra.mxu0 0.0
    %2936 = vmatprep.subr.mxu0 0.0
    %2937 = vmatpush1.msra.mxu0 0.0
    %2938 = vmatprep.subr.mxu0 0.0
    %2939 = vmatpush1.msra.mxu0 0.0
    %2940 = vmatprep.subr.mxu0 0.0
    %2941 = vmatpush1.msra.mxu0 0.0
    %2942 = vmatprep.subr.mxu0 0.0
    %2943 = vmatpush1.msra.mxu0 0.0
    %2944 = vmatprep.subr.mxu0 0.0
    %2945 = vmatpush1.msra.mxu0 0.0
    %2946 = vmatprep.subr.mxu0 0.0
    %2947 = vmatpush1.msra.mxu0 0.0
    %2948 = vmatprep.mubr.f32.mxu0 0.0
    %v2949 = vand.u32 %v2568, 4294901760
    %v2950 = vsub.f32 %v2568, %v2949
    %v2951 = vand.u32 %v2950, 4294901760
    %2952 = vmatmul.mubr.f32.gmra.mrb[0].mxu0 %v2951
    %v2953 = vpop.f32.mrb[0].mxu0
    %v2954 = vadd.f32 %v2858, %v2953
    %v2955 = vpop.f32.mrb[0].mxu0
    %2956 = vmatprep.mubr.f32.mxu0 0.0
    %v2957 = vand.u32 %v2571, 4294901760
    %v2958 = vsub.f32 %v2571, %v2957
    %v2959 = vand.u32 %v2958, 4294901760
    %2960 = vmatmul.mubr.f32.gmra.mrb[0].mxu0 %v2959
    %v2961 = vpop.f32.mrb[0].mxu0
    %v2962 = vadd.f32 %v2865, %v2961
    %v2963 = vpop.f32.mrb[0].mxu0
    %2964 = vmatprep.mubr.f32.mxu0 0.0
    %v2965 = vand.u32 %v2574, 4294901760
    %v2966 = vsub.f32 %v2574, %v2965
    %v2967 = vand.u32 %v2966, 4294901760
    %2968 = vmatmul.mubr.f32.gmra.mrb[0].mxu0 %v2967
    %v2969 = vpop.f32.mrb[0].mxu0
    %v2970 = vadd.f32 %v2872, %v2969
    %v2971 = vpop.f32.mrb[0].mxu0
    %2972 = vmatprep.mubr.f32.mxu0 0.0
    %v2973 = vand.u32 %v2577, 4294901760
    %v2974 = vsub.f32 %v2577, %v2973
    %v2975 = vand.u32 %v2974, 4294901760
    %2976 = vmatmul.mubr.f32.gmra.mrb[0].mxu0 %v2975
    %v2977 = vpop.f32.mrb[0].mxu0
    %v2978 = vadd.f32 %v2879, %v2977
    %v2979 = vpop.f32.mrb[0].mxu0
    %2980 = vdwg.mxu0
    %2981 = vmatprep.subr.mxu0 0.0
    %v2982 = vand.u32 %v2565, 4294901760
    %v2983 = vsub.f32 %v2565, %v2982
    %v2984 = vand.u32 %v2983, 4294901760
    %2985 = vmatpush1.msra.mxu0 %v2984
    %2986 = vmatprep.subr.mxu0 0.0
    %v2987 = vand.u32 %v2566, 4294901760
    %v2988 = vsub.f32 %v2566, %v2987
    %v2989 = vand.u32 %v2988, 4294901760
    %2990 = vmatpush1.msra.mxu0 %v2989
    %2991 = vmatprep.subr.mxu0 0.0
    %2992 = vmatpush1.msra.mxu0 0.0
    %2993 = vmatprep.subr.mxu0 0.0
    %2994 = vmatpush1.msra.mxu0 0.0
    %2995 = vmatprep.subr.mxu0 0.0
    %2996 = vmatpush1.msra.mxu0 0.0
    %2997 = vmatprep.subr.mxu0 0.0
    %2998 = vmatpush1.msra.mxu0 0.0
    %2999 = vmatprep.subr.mxu0 0.0
    %3000 = vmatpush1.msra.mxu0 0.0
    %3001 = vmatprep.subr.mxu0 0.0
    %3002 = vmatpush1.msra.mxu0 0.0
    %3003 = vmatprep.subr.mxu0 0.0
    %3004 = vmatpush1.msra.mxu0 0.0
    %3005 = vmatprep.subr.mxu0 0.0
    %3006 = vmatpush1.msra.mxu0 0.0
    %3007 = vmatprep.subr.mxu0 0.0
    %3008 = vmatpush1.msra.mxu0 0.0
    %3009 = vmatprep.subr.mxu0 0.0
    %3010 = vmatpush1.msra.mxu0 0.0
    %3011 = vmatprep.subr.mxu0 0.0
    %3012 = vmatpush1.msra.mxu0 0.0
    %3013 = vmatprep.subr.mxu0 0.0
    %3014 = vmatpush1.msra.mxu0 0.0
    %3015 = vmatprep.subr.mxu0 0.0
    %3016 = vmatpush1.msra.mxu0 0.0
    %3017 = vmatprep.subr.mxu0 0.0
    %3018 = vmatpush1.msra.mxu0 0.0
    %3019 = vmatprep.subr.mxu0 0.0
    %3020 = vmatpush1.msra.mxu0 0.0
    %3021 = vmatprep.subr.mxu0 0.0
    %3022 = vmatpush1.msra.mxu0 0.0
    %3023 = vmatprep.subr.mxu0 0.0
    %3024 = vmatpush1.msra.mxu0 0.0
    %3025 = vmatprep.subr.mxu0 0.0
    %3026 = vmatpush1.msra.mxu0 0.0
    %3027 = vmatprep.subr.mxu0 0.0
    %3028 = vmatpush1.msra.mxu0 0.0
    %3029 = vmatprep.subr.mxu0 0.0
    %3030 = vmatpush1.msra.mxu0 0.0
    %3031 = vmatprep.subr.mxu0 0.0
    %3032 = vmatpush1.msra.mxu0 0.0
    %3033 = vmatprep.subr.mxu0 0.0
    %3034 = vmatpush1.msra.mxu0 0.0
    %3035 = vmatprep.subr.mxu0 0.0
    %3036 = vmatpush1.msra.mxu0 0.0
    %3037 = vmatprep.subr.mxu0 0.0
    %3038 = vmatpush1.msra.mxu0 0.0
    %3039 = vmatprep.subr.mxu0 0.0
    %3040 = vmatpush1.msra.mxu0 0.0
    %3041 = vmatprep.subr.mxu0 0.0
    %3042 = vmatpush1.msra.mxu0 0.0
    %3043 = vmatprep.subr.mxu0 0.0
    %3044 = vmatpush1.msra.mxu0 0.0
    %3045 = vmatprep.subr.mxu0 0.0
    %3046 = vmatpush1.msra.mxu0 0.0
    %3047 = vmatprep.subr.mxu0 0.0
    %3048 = vmatpush1.msra.mxu0 0.0
    %3049 = vmatprep.subr.mxu0 0.0
    %3050 = vmatpush1.msra.mxu0 0.0
    %3051 = vmatprep.mubr.f32.mxu0 0.0
    %v3052 = vand.u32 %v2568, 4294901760
    %3053 = vmatmul.mubr.f32.gmra.mrb[0].mxu0 %v3052
    %v3054 = vpop.f32.mrb[0].mxu0
    %v3055 = vadd.f32 %v2954, %v3054
    %v3056 = vpop.f32.mrb[0].mxu0
    %3057 = vmatprep.mubr.f32.mxu0 0.0
    %v3058 = vand.u32 %v2571, 4294901760
    %3059 = vmatmul.mubr.f32.gmra.mrb[0].mxu0 %v3058
    %v3060 = vpop.f32.mrb[0].mxu0
    %v3061 = vadd.f32 %v2962, %v3060
    %v3062 = vpop.f32.mrb[0].mxu0
    %3063 = vmatprep.mubr.f32.mxu0 0.0
    %v3064 = vand.u32 %v2574, 4294901760
    %3065 = vmatmul.mubr.f32.gmra.mrb[0].mxu0 %v3064
    %v3066 = vpop.f32.mrb[0].mxu0
    %v3067 = vadd.f32 %v2970, %v3066
    %v3068 = vpop.f32.mrb[0].mxu0
    %3069 = vmatprep.mubr.f32.mxu0 0.0
    %v3070 = vand.u32 %v2577, 4294901760
    %3071 = vmatmul.mubr.f32.gmra.mrb[0].mxu0 %v3070
    %v3072 = vpop.f32.mrb[0].mxu0
    %v3073 = vadd.f32 %v2978, %v3072
    %v3074 = vpop.f32.mrb[0].mxu0
    %3075 = vdwg.mxu0
    %3076 = vmatprep.subr.mxu0 0.0
    %v3077 = vand.u32 %v2565, 4294901760
    %3078 = vmatpush1.msra.mxu0 %v3077
    %3079 = vmatprep.subr.mxu0 0.0
    %v3080 = vand.u32 %v2566, 4294901760
    %3081 = vmatpush1.msra.mxu0 %v3080
    %3082 = vmatprep.subr.mxu0 0.0
    %3083 = vmatpush1.msra.mxu0 0.0
    %3084 = vmatprep.subr.mxu0 0.0
    %3085 = vmatpush1.msra.mxu0 0.0
    %3086 = vmatprep.subr.mxu0 0.0
    %3087 = vmatpush1.msra.mxu0 0.0
    %3088 = vmatprep.subr.mxu0 0.0
    %3089 = vmatpush1.msra.mxu0 0.0
    %3090 = vmatprep.subr.mxu0 0.0
    %3091 = vmatpush1.msra.mxu0 0.0
    %3092 = vmatprep.subr.mxu0 0.0
    %3093 = vmatpush1.msra.mxu0 0.0
    %3094 = vmatprep.subr.mxu0 0.0
    %3095 = vmatpush1.msra.mxu0 0.0
    %3096 = vmatprep.subr.mxu0 0.0
    %3097 = vmatpush1.msra.mxu0 0.0
    %3098 = vmatprep.subr.mxu0 0.0
    %3099 = vmatpush1.msra.mxu0 0.0
    %3100 = vmatprep.subr.mxu0 0.0
    %3101 = vmatpush1.msra.mxu0 0.0
    %3102 = vmatprep.subr.mxu0 0.0
    %3103 = vmatpush1.msra.mxu0 0.0
    %3104 = vmatprep.subr.mxu0 0.0
    %3105 = vmatpush1.msra.mxu0 0.0
    %3106 = vmatprep.subr.mxu0 0.0
    %3107 = vmatpush1.msra.mxu0 0.0
    %3108 = vmatprep.subr.mxu0 0.0
    %3109 = vmatpush1.msra.mxu0 0.0
    %3110 = vmatprep.subr.mxu0 0.0
    %3111 = vmatpush1.msra.mxu0 0.0
    %3112 = vmatprep.subr.mxu0 0.0
    %3113 = vmatpush1.msra.mxu0 0.0
    %3114 = vmatprep.subr.mxu0 0.0
    %3115 = vmatpush1.msra.mxu0 0.0
    %3116 = vmatprep.subr.mxu0 0.0
    %3117 = vmatpush1.msra.mxu0 0.0
    %3118 = vmatprep.subr.mxu0 0.0
    %3119 = vmatpush1.msra.mxu0 0.0
    %3120 = vmatprep.subr.mxu0 0.0
    %3121 = vmatpush1.msra.mxu0 0.0
    %3122 = vmatprep.subr.mxu0 0.0
    %3123 = vmatpush1.msra.mxu0 0.0
    %3124 = vmatprep.subr.mxu0 0.0
    %3125 = vmatpush1.msra.mxu0 0.0
    %3126 = vmatprep.subr.mxu0 0.0
    %3127 = vmatpush1.msra.mxu0 0.0
    %3128 = vmatprep.subr.mxu0 0.0
    %3129 = vmatpush1.msra.mxu0 0.0
    %3130 = vmatprep.subr.mxu0 0.0
    %3131 = vmatpush1.msra.mxu0 0.0
    %3132 = vmatprep.subr.mxu0 0.0
    %3133 = vmatpush1.msra.mxu0 0.0
    %3134 = vmatprep.subr.mxu0 0.0
    %3135 = vmatpush1.msra.mxu0 0.0
    %3136 = vmatprep.subr.mxu0 0.0
    %3137 = vmatpush1.msra.mxu0 0.0
    %3138 = vmatprep.subr.mxu0 0.0
    %3139 = vmatpush1.msra.mxu0 0.0
    %3140 = vmatprep.subr.mxu0 0.0
    %3141 = vmatpush1.msra.mxu0 0.0
    %3142 = vmatprep.mubr.f32.mxu0 0.0
    %v3143 = vand.u32 %v2568, 4294901760
    %3144 = vmatmul.mubr.f32.gmra.mrb[0].mxu0 %v3143
    %v3145 = vpop.f32.mrb[0].mxu0
    %v3146 = vadd.f32 %v3055, %v3145
    %v3147 = vpop.f32.mrb[0].mxu0
    %3148 = vmatprep.mubr.f32.mxu0 0.0
    %v3149 = vand.u32 %v2571, 4294901760
    %3150 = vmatmul.mubr.f32.gmra.mrb[0].mxu0 %v3149
    %v3151 = vpop.f32.mrb[0].mxu0
    %v3152 = vadd.f32 %v3061, %v3151
    %v3153 = vpop.f32.mrb[0].mxu0
    %3154 = vmatprep.mubr.f32.mxu0 0.0
    %v3155 = vand.u32 %v2574, 4294901760
    %3156 = vmatmul.mubr.f32.gmra.mrb[0].mxu0 %v3155
    %v3157 = vpop.f32.mrb[0].mxu0
    %v3158 = vadd.f32 %v3067, %v3157
    %v3159 = vpop.f32.mrb[0].mxu0
    %3160 = vmatprep.mubr.f32.mxu0 0.0
    %v3161 = vand.u32 %v2577, 4294901760
    %3162 = vmatmul.mubr.f32.gmra.mrb[0].mxu0 %v3161
    %v3163 = vpop.f32.mrb[0].mxu0
    %v3164 = vadd.f32 %v3073, %v3163
    %v3165 = vpop.f32.mrb[0].mxu0
    %3166 = vdwg.mxu0
    %3167 = vset.pattern.permute.xlu0 5
    %3168 = vperm.xlu0 %3167, %v26
    %v3169 = vpop.permute.xlu0 %3168
    %3170 = vset.pattern.permute.xlu0 5
    %3171 = vperm.xlu0 %3170, %v27
    %v3172 = vpop.permute.xlu0 %3171
    %3173 = vset.pattern.permute.xlu0 5
    %3174 = vperm.xlu0 %3173, %v28
    %v3175 = vpop.permute.xlu0 %3174
    %3176 = vset.pattern.permute.xlu0 5
    %3177 = vperm.xlu0 %3176, %v29
    %v3178 = vpop.permute.xlu0 %3177
    %vm3179 = vcmp.eq.s32.totalorder %v3169, %v31
    %vm3180 = vcmp.eq.s32.totalorder %v3172, %v31
    %vm3181 = vcmp.eq.s32.totalorder %v3175, %v31
    %vm3182 = vcmp.eq.s32.totalorder %v3178, %v31
    %v3183 = vsel %vm3179, 1, 0
    %v3184 = vsel %vm3180, 1, 0
    %v3185 = vsel %vm3181, 1, 0
    %v3186 = vsel %vm3182, 1, 0
    %v3187 = vcvt.s32.f32 %v3183
    %v3188 = vcvt.s32.f32 %v3184
    %v3189 = vcvt.s32.f32 %v3185
    %v3190 = vcvt.s32.f32 %v3186
    %s3191 = scalar_lea.vmem [#allocation2], 80
    %v3192 = vld [vmem:[%s3191] sm:$0xff]
    %v3193 = vld [vmem:[%s3191 + $0x8] sm:$0xff]
    %v3195 = vsel %vm58, %v3187, 0
    %v3198 = vsel %vm58, %v3188, 0
    %v3201 = vsel %vm58, %v3189, 0
    %v3204 = vsel %vm58, %v3190, 0
    %3206 = vmatprep.subr.mxu0 0.0
    %v3207 = vand.u32 %v3192, 4294901760
    %3208 = vmatpush1.msra.mxu0 %v3207
    %3209 = vmatprep.subr.mxu0 0.0
    %v3210 = vand.u32 %v3193, 4294901760
    %3211 = vmatpush1.msra.mxu0 %v3210
    %3212 = vmatprep.subr.mxu0 0.0
    %3213 = vmatpush1.msra.mxu0 0.0
    %3214 = vmatprep.subr.mxu0 0.0
    %3215 = vmatpush1.msra.mxu0 0.0
    %3216 = vmatprep.subr.mxu0 0.0
    %3217 = vmatpush1.msra.mxu0 0.0
    %3218 = vmatprep.subr.mxu0 0.0
    %3219 = vmatpush1.msra.mxu0 0.0
    %3220 = vmatprep.subr.mxu0 0.0
    %3221 = vmatpush1.msra.mxu0 0.0
    %3222 = vmatprep.subr.mxu0 0.0
    %3223 = vmatpush1.msra.mxu0 0.0
    %3224 = vmatprep.subr.mxu0 0.0
    %3225 = vmatpush1.msra.mxu0 0.0
    %3226 = vmatprep.subr.mxu0 0.0
    %3227 = vmatpush1.msra.mxu0 0.0
    %3228 = vmatprep.subr.mxu0 0.0
    %3229 = vmatpush1.msra.mxu0 0.0
    %3230 = vmatprep.subr.mxu0 0.0
    %3231 = vmatpush1.msra.mxu0 0.0
    %3232 = vmatprep.subr.mxu0 0.0
    %3233 = vmatpush1.msra.mxu0 0.0
    %3234 = vmatprep.subr.mxu0 0.0
    %3235 = vmatpush1.msra.mxu0 0.0
    %3236 = vmatprep.subr.mxu0 0.0
    %3237 = vmatpush1.msra.mxu0 0.0
    %3238 = vmatprep.subr.mxu0 0.0
    %3239 = vmatpush1.msra.mxu0 0.0
    %3240 = vmatprep.subr.mxu0 0.0
    %3241 = vmatpush1.msra.mxu0 0.0
    %3242 = vmatprep.subr.mxu0 0.0
    %3243 = vmatpush1.msra.mxu0 0.0
    %3244 = vmatprep.subr.mxu0 0.0
    %3245 = vmatpush1.msra.mxu0 0.0
    %3246 = vmatprep.subr.mxu0 0.0
    %3247 = vmatpush1.msra.mxu0 0.0
    %3248 = vmatprep.subr.mxu0 0.0
    %3249 = vmatpush1.msra.mxu0 0.0
    %3250 = vmatprep.subr.mxu0 0.0
    %3251 = vmatpush1.msra.mxu0 0.0
    %3252 = vmatprep.subr.mxu0 0.0
    %3253 = vmatpush1.msra.mxu0 0.0
    %3254 = vmatprep.subr.mxu0 0.0
    %3255 = vmatpush1.msra.mxu0 0.0
    %3256 = vmatprep.subr.mxu0 0.0
    %3257 = vmatpush1.msra.mxu0 0.0
    %3258 = vmatprep.subr.mxu0 0.0
    %3259 = vmatpush1.msra.mxu0 0.0
    %3260 = vmatprep.subr.mxu0 0.0
    %3261 = vmatpush1.msra.mxu0 0.0
    %3262 = vmatprep.subr.mxu0 0.0
    %3263 = vmatpush1.msra.mxu0 0.0
    %3264 = vmatprep.subr.mxu0 0.0
    %3265 = vmatpush1.msra.mxu0 0.0
    %3266 = vmatprep.subr.mxu0 0.0
    %3267 = vmatpush1.msra.mxu0 0.0
    %3268 = vmatprep.subr.mxu0 0.0
    %3269 = vmatpush1.msra.mxu0 0.0
    %3270 = vmatprep.subr.mxu0 0.0
    %3271 = vmatpush1.msra.mxu0 0.0
    %3272 = vmatprep.mubr.f32.mxu0 0.0
    %v3273 = vand.u32 %v3195, 4294901760
    %v3274 = vsub.f32 %v3195, %v3273
    %v3275 = vand.u32 %v3274, 4294901760
    %v3276 = vsub.f32 %v3274, %v3275
    %v3277 = vand.u32 %v3276, 4294901760
    %3278 = vmatmul.mubr.f32.gmra.mrb[0].mxu0 %v3277
    %v3279 = vpop.f32.mrb[0].mxu0
    %v3280 = vadd.f32 0.0, %v3279
    %v3281 = vpop.f32.mrb[0].mxu0
    %3282 = vmatprep.mubr.f32.mxu0 0.0
    %v3283 = vand.u32 %v3198, 4294901760
    %v3284 = vsub.f32 %v3198, %v3283
    %v3285 = vand.u32 %v3284, 4294901760
    %v3286 = vsub.f32 %v3284, %v3285
    %v3287 = vand.u32 %v3286, 4294901760
    %3288 = vmatmul.mubr.f32.gmra.mrb[0].mxu0 %v3287
    %v3289 = vpop.f32.mrb[0].mxu0
    %v3290 = vadd.f32 0.0, %v3289
    %v3291 = vpop.f32.mrb[0].mxu0
    %3292 = vmatprep.mubr.f32.mxu0 0.0
    %v3293 = vand.u32 %v3201, 4294901760
    %v3294 = vsub.f32 %v3201, %v3293
    %v3295 = vand.u32 %v3294, 4294901760
    %v3296 = vsub.f32 %v3294, %v3295
    %v3297 = vand.u32 %v3296, 4294901760
    %3298 = vmatmul.mubr.f32.gmra.mrb[0].mxu0 %v3297
    %v3299 = vpop.f32.mrb[0].mxu0
    %v3300 = vadd.f32 0.0, %v3299
    %v3301 = vpop.f32.mrb[0].mxu0
    %3302 = vmatprep.mubr.f32.mxu0 0.0
    %v3303 = vand.u32 %v3204, 4294901760
    %v3304 = vsub.f32 %v3204, %v3303
    %v3305 = vand.u32 %v3304, 4294901760
    %v3306 = vsub.f32 %v3304, %v3305
    %v3307 = vand.u32 %v3306, 4294901760
    %3308 = vmatmul.mubr.f32.gmra.mrb[0].mxu0 %v3307
    %v3309 = vpop.f32.mrb[0].mxu0
    %v3310 = vadd.f32 0.0, %v3309
    %v3311 = vpop.f32.mrb[0].mxu0
    %3312 = vdwg.mxu0
    %3313 = vmatprep.subr.mxu0 0.0
    %v3314 = vand.u32 %v3192, 4294901760
    %v3315 = vsub.f32 %v3192, %v3314
    %v3316 = vand.u32 %v3315, 4294901760
    %v3317 = vsub.f32 %v3315, %v3316
    %v3318 = vand.u32 %v3317, 4294901760
    %3319 = vmatpush1.msra.mxu0 %v3318
    %3320 = vmatprep.subr.mxu0 0.0
    %v3321 = vand.u32 %v3193, 4294901760
    %v3322 = vsub.f32 %v3193, %v3321
    %v3323 = vand.u32 %v3322, 4294901760
    %v3324 = vsub.f32 %v3322, %v3323
    %v3325 = vand.u32 %v3324, 4294901760
    %3326 = vmatpush1.msra.mxu0 %v3325
    %3327 = vmatprep.subr.mxu0 0.0
    %3328 = vmatpush1.msra.mxu0 0.0
    %3329 = vmatprep.subr.mxu0 0.0
    %3330 = vmatpush1.msra.mxu0 0.0
    %3331 = vmatprep.subr.mxu0 0.0
    %3332 = vmatpush1.msra.mxu0 0.0
    %3333 = vmatprep.subr.mxu0 0.0
    %3334 = vmatpush1.msra.mxu0 0.0
    %3335 = vmatprep.subr.mxu0 0.0
    %3336 = vmatpush1.msra.mxu0 0.0
    %3337 = vmatprep.subr.mxu0 0.0
    %3338 = vmatpush1.msra.mxu0 0.0
    %3339 = vmatprep.subr.mxu0 0.0
    %3340 = vmatpush1.msra.mxu0 0.0
    %3341 = vmatprep.subr.mxu0 0.0
    %3342 = vmatpush1.msra.mxu0 0.0
    %3343 = vmatprep.subr.mxu0 0.0
    %3344 = vmatpush1.msra.mxu0 0.0
    %3345 = vmatprep.subr.mxu0 0.0
    %3346 = vmatpush1.msra.mxu0 0.0
    %3347 = vmatprep.subr.mxu0 0.0
    %3348 = vmatpush1.msra.mxu0 0.0
    %3349 = vmatprep.subr.mxu0 0.0
    %3350 = vmatpush1.msra.mxu0 0.0
    %3351 = vmatprep.subr.mxu0 0.0
    %3352 = vmatpush1.msra.mxu0 0.0
    %3353 = vmatprep.subr.mxu0 0.0
    %3354 = vmatpush1.msra.mxu0 0.0
    %3355 = vmatprep.subr.mxu0 0.0
    %3356 = vmatpush1.msra.mxu0 0.0
    %3357 = vmatprep.subr.mxu0 0.0
    %3358 = vmatpush1.msra.mxu0 0.0
    %3359 = vmatprep.subr.mxu0 0.0
    %3360 = vmatpush1.msra.mxu0 0.0
    %3361 = vmatprep.subr.mxu0 0.0
    %3362 = vmatpush1.msra.mxu0 0.0
    %3363 = vmatprep.subr.mxu0 0.0
    %3364 = vmatpush1.msra.mxu0 0.0
    %3365 = vmatprep.subr.mxu0 0.0
    %3366 = vmatpush1.msra.mxu0 0.0
    %3367 = vmatprep.subr.mxu0 0.0
    %3368 = vmatpush1.msra.mxu0 0.0
    %3369 = vmatprep.subr.mxu0 0.0
    %3370 = vmatpush1.msra.mxu0 0.0
    %3371 = vmatprep.subr.mxu0 0.0
    %3372 = vmatpush1.msra.mxu0 0.0
    %3373 = vmatprep.subr.mxu0 0.0
    %3374 = vmatpush1.msra.mxu0 0.0
    %3375 = vmatprep.subr.mxu0 0.0
    %3376 = vmatpush1.msra.mxu0 0.0
    %3377 = vmatprep.subr.mxu0 0.0
    %3378 = vmatpush1.msra.mxu0 0.0
    %3379 = vmatprep.subr.mxu0 0.0
    %3380 = vmatpush1.msra.mxu0 0.0
    %3381 = vmatprep.subr.mxu0 0.0
    %3382 = vmatpush1.msra.mxu0 0.0
    %3383 = vmatprep.subr.mxu0 0.0
    %3384 = vmatpush1.msra.mxu0 0.0
    %3385 = vmatprep.subr.mxu0 0.0
    %3386 = vmatpush1.msra.mxu0 0.0
    %3387 = vmatprep.mubr.f32.mxu0 0.0
    %v3388 = vand.u32 %v3195, 4294901760
    %3389 = vmatmul.mubr.f32.gmra.mrb[0].mxu0 %v3388
    %v3390 = vpop.f32.mrb[0].mxu0
    %v3391 = vadd.f32 %v3280, %v3390
    %v3392 = vpop.f32.mrb[0].mxu0
    %3393 = vmatprep.mubr.f32.mxu0 0.0
    %v3394 = vand.u32 %v3198, 4294901760
    %3395 = vmatmul.mubr.f32.gmra.mrb[0].mxu0 %v3394
    %v3396 = vpop.f32.mrb[0].mxu0
    %v3397 = vadd.f32 %v3290, %v3396
    %v3398 = vpop.f32.mrb[0].mxu0
    %3399 = vmatprep.mubr.f32.mxu0 0.0
    %v3400 = vand.u32 %v3201, 4294901760
    %3401 = vmatmul.mubr.f32.gmra.mrb[0].mxu0 %v3400
    %v3402 = vpop.f32.mrb[0].mxu0
    %v3403 = vadd.f32 %v3300, %v3402
    %v3404 = vpop.f32.mrb[0].mxu0
    %3405 = vmatprep.mubr.f32.mxu0 0.0
    %v3406 = vand.u32 %v3204, 4294901760
    %3407 = vmatmul.mubr.f32.gmra.mrb[0].mxu0 %v3406
    %v3408 = vpop.f32.mrb[0].mxu0
    %v3409 = vadd.f32 %v3310, %v3408
    %v3410 = vpop.f32.mrb[0].mxu0
    %3411 = vdwg.mxu0
    %3412 = vmatprep.subr.mxu0 0.0
    %v3413 = vand.u32 %v3192, 4294901760
    %v3414 = vsub.f32 %v3192, %v3413
    %3415 = vmatpush1.msra.mxu0 %v3414
    %3416 = vmatprep.subr.mxu0 0.0
    %v3417 = vand.u32 %v3193, 4294901760
    %v3418 = vsub.f32 %v3193, %v3417
    %3419 = vmatpush1.msra.mxu0 %v3418
    %3420 = vmatprep.subr.mxu0 0.0
    %3421 = vmatpush1.msra.mxu0 0.0
    %3422 = vmatprep.subr.mxu0 0.0
    %3423 = vmatpush1.msra.mxu0 0.0
    %3424 = vmatprep.subr.mxu0 0.0
    %3425 = vmatpush1.msra.mxu0 0.0
    %3426 = vmatprep.subr.mxu0 0.0
    %3427 = vmatpush1.msra.mxu0 0.0
    %3428 = vmatprep.subr.mxu0 0.0
    %3429 = vmatpush1.msra.mxu0 0.0
    %3430 = vmatprep.subr.mxu0 0.0
    %3431 = vmatpush1.msra.mxu0 0.0
    %3432 = vmatprep.subr.mxu0 0.0
    %3433 = vmatpush1.msra.mxu0 0.0
    %3434 = vmatprep.subr.mxu0 0.0
    %3435 = vmatpush1.msra.mxu0 0.0
    %3436 = vmatprep.subr.mxu0 0.0
    %3437 = vmatpush1.msra.mxu0 0.0
    %3438 = vmatprep.subr.mxu0 0.0
    %3439 = vmatpush1.msra.mxu0 0.0
    %3440 = vmatprep.subr.mxu0 0.0
    %3441 = vmatpush1.msra.mxu0 0.0
    %3442 = vmatprep.subr.mxu0 0.0
    %3443 = vmatpush1.msra.mxu0 0.0
    %3444 = vmatprep.subr.mxu0 0.0
    %3445 = vmatpush1.msra.mxu0 0.0
    %3446 = vmatprep.subr.mxu0 0.0
    %3447 = vmatpush1.msra.mxu0 0.0
    %3448 = vmatprep.subr.mxu0 0.0
    %3449 = vmatpush1.msra.mxu0 0.0
    %3450 = vmatprep.subr.mxu0 0.0
    %3451 = vmatpush1.msra.mxu0 0.0
    %3452 = vmatprep.subr.mxu0 0.0
    %3453 = vmatpush1.msra.mxu0 0.0
    %3454 = vmatprep.subr.mxu0 0.0
    %3455 = vmatpush1.msra.mxu0 0.0
    %3456 = vmatprep.subr.mxu0 0.0
    %3457 = vmatpush1.msra.mxu0 0.0
    %3458 = vmatprep.subr.mxu0 0.0
    %3459 = vmatpush1.msra.mxu0 0.0
    %3460 = vmatprep.subr.mxu0 0.0
    %3461 = vmatpush1.msra.mxu0 0.0
    %3462 = vmatprep.subr.mxu0 0.0
    %3463 = vmatpush1.msra.mxu0 0.0
    %3464 = vmatprep.subr.mxu0 0.0
    %3465 = vmatpush1.msra.mxu0 0.0
    %3466 = vmatprep.subr.mxu0 0.0
    %3467 = vmatpush1.msra.mxu0 0.0
    %3468 = vmatprep.subr.mxu0 0.0
    %3469 = vmatpush1.msra.mxu0 0.0
    %3470 = vmatprep.subr.mxu0 0.0
    %3471 = vmatpush1.msra.mxu0 0.0
    %3472 = vmatprep.subr.mxu0 0.0
    %3473 = vmatpush1.msra.mxu0 0.0
    %3474 = vmatprep.subr.mxu0 0.0
    %3475 = vmatpush1.msra.mxu0 0.0
    %3476 = vmatprep.subr.mxu0 0.0
    %3477 = vmatpush1.msra.mxu0 0.0
    %3478 = vmatprep.subr.mxu0 0.0
    %3479 = vmatpush1.msra.mxu0 0.0
    %3480 = vmatprep.mubr.f32.mxu0 0.0
    %v3481 = vand.u32 %v3195, 4294901760
    %v3482 = vsub.f32 %v3195, %v3481
    %3483 = vmatmul.mubr.f32.gmra.mrb[0].mxu0 %v3482
    %v3484 = vpop.f32.mrb[0].mxu0
    %v3485 = vadd.f32 %v3391, %v3484
    %v3486 = vpop.f32.mrb[0].mxu0
    %3487 = vmatprep.mubr.f32.mxu0 0.0
    %v3488 = vand.u32 %v3198, 4294901760
    %v3489 = vsub.f32 %v3198, %v3488
    %3490 = vmatmul.mubr.f32.gmra.mrb[0].mxu0 %v3489
    %v3491 = vpop.f32.mrb[0].mxu0
    %v3492 = vadd.f32 %v3397, %v3491
    %v3493 = vpop.f32.mrb[0].mxu0
    %3494 = vmatprep.mubr.f32.mxu0 0.0
    %v3495 = vand.u32 %v3201, 4294901760
    %v3496 = vsub.f32 %v3201, %v3495
    %3497 = vmatmul.mubr.f32.gmra.mrb[0].mxu0 %v3496
    %v3498 = vpop.f32.mrb[0].mxu0
    %v3499 = vadd.f32 %v3403, %v3498
    %v3500 = vpop.f32.mrb[0].mxu0
    %3501 = vmatprep.mubr.f32.mxu0 0.0
    %v3502 = vand.u32 %v3204, 4294901760
    %v3503 = vsub.f32 %v3204, %v3502
    %3504 = vmatmul.mubr.f32.gmra.mrb[0].mxu0 %v3503
    %v3505 = vpop.f32.mrb[0].mxu0
    %v3506 = vadd.f32 %v3409, %v3505
    %v3507 = vpop.f32.mrb[0].mxu0
    %3508 = vdwg.mxu0
    %3509 = vmatprep.subr.mxu0 0.0
    %v3510 = vand.u32 %v3192, 4294901760
    %3511 = vmatpush1.msra.mxu0 %v3510
    %3512 = vmatprep.subr.mxu0 0.0
    %v3513 = vand.u32 %v3193, 4294901760
    %3514 = vmatpush1.msra.mxu0 %v3513
    %3515 = vmatprep.subr.mxu0 0.0
    %3516 = vmatpush1.msra.mxu0 0.0
    %3517 = vmatprep.subr.mxu0 0.0
    %3518 = vmatpush1.msra.mxu0 0.0
    %3519 = vmatprep.subr.mxu0 0.0
    %3520 = vmatpush1.msra.mxu0 0.0
    %3521 = vmatprep.subr.mxu0 0.0
    %3522 = vmatpush1.msra.mxu0 0.0
    %3523 = vmatprep.subr.mxu0 0.0
    %3524 = vmatpush1.msra.mxu0 0.0
    %3525 = vmatprep.subr.mxu0 0.0
    %3526 = vmatpush1.msra.mxu0 0.0
    %3527 = vmatprep.subr.mxu0 0.0
    %3528 = vmatpush1.msra.mxu0 0.0
    %3529 = vmatprep.subr.mxu0 0.0
    %3530 = vmatpush1.msra.mxu0 0.0
    %3531 = vmatprep.subr.mxu0 0.0
    %3532 = vmatpush1.msra.mxu0 0.0
    %3533 = vmatprep.subr.mxu0 0.0
    %3534 = vmatpush1.msra.mxu0 0.0
    %3535 = vmatprep.subr.mxu0 0.0
    %3536 = vmatpush1.msra.mxu0 0.0
    %3537 = vmatprep.subr.mxu0 0.0
    %3538 = vmatpush1.msra.mxu0 0.0
    %3539 = vmatprep.subr.mxu0 0.0
    %3540 = vmatpush1.msra.mxu0 0.0
    %3541 = vmatprep.subr.mxu0 0.0
    %3542 = vmatpush1.msra.mxu0 0.0
    %3543 = vmatprep.subr.mxu0 0.0
    %3544 = vmatpush1.msra.mxu0 0.0
    %3545 = vmatprep.subr.mxu0 0.0
    %3546 = vmatpush1.msra.mxu0 0.0
    %3547 = vmatprep.subr.mxu0 0.0
    %3548 = vmatpush1.msra.mxu0 0.0
    %3549 = vmatprep.subr.mxu0 0.0
    %3550 = vmatpush1.msra.mxu0 0.0
    %3551 = vmatprep.subr.mxu0 0.0
    %3552 = vmatpush1.msra.mxu0 0.0
    %3553 = vmatprep.subr.mxu0 0.0
    %3554 = vmatpush1.msra.mxu0 0.0
    %3555 = vmatprep.subr.mxu0 0.0
    %3556 = vmatpush1.msra.mxu0 0.0
    %3557 = vmatprep.subr.mxu0 0.0
    %3558 = vmatpush1.msra.mxu0 0.0
    %3559 = vmatprep.subr.mxu0 0.0
    %3560 = vmatpush1.msra.mxu0 0.0
    %3561 = vmatprep.subr.mxu0 0.0
    %3562 = vmatpush1.msra.mxu0 0.0
    %3563 = vmatprep.subr.mxu0 0.0
    %3564 = vmatpush1.msra.mxu0 0.0
    %3565 = vmatprep.subr.mxu0 0.0
    %3566 = vmatpush1.msra.mxu0 0.0
    %3567 = vmatprep.subr.mxu0 0.0
    %3568 = vmatpush1.msra.mxu0 0.0
    %3569 = vmatprep.subr.mxu0 0.0
    %3570 = vmatpush1.msra.mxu0 0.0
    %3571 = vmatprep.subr.mxu0 0.0
    %3572 = vmatpush1.msra.mxu0 0.0
    %3573 = vmatprep.subr.mxu0 0.0
    %3574 = vmatpush1.msra.mxu0 0.0
    %3575 = vmatprep.mubr.f32.mxu0 0.0
    %v3576 = vand.u32 %v3195, 4294901760
    %v3577 = vsub.f32 %v3195, %v3576
    %v3578 = vand.u32 %v3577, 4294901760
    %3579 = vmatmul.mubr.f32.gmra.mrb[0].mxu0 %v3578
    %v3580 = vpop.f32.mrb[0].mxu0
    %v3581 = vadd.f32 %v3485, %v3580
    %v3582 = vpop.f32.mrb[0].mxu0
    %3583 = vmatprep.mubr.f32.mxu0 0.0
    %v3584 = vand.u32 %v3198, 4294901760
    %v3585 = vsub.f32 %v3198, %v3584
    %v3586 = vand.u32 %v3585, 4294901760
    %3587 = vmatmul.mubr.f32.gmra.mrb[0].mxu0 %v3586
    %v3588 = vpop.f32.mrb[0].mxu0
    %v3589 = vadd.f32 %v3492, %v3588
    %v3590 = vpop.f32.mrb[0].mxu0
    %3591 = vmatprep.mubr.f32.mxu0 0.0
    %v3592 = vand.u32 %v3201, 4294901760
    %v3593 = vsub.f32 %v3201, %v3592
    %v3594 = vand.u32 %v3593, 4294901760
    %3595 = vmatmul.mubr.f32.gmra.mrb[0].mxu0 %v3594
    %v3596 = vpop.f32.mrb[0].mxu0
    %v3597 = vadd.f32 %v3499, %v3596
    %v3598 = vpop.f32.mrb[0].mxu0
    %3599 = vmatprep.mubr.f32.mxu0 0.0
    %v3600 = vand.u32 %v3204, 4294901760
    %v3601 = vsub.f32 %v3204, %v3600
    %v3602 = vand.u32 %v3601, 4294901760
    %3603 = vmatmul.mubr.f32.gmra.mrb[0].mxu0 %v3602
    %v3604 = vpop.f32.mrb[0].mxu0
    %v3605 = vadd.f32 %v3506, %v3604
    %v3606 = vpop.f32.mrb[0].mxu0
    %3607 = vdwg.mxu0
    %3608 = vmatprep.subr.mxu0 0.0
    %v3609 = vand.u32 %v3192, 4294901760
    %v3610 = vsub.f32 %v3192, %v3609
    %v3611 = vand.u32 %v3610, 4294901760
    %3612 = vmatpush1.msra.mxu0 %v3611
    %3613 = vmatprep.subr.mxu0 0.0
    %v3614 = vand.u32 %v3193, 4294901760
    %v3615 = vsub.f32 %v3193, %v3614
    %v3616 = vand.u32 %v3615, 4294901760
    %3617 = vmatpush1.msra.mxu0 %v3616
    %3618 = vmatprep.subr.mxu0 0.0
    %3619 = vmatpush1.msra.mxu0 0.0
    %3620 = vmatprep.subr.mxu0 0.0
    %3621 = vmatpush1.msra.mxu0 0.0
    %3622 = vmatprep.subr.mxu0 0.0
    %3623 = vmatpush1.msra.mxu0 0.0
    %3624 = vmatprep.subr.mxu0 0.0
    %3625 = vmatpush1.msra.mxu0 0.0
    %3626 = vmatprep.subr.mxu0 0.0
    %3627 = vmatpush1.msra.mxu0 0.0
    %3628 = vmatprep.subr.mxu0 0.0
    %3629 = vmatpush1.msra.mxu0 0.0
    %3630 = vmatprep.subr.mxu0 0.0
    %3631 = vmatpush1.msra.mxu0 0.0
    %3632 = vmatprep.subr.mxu0 0.0
    %3633 = vmatpush1.msra.mxu0 0.0
    %3634 = vmatprep.subr.mxu0 0.0
    %3635 = vmatpush1.msra.mxu0 0.0
    %3636 = vmatprep.subr.mxu0 0.0
    %3637 = vmatpush1.msra.mxu0 0.0
    %3638 = vmatprep.subr.mxu0 0.0
    %3639 = vmatpush1.msra.mxu0 0.0
    %3640 = vmatprep.subr.mxu0 0.0
    %3641 = vmatpush1.msra.mxu0 0.0
    %3642 = vmatprep.subr.mxu0 0.0
    %3643 = vmatpush1.msra.mxu0 0.0
    %3644 = vmatprep.subr.mxu0 0.0
    %3645 = vmatpush1.msra.mxu0 0.0
    %3646 = vmatprep.subr.mxu0 0.0
    %3647 = vmatpush1.msra.mxu0 0.0
    %3648 = vmatprep.subr.mxu0 0.0
    %3649 = vmatpush1.msra.mxu0 0.0
    %3650 = vmatprep.subr.mxu0 0.0
    %3651 = vmatpush1.msra.mxu0 0.0
    %3652 = vmatprep.subr.mxu0 0.0
    %3653 = vmatpush1.msra.mxu0 0.0
    %3654 = vmatprep.subr.mxu0 0.0
    %3655 = vmatpush1.msra.mxu0 0.0
    %3656 = vmatprep.subr.mxu0 0.0
    %3657 = vmatpush1.msra.mxu0 0.0
    %3658 = vmatprep.subr.mxu0 0.0
    %3659 = vmatpush1.msra.mxu0 0.0
    %3660 = vmatprep.subr.mxu0 0.0
    %3661 = vmatpush1.msra.mxu0 0.0
    %3662 = vmatprep.subr.mxu0 0.0
    %3663 = vmatpush1.msra.mxu0 0.0
    %3664 = vmatprep.subr.mxu0 0.0
    %3665 = vmatpush1.msra.mxu0 0.0
    %3666 = vmatprep.subr.mxu0 0.0
    %3667 = vmatpush1.msra.mxu0 0.0
    %3668 = vmatprep.subr.mxu0 0.0
    %3669 = vmatpush1.msra.mxu0 0.0
    %3670 = vmatprep.subr.mxu0 0.0
    %3671 = vmatpush1.msra.mxu0 0.0
    %3672 = vmatprep.subr.mxu0 0.0
    %3673 = vmatpush1.msra.mxu0 0.0
    %3674 = vmatprep.subr.mxu0 0.0
    %3675 = vmatpush1.msra.mxu0 0.0
    %3676 = vmatprep.subr.mxu0 0.0
    %3677 = vmatpush1.msra.mxu0 0.0
    %3678 = vmatprep.mubr.f32.mxu0 0.0
    %v3679 = vand.u32 %v3195, 4294901760
    %3680 = vmatmul.mubr.f32.gmra.mrb[0].mxu0 %v3679
    %v3681 = vpop.f32.mrb[0].mxu0
    %v3682 = vadd.f32 %v3581, %v3681
    %v3683 = vpop.f32.mrb[0].mxu0
    %3684 = vmatprep.mubr.f32.mxu0 0.0
    %v3685 = vand.u32 %v3198, 4294901760
    %3686 = vmatmul.mubr.f32.gmra.mrb[0].mxu0 %v3685
    %v3687 = vpop.f32.mrb[0].mxu0
    %v3688 = vadd.f32 %v3589, %v3687
    %v3689 = vpop.f32.mrb[0].mxu0
    %3690 = vmatprep.mubr.f32.mxu0 0.0
    %v3691 = vand.u32 %v3201, 4294901760
    %3692 = vmatmul.mubr.f32.gmra.mrb[0].mxu0 %v3691
    %v3693 = vpop.f32.mrb[0].mxu0
    %v3694 = vadd.f32 %v3597, %v3693
    %v3695 = vpop.f32.mrb[0].mxu0
    %3696 = vmatprep.mubr.f32.mxu0 0.0
    %v3697 = vand.u32 %v3204, 4294901760
    %3698 = vmatmul.mubr.f32.gmra.mrb[0].mxu0 %v3697
    %v3699 = vpop.f32.mrb[0].mxu0
    %v3700 = vadd.f32 %v3605, %v3699
    %v3701 = vpop.f32.mrb[0].mxu0
    %3702 = vdwg.mxu0
    %3703 = vmatprep.subr.mxu0 0.0
    %v3704 = vand.u32 %v3192, 4294901760
    %3705 = vmatpush1.msra.mxu0 %v3704
    %3706 = vmatprep.subr.mxu0 0.0
    %v3707 = vand.u32 %v3193, 4294901760
    %3708 = vmatpush1.msra.mxu0 %v3707
    %3709 = vmatprep.subr.mxu0 0.0
    %3710 = vmatpush1.msra.mxu0 0.0
    %3711 = vmatprep.subr.mxu0 0.0
    %3712 = vmatpush1.msra.mxu0 0.0
    %3713 = vmatprep.subr.mxu0 0.0
    %3714 = vmatpush1.msra.mxu0 0.0
    %3715 = vmatprep.subr.mxu0 0.0
    %3716 = vmatpush1.msra.mxu0 0.0
    %3717 = vmatprep.subr.mxu0 0.0
    %3718 = vmatpush1.msra.mxu0 0.0
    %3719 = vmatprep.subr.mxu0 0.0
    %3720 = vmatpush1.msra.mxu0 0.0
    %3721 = vmatprep.subr.mxu0 0.0
    %3722 = vmatpush1.msra.mxu0 0.0
    %3723 = vmatprep.subr.mxu0 0.0
    %3724 = vmatpush1.msra.mxu0 0.0
    %3725 = vmatprep.subr.mxu0 0.0
    %3726 = vmatpush1.msra.mxu0 0.0
    %3727 = vmatprep.subr.mxu0 0.0
    %3728 = vmatpush1.msra.mxu0 0.0
    %3729 = vmatprep.subr.mxu0 0.0
    %3730 = vmatpush1.msra.mxu0 0.0
    %3731 = vmatprep.subr.mxu0 0.0
    %3732 = vmatpush1.msra.mxu0 0.0
    %3733 = vmatprep.subr.mxu0 0.0
    %3734 = vmatpush1.msra.mxu0 0.0
    %3735 = vmatprep.subr.mxu0 0.0
    %3736 = vmatpush1.msra.mxu0 0.0
    %3737 = vmatprep.subr.mxu0 0.0
    %3738 = vmatpush1.msra.mxu0 0.0
    %3739 = vmatprep.subr.mxu0 0.0
    %3740 = vmatpush1.msra.mxu0 0.0
    %3741 = vmatprep.subr.mxu0 0.0
    %3742 = vmatpush1.msra.mxu0 0.0
    %3743 = vmatprep.subr.mxu0 0.0
    %3744 = vmatpush1.msra.mxu0 0.0
    %3745 = vmatprep.subr.mxu0 0.0
    %3746 = vmatpush1.msra.mxu0 0.0
    %3747 = vmatprep.subr.mxu0 0.0
    %3748 = vmatpush1.msra.mxu0 0.0
    %3749 = vmatprep.subr.mxu0 0.0
    %3750 = vmatpush1.msra.mxu0 0.0
    %3751 = vmatprep.subr.mxu0 0.0
    %3752 = vmatpush1.msra.mxu0 0.0
    %3753 = vmatprep.subr.mxu0 0.0
    %3754 = vmatpush1.msra.mxu0 0.0
    %3755 = vmatprep.subr.mxu0 0.0
    %3756 = vmatpush1.msra.mxu0 0.0
    %3757 = vmatprep.subr.mxu0 0.0
    %3758 = vmatpush1.msra.mxu0 0.0
    %3759 = vmatprep.subr.mxu0 0.0
    %3760 = vmatpush1.msra.mxu0 0.0
    %3761 = vmatprep.subr.mxu0 0.0
    %3762 = vmatpush1.msra.mxu0 0.0
    %3763 = vmatprep.subr.mxu0 0.0
    %3764 = vmatpush1.msra.mxu0 0.0
    %3765 = vmatprep.subr.mxu0 0.0
    %3766 = vmatpush1.msra.mxu0 0.0
    %3767 = vmatprep.subr.mxu0 0.0
    %3768 = vmatpush1.msra.mxu0 0.0
    %3769 = vmatprep.mubr.f32.mxu0 0.0
    %v3770 = vand.u32 %v3195, 4294901760
    %3771 = vmatmul.mubr.f32.gmra.mrb[0].mxu0 %v3770
    %v3772 = vpop.f32.mrb[0].mxu0
    %v3773 = vadd.f32 %v3682, %v3772
    %v3774 = vpop.f32.mrb[0].mxu0
    %3775 = vmatprep.mubr.f32.mxu0 0.0
    %v3776 = vand.u32 %v3198, 4294901760
    %3777 = vmatmul.mubr.f32.gmra.mrb[0].mxu0 %v3776
    %v3778 = vpop.f32.mrb[0].mxu0
    %v3779 = vadd.f32 %v3688, %v3778
    %v3780 = vpop.f32.mrb[0].mxu0
    %3781 = vmatprep.mubr.f32.mxu0 0.0
    %v3782 = vand.u32 %v3201, 4294901760
    %3783 = vmatmul.mubr.f32.gmra.mrb[0].mxu0 %v3782
    %v3784 = vpop.f32.mrb[0].mxu0
    %v3785 = vadd.f32 %v3694, %v3784
    %v3786 = vpop.f32.mrb[0].mxu0
    %3787 = vmatprep.mubr.f32.mxu0 0.0
    %v3788 = vand.u32 %v3204, 4294901760
    %3789 = vmatmul.mubr.f32.gmra.mrb[0].mxu0 %v3788
    %v3790 = vpop.f32.mrb[0].mxu0
    %v3791 = vadd.f32 %v3700, %v3790
    %v3792 = vpop.f32.mrb[0].mxu0
    %3793 = vdwg.mxu0
    %3798 = vrot.lane.b32.xlu0 %v1265, 4
    %v3799 = vpop.permute.xlu0 %3798
    %3800 = vrot.lane.b32.xlu0 %v1271, 4
    %v3801 = vpop.permute.xlu0 %3800
    %3802 = vrot.lane.b32.xlu0 %v1277, 4
    %v3803 = vpop.permute.xlu0 %3802
    %3804 = vrot.lane.b32.xlu0 %v1283, 4
    %v3805 = vpop.permute.xlu0 %3804
    %3814 = vrot.lane.b32.xlu0 %v1892, 8
    %v3815 = vpop.permute.xlu0 %3814
    %3816 = vrot.lane.b32.xlu0 %v1898, 8
    %v3817 = vpop.permute.xlu0 %3816
    %3818 = vrot.lane.b32.xlu0 %v1904, 8
    %v3819 = vpop.permute.xlu0 %3818
    %3820 = vrot.lane.b32.xlu0 %v1910, 8
    %v3821 = vpop.permute.xlu0 %3820
    %3830 = vrot.lane.b32.xlu0 %v2519, 12
    %v3831 = vpop.permute.xlu0 %3830
    %3832 = vrot.lane.b32.xlu0 %v2525, 12
    %v3833 = vpop.permute.xlu0 %3832
    %3834 = vrot.lane.b32.xlu0 %v2531, 12
    %v3835 = vpop.permute.xlu0 %3834
    %3836 = vrot.lane.b32.xlu0 %v2537, 12
    %v3837 = vpop.permute.xlu0 %3836
    %3846 = vrot.lane.b32.xlu0 %v3146, 16
    %v3847 = vpop.permute.xlu0 %3846
    %3848 = vrot.lane.b32.xlu0 %v3152, 16
    %v3849 = vpop.permute.xlu0 %3848
    %3850 = vrot.lane.b32.xlu0 %v3158, 16
    %v3851 = vpop.permute.xlu0 %3850
    %3852 = vrot.lane.b32.xlu0 %v3164, 16
    %v3853 = vpop.permute.xlu0 %3852
    %3862 = vrot.lane.b32.xlu0 %v3773, 20
    %v3863 = vpop.permute.xlu0 %3862
    %3864 = vrot.lane.b32.xlu0 %v3779, 20
    %v3865 = vpop.permute.xlu0 %3864
    %3866 = vrot.lane.b32.xlu0 %v3785, 20
    %v3867 = vpop.permute.xlu0 %3866
    %3868 = vrot.lane.b32.xlu0 %v3791, 20
    %v3869 = vpop.permute.xlu0 %3868
    %vm3874 = vcmask 31744
    %v3875 = vsel %vm3874, %v638, %v3799
    %v3876 = vsel %vm3874, %v644, %v3801
    %v3877 = vsel %vm3874, %v650, %v3803
    %v3878 = vsel %vm3874, %v656, %v3805
    %vm3879 = vcmask 64512
    %v3880 = vsel %vm3879, %v3875, %v3815
    %v3881 = vsel %vm3879, %v3876, %v3817
    %v3882 = vsel %vm3879, %v3877, %v3819
    %v3883 = vsel %vm3879, %v3878, %v3821
    %vm3884 = vcmask 97280
    %v3885 = vsel %vm3884, %v3880, %v3831
    %v3886 = vsel %vm3884, %v3881, %v3833
    %v3887 = vsel %vm3884, %v3882, %v3835
    %v3888 = vsel %vm3884, %v3883, %v3837
    %v3889 = vsel %vm58, %v3885, %v3847
    %v3890 = vsel %vm58, %v3886, %v3849
    %v3891 = vsel %vm58, %v3887, %v3851
    %v3892 = vsel %vm58, %v3888, %v3853
    %vm3893 = vcmask 162816
    %v3894 = vsel %vm3893, %v3889, %v3863
    %v3895 = vsel %vm3893, %v3890, %v3865
    %v3896 = vsel %vm3893, %v3891, %v3867
    %v3897 = vsel %vm3893, %v3892, %v3869
    %3902 = vrot.lane.b32.xlu0 %v638, 124
    %v3903 = vpop.permute.xlu0 %3902
    %3904 = vrot.lane.b32.xlu0 %v644, 124
    %v3905 = vpop.permute.xlu0 %3904
    %3906 = vrot.lane.b32.xlu0 %v650, 124
    %v3907 = vpop.permute.xlu0 %3906
    %3908 = vrot.lane.b32.xlu0 %v656, 124
    %v3909 = vpop.permute.xlu0 %3908
    %3914 = vrot.lane.b32.xlu0 %v1892, 4
    %v3915 = vpop.permute.xlu0 %3914
    %3916 = vrot.lane.b32.xlu0 %v1898, 4
    %v3917 = vpop.permute.xlu0 %3916
    %3918 = vrot.lane.b32.xlu0 %v1904, 4
    %v3919 = vpop.permute.xlu0 %3918
    %3920 = vrot.lane.b32.xlu0 %v1910, 4
    %v3921 = vpop.permute.xlu0 %3920
    %3926 = vrot.lane.b32.xlu0 %v2519, 8
    %v3927 = vpop.permute.xlu0 %3926
    %3928 = vrot.lane.b32.xlu0 %v2525, 8
    %v3929 = vpop.permute.xlu0 %3928
    %3930 = vrot.lane.b32.xlu0 %v2531, 8
    %v3931 = vpop.permute.xlu0 %3930
    %3932 = vrot.lane.b32.xlu0 %v2537, 8
    %v3933 = vpop.permute.xlu0 %3932
    %3938 = vrot.lane.b32.xlu0 %v3146, 12
    %v3939 = vpop.permute.xlu0 %3938
    %3940 = vrot.lane.b32.xlu0 %v3152, 12
    %v3941 = vpop.permute.xlu0 %3940
    %3942 = vrot.lane.b32.xlu0 %v3158, 12
    %v3943 = vpop.permute.xlu0 %3942
    %3944 = vrot.lane.b32.xlu0 %v3164, 12
    %v3945 = vpop.permute.xlu0 %3944
    %3950 = vrot.lane.b32.xlu0 %v3773, 16
    %v3951 = vpop.permute.xlu0 %3950
    %3952 = vrot.lane.b32.xlu0 %v3779, 16
    %v3953 = vpop.permute.xlu0 %3952
    %3954 = vrot.lane.b32.xlu0 %v3785, 16
    %v3955 = vpop.permute.xlu0 %3954
    %3956 = vrot.lane.b32.xlu0 %v3791, 16
    %v3957 = vpop.permute.xlu0 %3956
    %v3962 = vsel %vm3874, %v3903, %v1265
    %v3963 = vsel %vm3874, %v3905, %v1271
    %v3964 = vsel %vm3874, %v3907, %v1277
    %v3965 = vsel %vm3874, %v3909, %v1283
    %v3966 = vsel %vm3879, %v3962, %v3915
    %v3967 = vsel %vm3879, %v3963, %v3917
    %v3968 = vsel %vm3879, %v3964, %v3919
    %v3969 = vsel %vm3879, %v3965, %v3921
    %v3970 = vsel %vm3884, %v3966, %v3927
    %v3971 = vsel %vm3884, %v3967, %v3929
    %v3972 = vsel %vm3884, %v3968, %v3931
    %v3973 = vsel %vm3884, %v3969, %v3933
    %v3974 = vsel %vm58, %v3970, %v3939
    %v3975 = vsel %vm58, %v3971, %v3941
    %v3976 = vsel %vm58, %v3972, %v3943
    %v3977 = vsel %vm58, %v3973, %v3945
    %v3978 = vsel %vm3893, %v3974, %v3951
    %v3979 = vsel %vm3893, %v3975, %v3953
    %v3980 = vsel %vm3893, %v3976, %v3955
    %v3981 = vsel %vm3893, %v3977, %v3957
    %3982 = vrot.lane.b32.xlu0 %v638, 120
    %v3983 = vpop.permute.xlu0 %3982
    %3984 = vrot.lane.b32.xlu0 %v644, 120
    %v3985 = vpop.permute.xlu0 %3984
    %3986 = vrot.lane.b32.xlu0 %v650, 120
    %v3987 = vpop.permute.xlu0 %3986
    %3988 = vrot.lane.b32.xlu0 %v656, 120
    %v3989 = vpop.permute.xlu0 %3988
    %3994 = vrot.lane.b32.xlu0 %v1265, 124
    %v3995 = vpop.permute.xlu0 %3994
    %3996 = vrot.lane.b32.xlu0 %v1271, 124
    %v3997 = vpop.permute.xlu0 %3996
    %3998 = vrot.lane.b32.xlu0 %v1277, 124
    %v3999 = vpop.permute.xlu0 %3998
    %4000 = vrot.lane.b32.xlu0 %v1283, 124
    %v4001 = vpop.permute.xlu0 %4000
    %4006 = vrot.lane.b32.xlu0 %v2519, 4
    %v4007 = vpop.permute.xlu0 %4006
    %4008 = vrot.lane.b32.xlu0 %v2525, 4
    %v4009 = vpop.permute.xlu0 %4008
    %4010 = vrot.lane.b32.xlu0 %v2531, 4
    %v4011 = vpop.permute.xlu0 %4010
    %4012 = vrot.lane.b32.xlu0 %v2537, 4
    %v4013 = vpop.permute.xlu0 %4012
    %4018 = vrot.lane.b32.xlu0 %v3146, 8
    %v4019 = vpop.permute.xlu0 %4018
    %4020 = vrot.lane.b32.xlu0 %v3152, 8
    %v4021 = vpop.permute.xlu0 %4020
    %4022 = vrot.lane.b32.xlu0 %v3158, 8
    %v4023 = vpop.permute.xlu0 %4022
    %4024 = vrot.lane.b32.xlu0 %v3164, 8
    %v4025 = vpop.permute.xlu0 %4024
    %4030 = vrot.lane.b32.xlu0 %v3773, 12
    %v4031 = vpop.permute.xlu0 %4030
    %4032 = vrot.lane.b32.xlu0 %v3779, 12
    %v4033 = vpop.permute.xlu0 %4032
    %4034 = vrot.lane.b32.xlu0 %v3785, 12
    %v4035 = vpop.permute.xlu0 %4034
    %4036 = vrot.lane.b32.xlu0 %v3791, 12
    %v4037 = vpop.permute.xlu0 %4036
    %v4042 = vsel %vm3874, %v3983, %v3995
    %v4043 = vsel %vm3874, %v3985, %v3997
    %v4044 = vsel %vm3874, %v3987, %v3999
    %v4045 = vsel %vm3874, %v3989, %v4001
    %v4046 = vsel %vm3879, %v4042, %v1892
    %v4047 = vsel %vm3879, %v4043, %v1898
    %v4048 = vsel %vm3879, %v4044, %v1904
    %v4049 = vsel %vm3879, %v4045, %v1910
    %v4050 = vsel %vm3884, %v4046, %v4007
    %v4051 = vsel %vm3884, %v4047, %v4009
    %v4052 = vsel %vm3884, %v4048, %v4011
    %v4053 = vsel %vm3884, %v4049, %v4013
    %v4054 = vsel %vm58, %v4050, %v4019
    %v4055 = vsel %vm58, %v4051, %v4021
    %v4056 = vsel %vm58, %v4052, %v4023
    %v4057 = vsel %vm58, %v4053, %v4025
    %v4058 = vsel %vm3893, %v4054, %v4031
    %v4059 = vsel %vm3893, %v4055, %v4033
    %v4060 = vsel %vm3893, %v4056, %v4035
    %v4061 = vsel %vm3893, %v4057, %v4037
    %4062 = vrot.lane.b32.xlu0 %v638, 116
    %v4063 = vpop.permute.xlu0 %4062
    %4064 = vrot.lane.b32.xlu0 %v644, 116
    %v4065 = vpop.permute.xlu0 %4064
    %4066 = vrot.lane.b32.xlu0 %v650, 116
    %v4067 = vpop.permute.xlu0 %4066
    %4068 = vrot.lane.b32.xlu0 %v656, 116
    %v4069 = vpop.permute.xlu0 %4068
    %4074 = vrot.lane.b32.xlu0 %v1265, 120
    %v4075 = vpop.permute.xlu0 %4074
    %4076 = vrot.lane.b32.xlu0 %v1271, 120
    %v4077 = vpop.permute.xlu0 %4076
    %4078 = vrot.lane.b32.xlu0 %v1277, 120
    %v4079 = vpop.permute.xlu0 %4078
    %4080 = vrot.lane.b32.xlu0 %v1283, 120
    %v4081 = vpop.permute.xlu0 %4080
    %4086 = vrot.lane.b32.xlu0 %v1892, 124
    %v4087 = vpop.permute.xlu0 %4086
    %4088 = vrot.lane.b32.xlu0 %v1898, 124
    %v4089 = vpop.permute.xlu0 %4088
    %4090 = vrot.lane.b32.xlu0 %v1904, 124
    %v4091 = vpop.permute.xlu0 %4090
    %4092 = vrot.lane.b32.xlu0 %v1910, 124
    %v4093 = vpop.permute.xlu0 %4092
    %4098 = vrot.lane.b32.xlu0 %v3146, 4
    %v4099 = vpop.permute.xlu0 %4098
    %4100 = vrot.lane.b32.xlu0 %v3152, 4
    %v4101 = vpop.permute.xlu0 %4100
    %4102 = vrot.lane.b32.xlu0 %v3158, 4
    %v4103 = vpop.permute.xlu0 %4102
    %4104 = vrot.lane.b32.xlu0 %v3164, 4
    %v4105 = vpop.permute.xlu0 %4104
    %4110 = vrot.lane.b32.xlu0 %v3773, 8
    %v4111 = vpop.permute.xlu0 %4110
    %4112 = vrot.lane.b32.xlu0 %v3779, 8
    %v4113 = vpop.permute.xlu0 %4112
    %4114 = vrot.lane.b32.xlu0 %v3785, 8
    %v4115 = vpop.permute.xlu0 %4114
    %4116 = vrot.lane.b32.xlu0 %v3791, 8
    %v4117 = vpop.permute.xlu0 %4116
    %v4122 = vsel %vm3874, %v4063, %v4075
    %v4123 = vsel %vm3874, %v4065, %v4077
    %v4124 = vsel %vm3874, %v4067, %v4079
    %v4125 = vsel %vm3874, %v4069, %v4081
    %v4126 = vsel %vm3879, %v4122, %v4087
    %v4127 = vsel %vm3879, %v4123, %v4089
    %v4128 = vsel %vm3879, %v4124, %v4091
    %v4129 = vsel %vm3879, %v4125, %v4093
    %v4130 = vsel %vm3884, %v4126, %v2519
    %v4131 = vsel %vm3884, %v4127, %v2525
    %v4132 = vsel %vm3884, %v4128, %v2531
    %v4133 = vsel %vm3884, %v4129, %v2537
    %v4134 = vsel %vm58, %v4130, %v4099
    %v4135 = vsel %vm58, %v4131, %v4101
    %v4136 = vsel %vm58, %v4132, %v4103
    %v4137 = vsel %vm58, %v4133, %v4105
    %v4138 = vsel %vm3893, %v4134, %v4111
    %v4139 = vsel %vm3893, %v4135, %v4113
    %v4140 = vsel %vm3893, %v4136, %v4115
    %v4141 = vsel %vm3893, %v4137, %v4117
    %4146 = vrot.lane.b32.xlu0 %v3978, 24
    %v4147 = vpop.permute.xlu0 %4146
    %4148 = vrot.lane.b32.xlu0 %v3979, 24
    %v4149 = vpop.permute.xlu0 %4148
    %4150 = vrot.lane.b32.xlu0 %v3980, 24
    %v4151 = vpop.permute.xlu0 %4150
    %4152 = vrot.lane.b32.xlu0 %v3981, 24
    %v4153 = vpop.permute.xlu0 %4152
    %4162 = vrot.lane.b32.xlu0 %v4058, 48
    %v4163 = vpop.permute.xlu0 %4162
    %4164 = vrot.lane.b32.xlu0 %v4059, 48
    %v4165 = vpop.permute.xlu0 %4164
    %4166 = vrot.lane.b32.xlu0 %v4060, 48
    %v4167 = vpop.permute.xlu0 %4166
    %4168 = vrot.lane.b32.xlu0 %v4061, 48
    %v4169 = vpop.permute.xlu0 %4168
    %4178 = vrot.lane.b32.xlu0 %v4138, 72
    %v4179 = vpop.permute.xlu0 %4178
    %4180 = vrot.lane.b32.xlu0 %v4139, 72
    %v4181 = vpop.permute.xlu0 %4180
    %4182 = vrot.lane.b32.xlu0 %v4140, 72
    %v4183 = vpop.permute.xlu0 %4182
    %4184 = vrot.lane.b32.xlu0 %v4141, 72
    %v4185 = vpop.permute.xlu0 %4184
    %vm4190 = vcmask 195584
    %v4191 = vsel %vm4190, %v3894, %v4147
    %v4192 = vsel %vm4190, %v3895, %v4149
    %v4193 = vsel %vm4190, %v3896, %v4151
    %v4194 = vsel %vm4190, %v3897, %v4153
    %vm4195 = vcmask 392192
    %v4196 = vsel %vm4195, %v4191, %v4163
    %v4197 = vsel %vm4195, %v4192, %v4165
    %v4198 = vsel %vm4195, %v4193, %v4167
    %v4199 = vsel %vm4195, %v4194, %v4169
    %vm4200 = vcmask 588800
    %v4201 = vsel %vm4200, %v4196, %v4179
    %v4202 = vsel %vm4200, %v4197, %v4181
    %v4203 = vsel %vm4200, %v4198, %v4183
    %v4204 = vsel %vm4200, %v4199, %v4185
    %vm4205 = vcmask 785408
    %4206 = vst.msk [vmem:[#allocation5] sm:$0xff] %vm4205, %v4201
    %4207 = vst.msk [vmem:[#allocation5 + $0x8] sm:$0xff] %vm4205, %v4202
    %4208 = vst.msk [vmem:[#allocation5 + $0x10] sm:$0xff] %vm4205, %v4203
    %4209 = vst.msk [vmem:[#allocation5 + $0x18] sm:$0xff] %vm4205, %v4204
    // Predicated region
    $region14: #{tpu_custom_call.1} parent=1 // pred_check
      _
    $region15: #{tpu_custom_call.1} parent=1 // pred_check_branch
      %4211 = sbr.rel (0) target = $region17
    $region16: #{tpu_custom_call.1} parent=1 // pred_region
      %s4213 = ssub.s32 512, 512
      %4214 = vsyncadd [#allocation4], %s4213
      %s4215 = sshll.u32 [#allocation5], 4
      %s4216 = int_to_ptr.vmem [resolvable:$true] %s4215
      %4221 = dma.vmem_to_hbm [thread:$0]  %s4216, 512, %s2, [#allocation4], 128, 128, 8
    $region17: #{tpu_custom_call.1} parent=1 // pred_fallthru
      _
    // Predicated region
    $region18: #{tpu_custom_call.1} parent=1 // pred_check
      _
    $region19: #{tpu_custom_call.1} parent=1 // pred_check_branch
      %4223 = sbr.rel (0) target = $region21
    $region20: #{tpu_custom_call.1} parent=1 // pred_region
      %4224 = dma.done [#allocation4], 512
    $region21: #{tpu_custom_call.1} parent=1 // pred_fallthru
      _
    %4225 = vsyncpa [#allocation3], 1
    %4226 = vsyncpa [#allocation4], 1

</llo_original>
